<compile_context>
chip_gen: v7x
topology: tpu7x:2x2x1
jax: 0.10.0
libtpu: 0.0.40
codegen_flags: <defaults>
</compile_context>

<pallas_src>
import jax
import jax.numpy as jnp
from jax.experimental import pallas as pl
from jax.experimental.pallas import tpu as pltpu

# ----- small synthetic config (stands in for hf_config) -----
VOCAB = 128
HIDDEN = 256
N_LAYERS = 2
N_HEADS = 2
HEAD_DIM = HIDDEN // N_HEADS          # 128 -> lane-dense head dim
INTERMEDIATE = 512
SEQ = 16
RMS_EPS = 1e-6
ROPE_THETA = 10000.0
ACT_DTYPE = jnp.float32               # residual / elementwise math
W_DTYPE = jnp.bfloat16                # weight storage + MXU operands
NEG_INF = -1e30                       # finite causal mask value (NaN-safe)


def _rms(x, w):
    # x: [S, H] f32, w: [1, H] f32
    var = jnp.mean(x * x, axis=-1, keepdims=True)
    return x * jax.lax.rsqrt(var + RMS_EPS) * w


# ---------------------------------------------------------------------------
# One fused kernel for the whole decoder stack.  grid = (N_LAYERS,); the
# output block (residual stream) is revisited every step and stays resident
# in VMEM while the next layer's bf16 weights stream in via BlockSpec.
# ---------------------------------------------------------------------------
def fused_stack_kernel(h0_ref, cos_ref, ssin_ref, norms_ref, final_norm_ref,
                       wqkv_ref, wo_ref, wgu_ref, wdown_ref, o_ref):
    layer = pl.program_id(0)
    last = pl.num_programs(0) - 1

    @pl.when(layer == 0)
    def _():
        o_ref[...] = h0_ref[...]

    h = o_ref[...]                                    # [S, H] f32 residual
    norms = norms_ref[...]                            # [2, H] f32
    cos = cos_ref[...]                                # [S, D] f32
    ssin = ssin_ref[...]                              # [S, D] f32, sign pre-folded

    # ----------------------- self-attention -----------------------
    x = _rms(h, norms[0:1, :]).astype(W_DTYPE)        # bf16 matmul operand
    xh = jnp.broadcast_to(x, (N_HEADS, SEQ, HIDDEN))  # [h, S, H]

    # Head-major projections: batched MXU matmuls, no per-head lane slicing.
    # Wq already carries the 1/sqrt(head_dim) attention scale.
    q = jnp.einsum('hsk,hkd->hsd', xh, wqkv_ref[0],
                   preferred_element_type=jnp.float32)        # [h, S, D]
    k = jnp.einsum('hsk,hkd->hsd', xh, wqkv_ref[1],
                   preferred_element_type=jnp.float32)
    v = jnp.einsum('hsk,hkd->hsd', xh, wqkv_ref[2],
                   preferred_element_type=jnp.float32)

    # RoPE over the whole slab at once: rotate_half == roll by D/2 along the
    # head dim (XLU rotate) with the sign folded into the precomputed table.
    def rope(t):
        t2 = t.reshape(N_HEADS * SEQ, HEAD_DIM)               # layout no-op
        rot = pltpu.roll(t2, HEAD_DIM // 2, axis=1)
        rot = rot.reshape(N_HEADS, SEQ, HEAD_DIM)
        return t * cos + rot * ssin

    q = rope(q).astype(W_DTYPE)
    k = rope(k).astype(W_DTYPE)

    row = jax.lax.broadcasted_iota(jnp.int32, (SEQ, SEQ), 0)
    col = jax.lax.broadcasted_iota(jnp.int32, (SEQ, SEQ), 1)
    causal = col <= row

    s = jnp.einsum('hqd,hkd->hqk', q, k,
                   preferred_element_type=jnp.float32)        # [h, S, S]
    s = jnp.where(causal, s, NEG_INF)
    m = jnp.max(s, axis=-1, keepdims=True)
    p = jnp.exp(s - m)
    denom = jnp.sum(p, axis=-1, keepdims=True)

    ctx = jnp.einsum('hqk,hkd->hqd', p.astype(W_DTYPE), v.astype(W_DTYPE),
                     preferred_element_type=jnp.float32)
    ctx = ctx / denom                                  # exact softmax norm

    # Head-concat permutation folded into Wo's layout ([h, D, H]):
    # batched matmul + sum over heads instead of a lane concatenate.
    attn = jnp.einsum('hqd,hdo->hqo', ctx.astype(W_DTYPE), wo_ref[...],
                      preferred_element_type=jnp.float32).sum(axis=0)
    h = h + attn

    # ----------------------------- MLP -----------------------------
    x = _rms(h, norms[1:2, :]).astype(W_DTYPE)
    gu = jnp.dot(x, wgu_ref[...], preferred_element_type=jnp.float32)  # [S, 2I]
    g = gu[:, :INTERMEDIATE]                           # 128-aligned lane slices
    u = gu[:, INTERMEDIATE:]
    act = (g * jax.nn.sigmoid(g) * u).astype(W_DTYPE)  # SiLU(gate) * up, f32 math
    h = h + jnp.dot(act, wdown_ref[...], preferred_element_type=jnp.float32)

    # Single predicated store per grid step.
    @pl.when(layer != last)
    def _():
        o_ref[...] = h.astype(o_ref.dtype)

    @pl.when(layer == last)
    def _():
        o_ref[...] = _rms(h, final_norm_ref[...]).astype(o_ref.dtype)


# ---------------------------------------------------------------------------
# Glue: RoPE tables, parameter init (weights stacked / reshaped / bf16 ONCE)
# ---------------------------------------------------------------------------
def rope_tables(positions):
    inv_freq = 1.0 / (ROPE_THETA ** (
        jnp.arange(0, HEAD_DIM, 2, dtype=jnp.float32) / HEAD_DIM))
    freqs = positions.astype(jnp.float32)[:, None] * inv_freq[None, :]
    emb = jnp.concatenate([freqs, freqs], axis=-1)     # [S, D]
    cos = jnp.cos(emb)
    sin = jnp.sin(emb)
    # rotate_half(x)*sin == roll(x, D/2)*signed_sin  (sign folded in here).
    signed_sin = jnp.concatenate(
        [-sin[:, :HEAD_DIM // 2], sin[:, HEAD_DIM // 2:]], axis=-1)
    return cos, sin, signed_sin


def init_params(key):
    def dense(k, shape, scale=0.02):
        return scale * jax.random.normal(k, shape, dtype=jnp.float32)

    keys = jax.random.split(key, 2 + N_LAYERS)
    qk_scale = HEAD_DIM ** -0.5

    def heads_in_out(w):          # torch [OUT=H, IN=H] -> [n_heads, IN=H, D]
        return w.T.reshape(HIDDEN, N_HEADS, HEAD_DIM).transpose(1, 0, 2)

    wqkv, wo, wgu, wdown, norms = [], [], [], [], []
    for li in range(N_LAYERS):
        lk = jax.random.split(keys[2 + li], 8)
        q_w = dense(lk[0], (HIDDEN, HIDDEN)) * qk_scale   # scale folded into Wq
        k_w = dense(lk[1], (HIDDEN, HIDDEN))
        v_w = dense(lk[2], (HIDDEN, HIDDEN))
        o_w = dense(lk[3], (HIDDEN, HIDDEN))
        g_w = dense(lk[4], (INTERMEDIATE, HIDDEN))
        u_w = dense(lk[5], (INTERMEDIATE, HIDDEN))
        d_w = dense(lk[6], (HIDDEN, INTERMEDIATE))

        wqkv.append(jnp.stack([heads_in_out(q_w), heads_in_out(k_w),
                               heads_in_out(v_w)], axis=0))   # [3, h, H, D]
        wo.append(o_w.T.reshape(N_HEADS, HEAD_DIM, HIDDEN))   # [h, D, H]
        wgu.append(jnp.concatenate([g_w.T, u_w.T], axis=1))   # [H, 2I]
        wdown.append(d_w.T)                                   # [I, H]
        norms.append(1.0 + 0.05 * jax.random.normal(lk[7], (2, HIDDEN),
                                                    jnp.float32))

    return {
        "embed": dense(keys[0], (VOCAB, HIDDEN)).astype(ACT_DTYPE),
        "norms": jnp.stack(norms),                              # [L, 2, H] f32
        "final_norm": (1.0 + 0.05 * jax.random.normal(
            keys[1], (1, HIDDEN), jnp.float32)),
        "wqkv": jnp.stack(wqkv).astype(W_DTYPE),    # [L, 3, h, H, D] bf16
        "wo": jnp.stack(wo).astype(W_DTYPE),        # [L, h, D, H]   bf16
        "wgu": jnp.stack(wgu).astype(W_DTYPE),      # [L, H, 2I]     bf16
        "wdown": jnp.stack(wdown).astype(W_DTYPE),  # [L, I, H]      bf16
    }


# ---------------------------------------------------------------------------
# Forward (mirrors TransformersModel.forward on a single pp/tp rank)
# ---------------------------------------------------------------------------
@jax.jit
def transformers_model_forward(params, input_ids, positions):
    # input_ids, positions: [SEQ] int32  ->  hidden_states [SEQ, HIDDEN]
    h0 = params["embed"][input_ids]              # embedding gather (plain JAX)
    cos, _, ssin = rope_tables(positions)

    def shared(shape):
        return pl.BlockSpec(shape, lambda l, n=len(shape): (0,) * n)

    def per_layer(shape):
        return pl.BlockSpec((None,) + shape,
                            lambda l, n=len(shape): (l,) + (0,) * n)

    return pl.pallas_call(
        fused_stack_kernel,
        grid=(N_LAYERS,),
        in_specs=[
            shared((SEQ, HIDDEN)),                       # embeddings
            shared((SEQ, HEAD_DIM)),                     # cos
            shared((SEQ, HEAD_DIM)),                     # pre-signed sin
            per_layer((2, HIDDEN)),                      # [in_norm, post_norm]
            shared((1, HIDDEN)),                         # final norm
            per_layer((3, N_HEADS, HIDDEN, HEAD_DIM)),   # Wq|Wk|Wv head-major
            per_layer((N_HEADS, HEAD_DIM, HIDDEN)),      # Wo head-major
            per_layer((HIDDEN, 2 * INTERMEDIATE)),       # W gate|up
            per_layer((INTERMEDIATE, HIDDEN)),           # W down
        ],
        out_specs=pl.BlockSpec((SEQ, HIDDEN), lambda l: (0, 0)),  # resident
        out_shape=jax.ShapeDtypeStruct((SEQ, HIDDEN), ACT_DTYPE),
        compiler_params=pltpu.CompilerParams(
            dimension_semantics=("arbitrary",),          # carried residual
            vmem_limit_bytes=64 * 1024 * 1024),
    )(h0, cos, ssin, params["norms"], params["final_norm"],
      params["wqkv"], params["wo"], params["wgu"], params["wdown"])


# ---------------------------------------------------------------------------
# Pure-JAX reference mirroring the kernel's numerics (bf16 matmul operands,
# f32 accumulation / elementwise) for validation.
# ---------------------------------------------------------------------------
def reference_forward(params, input_ids, positions):
    f32 = jnp.float32
    h = params["embed"][input_ids].astype(f32)
    cos, sin, _ = rope_tables(positions)

    def rms(x, w):
        var = jnp.mean(x * x, axis=-1, keepdims=True)
        return x * jax.lax.rsqrt(var + RMS_EPS) * w

    def rotate_half(t):
        return jnp.concatenate(
            [-t[..., HEAD_DIM // 2:], t[..., :HEAD_DIM // 2]], axis=-1)

    causal = jnp.arange(SEQ)[None, :] <= jnp.arange(SEQ)[:, None]

    for l in range(N_LAYERS):
        wqkv = params["wqkv"][l]
        norms = params["norms"][l]

        x = rms(h, norms[0:1, :]).astype(W_DTYPE)
        q = jnp.einsum('sk,hkd->hsd', x, wqkv[0], preferred_element_type=f32)
        k = jnp.einsum('sk,hkd->hsd', x, wqkv[1], preferred_element_type=f32)
        v = jnp.einsum('sk,hkd->hsd', x, wqkv[2], preferred_element_type=f32)
        q = (q * cos + rotate_half(q) * sin).astype(W_DTYPE)
        k = (k * cos + rotate_half(k) * sin).astype(W_DTYPE)

        s = jnp.einsum('hqd,hkd->hqk', q, k, preferred_element_type=f32)
        s = jnp.where(causal, s, NEG_INF)
        m = jnp.max(s, axis=-1, keepdims=True)
        p = jnp.exp(s - m)
        denom = jnp.sum(p, axis=-1, keepdims=True)
        ctx = jnp.einsum('hqk,hkd->hqd', p.astype(W_DTYPE), v.astype(W_DTYPE),
                         preferred_element_type=f32) / denom
        attn = jnp.einsum('hqd,hdo->qo', ctx.astype(W_DTYPE), params["wo"][l],
                          preferred_element_type=f32)
        h = h + attn

        x = rms(h, norms[1:2, :]).astype(W_DTYPE)
        gu = jnp.dot(x, params["wgu"][l], preferred_element_type=f32)
        g, u = gu[:, :INTERMEDIATE], gu[:, INTERMEDIATE:]
        act = (g * jax.nn.sigmoid(g) * u).astype(W_DTYPE)
        h = h + jnp.dot(act, params["wdown"][l], preferred_element_type=f32)

    return rms(h, params["final_norm"])


if __name__ == "__main__":
    key = jax.random.PRNGKey(0)
    pkey, ikey = jax.random.split(key)
    params = init_params(pkey)

    input_ids = jax.random.randint(ikey, (SEQ,), 0, VOCAB, dtype=jnp.int32)
    positions = jnp.arange(SEQ, dtype=jnp.int32)

    out = transformers_model_forward(params, input_ids, positions)
    out = jax.block_until_ready(out)

    assert out.shape == (SEQ, HIDDEN)
    assert out.dtype == ACT_DTYPE
    assert bool(jnp.all(jnp.isfinite(out)))

    ref = reference_forward(params, input_ids, positions)
    err = float(jnp.max(jnp.abs(out - ref)))
    assert err < 5e-2, f"max abs err vs reference: {err}"

    print("KERNEL_OK")
</pallas_src>

<mosaic_0001>
module attributes {stable_mosaic.version = 11 : i64} {
  func.func @fused_stack_kernel(%arg0: i32, %arg1: memref<16x256xf32, #tpu.memory_space<vmem>>, %arg2: memref<16x128xf32, #tpu.memory_space<vmem>>, %arg3: memref<16x128xf32, #tpu.memory_space<vmem>>, %arg4: memref<1x2x256xf32, #tpu.memory_space<vmem>>, %arg5: memref<1x256xf32, #tpu.memory_space<vmem>>, %arg6: memref<1x3x2x256x128xbf16, #tpu.memory_space<vmem>>, %arg7: memref<1x2x128x256xbf16, #tpu.memory_space<vmem>>, %arg8: memref<1x256x1024xbf16, #tpu.memory_space<vmem>>, %arg9: memref<1x512x256xbf16, #tpu.memory_space<vmem>>, %arg10: memref<16x256xf32, #tpu.memory_space<vmem>>) attributes {dimension_semantics = [#tpu.dimension_semantics<arbitrary>], iteration_bounds = array<i64: 2>, scalar_prefetch = 0 : i64, scratch_operands = 0 : i64, tpu.core_type = #tpu.core_type<tc>, window_params = [{pipeline_mode = #tpu.pipeline_mode<synchronous>, transform_indices = @transform_0, window_bounds = array<i64: 16, 256>}, {pipeline_mode = #tpu.pipeline_mode<synchronous>, transform_indices = @transform_1, window_bounds = array<i64: 16, 128>}, {pipeline_mode = #tpu.pipeline_mode<synchronous>, transform_indices = @transform_2, window_bounds = array<i64: 16, 128>}, {transform_indices = @transform_3, window_bounds = array<i64: 1, 2, 256>}, {pipeline_mode = #tpu.pipeline_mode<synchronous>, transform_indices = @transform_4, window_bounds = array<i64: 1, 256>}, {transform_indices = @transform_5, window_bounds = array<i64: 1, 3, 2, 256, 128>}, {transform_indices = @transform_6, window_bounds = array<i64: 1, 2, 128, 256>}, {transform_indices = @transform_7, window_bounds = array<i64: 1, 256, 1024>}, {transform_indices = @transform_8, window_bounds = array<i64: 1, 512, 256>}, {pipeline_mode = #tpu.pipeline_mode<synchronous>, transform_indices = @transform_9, window_bounds = array<i64: 16, 256>}]} {
    %c0_i32 = arith.constant 0 : i32
    %0 = arith.cmpi eq, %arg0, %c0_i32 : i32
    %1 = arith.extui %0 : i1 to i32
    %c0_i32_0 = arith.constant 0 : i32
    %2 = arith.cmpi ne, %1, %c0_i32_0 : i32
    scf.if %2 {
      %c0_54 = arith.constant 0 : index
      %c0_55 = arith.constant 0 : index
      %118 = vector.load %arg1[%c0_54, %c0_55] : memref<16x256xf32, #tpu.memory_space<vmem>>, vector<16x256xf32>
      %c0_56 = arith.constant 0 : index
      %c0_57 = arith.constant 0 : index
      %119 = vector.load %arg10[%c0_56, %c0_57] : memref<16x256xf32, #tpu.memory_space<vmem>>, vector<16x256xf32>
      tpu.vector_store %arg10[%c0_56, %c0_57], %118 {strides = array<i32>} : memref<16x256xf32, #tpu.memory_space<vmem>>, vector<16x256xf32>,
    } else {
    }
    %c0 = arith.constant 0 : index
    %c0_1 = arith.constant 0 : index
    %3 = vector.load %arg10[%c0, %c0_1] : memref<16x256xf32, #tpu.memory_space<vmem>>, vector<16x256xf32>
    %c0_2 = arith.constant 0 : index
    %c0_3 = arith.constant 0 : index
    %c0_4 = arith.constant 0 : index
    %4 = vector.load %arg4[%c0_2, %c0_3, %c0_4] : memref<1x2x256xf32, #tpu.memory_space<vmem>>, vector<1x2x256xf32>
    %5 = vector.shape_cast %4 : vector<1x2x256xf32> to vector<2x256xf32>
    %c0_5 = arith.constant 0 : index
    %c0_6 = arith.constant 0 : index
    %6 = vector.load %arg2[%c0_5, %c0_6] : memref<16x128xf32, #tpu.memory_space<vmem>>, vector<16x128xf32>
    %c0_7 = arith.constant 0 : index
    %c0_8 = arith.constant 0 : index
    %7 = vector.load %arg3[%c0_7, %c0_8] : memref<16x128xf32, #tpu.memory_space<vmem>>, vector<16x128xf32>
    %8 = vector.extract_strided_slice %5 {offsets = [0, 0], sizes = [1, 256], strides = [1, 1]} : vector<2x256xf32> to vector<1x256xf32>
    %9 = arith.mulf %3, %3 : vector<16x256xf32>
    %cst = arith.constant dense<0.000000e+00> : vector<16xf32>
    %10 = vector.multi_reduction <add>, %9, %cst [1] : vector<16x256xf32> to vector<16xf32>
    %11 = vector.shape_cast %10 : vector<16xf32> to vector<16x1xf32>
    %cst_9 = arith.constant 2.560000e+02 : f32
    %12 = vector.broadcast %cst_9 : f32 to vector<16x1xf32>
    %13 = arith.divf %11, %12 : vector<16x1xf32>
    %cst_10 = arith.constant 9.99999997E-7 : f32
    %14 = vector.broadcast %cst_10 : f32 to vector<16x1xf32>
    %15 = arith.addf %13, %14 : vector<16x1xf32>
    %16 = math.rsqrt %15 : vector<16x1xf32>
    %17 = vector.broadcast %16 : vector<16x1xf32> to vector<16x256xf32>
    %18 = arith.mulf %3, %17 : vector<16x256xf32>
    %19 = vector.broadcast %8 : vector<1x256xf32> to vector<16x256xf32>
    %20 = arith.mulf %18, %19 : vector<16x256xf32>
    %21 = arith.truncf %20 : vector<16x256xf32> to vector<16x256xbf16>
    %22 = vector.shape_cast %21 : vector<16x256xbf16> to vector<1x16x256xbf16>
    %23 = vector.broadcast %22 : vector<1x16x256xbf16> to vector<2x16x256xbf16>
    %c0_11 = arith.constant 0 : index
    %c0_12 = arith.constant 0 : index
    %c0_13 = arith.constant 0 : index
    %c0_14 = arith.constant 0 : index
    %c0_15 = arith.constant 0 : index
    %24 = vector.load %arg6[%c0_11, %c0_12, %c0_13, %c0_14, %c0_15] : memref<1x3x2x256x128xbf16, #tpu.memory_space<vmem>>, vector<1x1x2x256x128xbf16>
    %25 = vector.shape_cast %24 : vector<1x1x2x256x128xbf16> to vector<2x256x128xbf16>
    "tpu.trace_start"() <{level = 10 : i32, message = "hsk,hkd->hsd"}> : () -> ()
    %cst_16 = arith.constant dense<0.000000e+00> : vector<2x16x128xf32>
    %26 = tpu.matmul %23, %25, %cst_16 {dimension_numbers = #tpu.dot_dimension_numbers<[2], [1], [1], [2], [0, 0, 0, 1, 1, 2], [0], [0]>} : vector<2x16x256xbf16>, vector<2x256x128xbf16>, vector<2x16x128xf32> -> vector<2x16x128xf32>
    "tpu.trace_stop"() : () -> ()
    %c0_17 = arith.constant 0 : index
    %c1 = arith.constant 1 : index
    %c0_18 = arith.constant 0 : index
    %c0_19 = arith.constant 0 : index
    %c0_20 = arith.constant 0 : index
    %27 = vector.load %arg6[%c0_17, %c1, %c0_18, %c0_19, %c0_20] : memref<1x3x2x256x128xbf16, #tpu.memory_space<vmem>>, vector<1x1x2x256x128xbf16>
    %28 = vector.shape_cast %27 : vector<1x1x2x256x128xbf16> to vector<2x256x128xbf16>
    "tpu.trace_start"() <{level = 10 : i32, message = "hsk,hkd->hsd"}> : () -> ()
    %cst_21 = arith.constant dense<0.000000e+00> : vector<2x16x128xf32>
    %29 = tpu.matmul %23, %28, %cst_21 {dimension_numbers = #tpu.dot_dimension_numbers<[2], [1], [1], [2], [0, 0, 0, 1, 1, 2], [0], [0]>} : vector<2x16x256xbf16>, vector<2x256x128xbf16>, vector<2x16x128xf32> -> vector<2x16x128xf32>
    "tpu.trace_stop"() : () -> ()
    %c0_22 = arith.constant 0 : index
    %c2 = arith.constant 2 : index
    %c0_23 = arith.constant 0 : index
    %c0_24 = arith.constant 0 : index
    %c0_25 = arith.constant 0 : index
    %30 = vector.load %arg6[%c0_22, %c2, %c0_23, %c0_24, %c0_25] : memref<1x3x2x256x128xbf16, #tpu.memory_space<vmem>>, vector<1x1x2x256x128xbf16>
    %31 = vector.shape_cast %30 : vector<1x1x2x256x128xbf16> to vector<2x256x128xbf16>
    "tpu.trace_start"() <{level = 10 : i32, message = "hsk,hkd->hsd"}> : () -> ()
    %cst_26 = arith.constant dense<0.000000e+00> : vector<2x16x128xf32>
    %32 = tpu.matmul %23, %31, %cst_26 {dimension_numbers = #tpu.dot_dimension_numbers<[2], [1], [1], [2], [0, 0, 0, 1, 1, 2], [0], [0]>} : vector<2x16x256xbf16>, vector<2x256x128xbf16>, vector<2x16x128xf32> -> vector<2x16x128xf32>
    "tpu.trace_stop"() : () -> ()
    %33 = vector.shape_cast %26 : vector<2x16x128xf32> to vector<32x128xf32>
    %c64_i32 = arith.constant 64 : i32
    %34 = tpu.dynamic_rotate %33 by %c64_i32 dim 1 : vector<32x128xf32>, i32 -> vector<32x128xf32>
    %35 = vector.shape_cast %34 : vector<32x128xf32> to vector<2x16x128xf32>
    %36 = vector.shape_cast %6 : vector<16x128xf32> to vector<1x16x128xf32>
    %37 = vector.broadcast %36 : vector<1x16x128xf32> to vector<2x16x128xf32>
    %38 = arith.mulf %26, %37 : vector<2x16x128xf32>
    %39 = vector.shape_cast %7 : vector<16x128xf32> to vector<1x16x128xf32>
    %40 = vector.broadcast %39 : vector<1x16x128xf32> to vector<2x16x128xf32>
    %41 = arith.mulf %35, %40 : vector<2x16x128xf32>
    %42 = arith.addf %38, %41 : vector<2x16x128xf32>
    %43 = arith.truncf %42 : vector<2x16x128xf32> to vector<2x16x128xbf16>
    %44 = vector.shape_cast %29 : vector<2x16x128xf32> to vector<32x128xf32>
    %c64_i32_27 = arith.constant 64 : i32
    %45 = tpu.dynamic_rotate %44 by %c64_i32_27 dim 1 : vector<32x128xf32>, i32 -> vector<32x128xf32>
    %46 = vector.shape_cast %45 : vector<32x128xf32> to vector<2x16x128xf32>
    %47 = vector.shape_cast %6 : vector<16x128xf32> to vector<1x16x128xf32>
    %48 = vector.broadcast %47 : vector<1x16x128xf32> to vector<2x16x128xf32>
    %49 = arith.mulf %29, %48 : vector<2x16x128xf32>
    %50 = vector.shape_cast %7 : vector<16x128xf32> to vector<1x16x128xf32>
    %51 = vector.broadcast %50 : vector<1x16x128xf32> to vector<2x16x128xf32>
    %52 = arith.mulf %46, %51 : vector<2x16x128xf32>
    %53 = arith.addf %49, %52 : vector<2x16x128xf32>
    %54 = arith.truncf %53 : vector<2x16x128xf32> to vector<2x16x128xbf16>
    %55 = tpu.iota {dimensions = array<i32: 0>} : vector<16x16xi32>
    %56 = tpu.iota {dimensions = array<i32: 1>} : vector<16x16xi32>
    %57 = arith.cmpi sle, %56, %55 : vector<16x16xi32>
    "tpu.trace_start"() <{level = 10 : i32, message = "hqd,hkd->hqk"}> : () -> ()
    %cst_28 = arith.constant dense<0.000000e+00> : vector<2x16x16xf32>
    %58 = tpu.matmul %43, %54, %cst_28 {dimension_numbers = #tpu.dot_dimension_numbers<[2], [2], [1], [1], [0, 0, 0, 1, 1, 1], [0], [0]>} : vector<2x16x128xbf16>, vector<2x16x128xbf16>, vector<2x16x16xf32> -> vector<2x16x16xf32>
    %cst_29 = arith.constant -1.000000e+30 : f32
    "tpu.trace_stop"() : () -> ()
    %59 = vector.shape_cast %57 : vector<16x16xi1> to vector<1x16x16xi1>
    %60 = vector.broadcast %59 : vector<1x16x16xi1> to vector<2x16x16xi1>
    %61 = vector.broadcast %cst_29 : f32 to vector<2x16x16xf32>
    %62 = arith.select %60, %58, %61 : vector<2x16x16xi1>, vector<2x16x16xf32>
    %cst_30 = arith.constant dense<0xFF800000> : vector<2x16xf32>
    %63 = vector.multi_reduction <maximumf>, %62, %cst_30 [2] : vector<2x16x16xf32> to vector<2x16xf32>
    %64 = vector.shape_cast %63 : vector<2x16xf32> to vector<2x16x1xf32>
    %65 = vector.broadcast %64 : vector<2x16x1xf32> to vector<2x16x16xf32>
    %66 = arith.subf %62, %65 : vector<2x16x16xf32>
    %67 = math.exp %66 : vector<2x16x16xf32>
    %cst_31 = arith.constant dense<0.000000e+00> : vector<2x16xf32>
    %68 = vector.multi_reduction <add>, %67, %cst_31 [2] : vector<2x16x16xf32> to vector<2x16xf32>
    %69 = vector.shape_cast %68 : vector<2x16xf32> to vector<2x16x1xf32>
    %70 = arith.truncf %67 : vector<2x16x16xf32> to vector<2x16x16xbf16>
    %71 = arith.truncf %32 : vector<2x16x128xf32> to vector<2x16x128xbf16>
    "tpu.trace_start"() <{level = 10 : i32, message = "hqk,hkd->hqd"}> : () -> ()
    %cst_32 = arith.constant dense<0.000000e+00> : vector<2x16x128xf32>
    %72 = tpu.matmul %70, %71, %cst_32 {dimension_numbers = #tpu.dot_dimension_numbers<[2], [1], [1], [2], [0, 0, 0, 1, 1, 2], [0], [0]>} : vector<2x16x16xbf16>, vector<2x16x128xbf16>, vector<2x16x128xf32> -> vector<2x16x128xf32>
    "tpu.trace_stop"() : () -> ()
    %73 = vector.broadcast %69 : vector<2x16x1xf32> to vector<2x16x128xf32>
    %74 = arith.divf %72, %73 : vector<2x16x128xf32>
    %75 = arith.truncf %74 : vector<2x16x128xf32> to vector<2x16x128xbf16>
    %c0_33 = arith.constant 0 : index
    %c0_34 = arith.constant 0 : index
    %c0_35 = arith.constant 0 : index
    %c0_36 = arith.constant 0 : index
    %76 = vector.load %arg7[%c0_33, %c0_34, %c0_35, %c0_36] : memref<1x2x128x256xbf16, #tpu.memory_space<vmem>>, vector<1x2x128x256xbf16>
    %77 = vector.shape_cast %76 : vector<1x2x128x256xbf16> to vector<2x128x256xbf16>
    "tpu.trace_start"() <{level = 10 : i32, message = "hqd,hdo->hqo"}> : () -> ()
    %cst_37 = arith.constant dense<0.000000e+00> : vector<2x16x256xf32>
    %78 = tpu.matmul %75, %77, %cst_37 {dimension_numbers = #tpu.dot_dimension_numbers<[2], [1], [1], [2], [0, 0, 0, 1, 1, 2], [0], [0]>} : vector<2x16x128xbf16>, vector<2x128x256xbf16>, vector<2x16x256xf32> -> vector<2x16x256xf32>
    "tpu.trace_stop"() : () -> ()
    %cst_38 = arith.constant dense<0.000000e+00> : vector<16x256xf32>
    %79 = vector.multi_reduction <add>, %78, %cst_38 [0] : vector<2x16x256xf32> to vector<16x256xf32>
    %80 = arith.addf %3, %79 : vector<16x256xf32>
    %81 = vector.extract_strided_slice %5 {offsets = [1, 0], sizes = [1, 256], strides = [1, 1]} : vector<2x256xf32> to vector<1x256xf32>
    %82 = arith.mulf %80, %80 : vector<16x256xf32>
    %cst_39 = arith.constant dense<0.000000e+00> : vector<16xf32>
    %83 = vector.multi_reduction <add>, %82, %cst_39 [1] : vector<16x256xf32> to vector<16xf32>
    %84 = vector.shape_cast %83 : vector<16xf32> to vector<16x1xf32>
    %cst_40 = arith.constant 2.560000e+02 : f32
    %85 = vector.broadcast %cst_40 : f32 to vector<16x1xf32>
    %86 = arith.divf %84, %85 : vector<16x1xf32>
    %cst_41 = arith.constant 9.99999997E-7 : f32
    %87 = vector.broadcast %cst_41 : f32 to vector<16x1xf32>
    %88 = arith.addf %86, %87 : vector<16x1xf32>
    %89 = math.rsqrt %88 : vector<16x1xf32>
    %90 = vector.broadcast %89 : vector<16x1xf32> to vector<16x256xf32>
    %91 = arith.mulf %80, %90 : vector<16x256xf32>
    %92 = vector.broadcast %81 : vector<1x256xf32> to vector<16x256xf32>
    %93 = arith.mulf %91, %92 : vector<16x256xf32>
    %94 = arith.truncf %93 : vector<16x256xf32> to vector<16x256xbf16>
    %c0_42 = arith.constant 0 : index
    %c0_43 = arith.constant 0 : index
    %c0_44 = arith.constant 0 : index
    %95 = vector.load %arg8[%c0_42, %c0_43, %c0_44] : memref<1x256x1024xbf16, #tpu.memory_space<vmem>>, vector<1x256x1024xbf16>
    %96 = vector.shape_cast %95 : vector<1x256x1024xbf16> to vector<256x1024xbf16>
    %cst_45 = arith.constant dense<0.000000e+00> : vector<16x1024xf32>
    %97 = tpu.matmul %94, %96, %cst_45 {dimension_numbers = #tpu.dot_dimension_numbers<[1], [0], [0], [1], [0, 0, 1, 1], [], []>} : vector<16x256xbf16>, vector<256x1024xbf16>, vector<16x1024xf32> -> vector<16x1024xf32>
    %98 = vector.extract_strided_slice %97 {offsets = [0, 0], sizes = [16, 512], strides = [1, 1]} : vector<16x1024xf32> to vector<16x512xf32>
    %99 = vector.extract_strided_slice %97 {offsets = [0, 512], sizes = [16, 512], strides = [1, 1]} : vector<16x1024xf32> to vector<16x512xf32>
    %100 = arith.negf %98 : vector<16x512xf32>
    %101 = math.exp %100 : vector<16x512xf32>
    %cst_46 = arith.constant 1.000000e+00 : f32
    %102 = vector.broadcast %cst_46 : f32 to vector<16x512xf32>
    %103 = arith.addf %102, %101 : vector<16x512xf32>
    %104 = arith.divf %102, %103 : vector<16x512xf32>
    %105 = arith.mulf %98, %104 : vector<16x512xf32>
    %106 = arith.mulf %105, %99 : vector<16x512xf32>
    %107 = arith.truncf %106 : vector<16x512xf32> to vector<16x512xbf16>
    %c0_47 = arith.constant 0 : index
    %c0_48 = arith.constant 0 : index
    %c0_49 = arith.constant 0 : index
    %108 = vector.load %arg9[%c0_47, %c0_48, %c0_49] : memref<1x512x256xbf16, #tpu.memory_space<vmem>>, vector<1x512x256xbf16>
    %109 = vector.shape_cast %108 : vector<1x512x256xbf16> to vector<512x256xbf16>
    %cst_50 = arith.constant dense<0.000000e+00> : vector<16x256xf32>
    %110 = tpu.matmul %107, %109, %cst_50 {dimension_numbers = #tpu.dot_dimension_numbers<[1], [0], [0], [1], [0, 0, 1, 1], [], []>} : vector<16x512xbf16>, vector<512x256xbf16>, vector<16x256xf32> -> vector<16x256xf32>
    %111 = arith.addf %80, %110 : vector<16x256xf32>
    %c1_i32 = arith.constant 1 : i32
    %112 = arith.cmpi ne, %arg0, %c1_i32 : i32
    %113 = arith.extui %112 : i1 to i32
    %c0_i32_51 = arith.constant 0 : i32
    %114 = arith.cmpi ne, %113, %c0_i32_51 : i32
    scf.if %114 {
      %c0_54 = arith.constant 0 : index
      %c0_55 = arith.constant 0 : index
      %118 = vector.load %arg10[%c0_54, %c0_55] : memref<16x256xf32, #tpu.memory_space<vmem>>, vector<16x256xf32>
      tpu.vector_store %arg10[%c0_54, %c0_55], %111 {strides = array<i32>} : memref<16x256xf32, #tpu.memory_space<vmem>>, vector<16x256xf32>,
    } else {
    }
    %c1_i32_52 = arith.constant 1 : i32
    %115 = arith.cmpi eq, %arg0, %c1_i32_52 : i32
    %116 = arith.extui %115 : i1 to i32
    %c0_i32_53 = arith.constant 0 : i32
    %117 = arith.cmpi ne, %116, %c0_i32_53 : i32
    scf.if %117 {
      %c0_54 = arith.constant 0 : index
      %c0_55 = arith.constant 0 : index
      %118 = vector.load %arg5[%c0_54, %c0_55] : memref<1x256xf32, #tpu.memory_space<vmem>>, vector<1x256xf32>
      %119 = arith.mulf %111, %111 : vector<16x256xf32>
      %cst_56 = arith.constant dense<0.000000e+00> : vector<16xf32>
      %120 = vector.multi_reduction <add>, %119, %cst_56 [1] : vector<16x256xf32> to vector<16xf32>
      %121 = vector.shape_cast %120 : vector<16xf32> to vector<16x1xf32>
      %cst_57 = arith.constant 2.560000e+02 : f32
      %122 = vector.broadcast %cst_57 : f32 to vector<16x1xf32>
      %123 = arith.divf %121, %122 : vector<16x1xf32>
      %cst_58 = arith.constant 9.99999997E-7 : f32
      %124 = vector.broadcast %cst_58 : f32 to vector<16x1xf32>
      %125 = arith.addf %123, %124 : vector<16x1xf32>
      %126 = math.rsqrt %125 : vector<16x1xf32>
      %127 = vector.broadcast %126 : vector<16x1xf32> to vector<16x256xf32>
      %128 = arith.mulf %111, %127 : vector<16x256xf32>
      %129 = vector.broadcast %118 : vector<1x256xf32> to vector<16x256xf32>
      %130 = arith.mulf %128, %129 : vector<16x256xf32>
      %c0_59 = arith.constant 0 : index
      %c0_60 = arith.constant 0 : index
      %131 = vector.load %arg10[%c0_59, %c0_60] : memref<16x256xf32, #tpu.memory_space<vmem>>, vector<16x256xf32>
      tpu.vector_store %arg10[%c0_59, %c0_60], %130 {strides = array<i32>} : memref<16x256xf32, #tpu.memory_space<vmem>>, vector<16x256xf32>,
    } else {
    }
    return
  }
  func.func @transform_0(%arg0: i32) -> (i32, i32) {
    %c0_i32 = arith.constant 0 : i32
    %c0_i32_0 = arith.constant 0 : i32
    %c0_i32_1 = arith.constant 0 : i32
    return %c0_i32, %c0_i32_0 : i32, i32
  }
  func.func @transform_1(%arg0: i32) -> (i32, i32) {
    %c0_i32 = arith.constant 0 : i32
    %c0_i32_0 = arith.constant 0 : i32
    %c0_i32_1 = arith.constant 0 : i32
    return %c0_i32, %c0_i32_0 : i32, i32
  }
  func.func @transform_2(%arg0: i32) -> (i32, i32) {
    %c0_i32 = arith.constant 0 : i32
    %c0_i32_0 = arith.constant 0 : i32
    %c0_i32_1 = arith.constant 0 : i32
    return %c0_i32, %c0_i32_0 : i32, i32
  }
  func.func @transform_3(%arg0: i32) -> (i32, i32, i32) {
    %c0_i32 = arith.constant 0 : i32
    %c0_i32_0 = arith.constant 0 : i32
    %c0_i32_1 = arith.constant 0 : i32
    return %arg0, %c0_i32, %c0_i32_0 : i32, i32, i32
  }
  func.func @transform_4(%arg0: i32) -> (i32, i32) {
    %c0_i32 = arith.constant 0 : i32
    %c0_i32_0 = arith.constant 0 : i32
    %c0_i32_1 = arith.constant 0 : i32
    return %c0_i32, %c0_i32_0 : i32, i32
  }
  func.func @transform_5(%arg0: i32) -> (i32, i32, i32, i32, i32) {
    %c0_i32 = arith.constant 0 : i32
    %c0_i32_0 = arith.constant 0 : i32
    %c0_i32_1 = arith.constant 0 : i32
    %c0_i32_2 = arith.constant 0 : i32
    %c0_i32_3 = arith.constant 0 : i32
    return %arg0, %c0_i32, %c0_i32_0, %c0_i32_1, %c0_i32_2 : i32, i32, i32, i32, i32
  }
  func.func @transform_6(%arg0: i32) -> (i32, i32, i32, i32) {
    %c0_i32 = arith.constant 0 : i32
    %c0_i32_0 = arith.constant 0 : i32
    %c0_i32_1 = arith.constant 0 : i32
    %c0_i32_2 = arith.constant 0 : i32
    return %arg0, %c0_i32, %c0_i32_0, %c0_i32_1 : i32, i32, i32, i32
  }
  func.func @transform_7(%arg0: i32) -> (i32, i32, i32) {
    %c0_i32 = arith.constant 0 : i32
    %c0_i32_0 = arith.constant 0 : i32
    %c0_i32_1 = arith.constant 0 : i32
    return %arg0, %c0_i32, %c0_i32_0 : i32, i32, i32
  }
  func.func @transform_8(%arg0: i32) -> (i32, i32, i32) {
    %c0_i32 = arith.constant 0 : i32
    %c0_i32_0 = arith.constant 0 : i32
    %c0_i32_1 = arith.constant 0 : i32
    return %arg0, %c0_i32, %c0_i32_0 : i32, i32, i32
  }
  func.func @transform_9(%arg0: i32) -> (i32, i32) {
    %c0_i32 = arith.constant 0 : i32
    %c0_i32_0 = arith.constant 0 : i32
    %c0_i32_1 = arith.constant 0 : i32
    return %c0_i32, %c0_i32_0 : i32, i32
  }
}

</mosaic_0001>

<llo_original>
// kernel: transformers_model_forward.1
$region0: #{transformers_model_forward.1}
  #allocation0 [shape = 'u32[]', space=smem, size = 0x4, offset = 0x4, fixed_abs, tag = 'smem constant byte address 0x4 - core index']
  #allocation1 [shape = 'u32[144,128]{1,0:T(1,128)}', space=vmem, size = 0x12000, scoped, tag = 'internal scratch']
  %s0 = inlined_call_operand.hbm [shape: f32[16,256], index: 0, kind: input, shape index: {}]
  %s1 = inlined_call_operand.hbm [shape: f32[16,128], index: 1, kind: input, shape index: {}]
  %s2 = inlined_call_operand.hbm [shape: f32[16,128], index: 2, kind: input, shape index: {}]
  %s3 = inlined_call_operand.hbm [shape: f32[2,2,256], index: 3, kind: input, shape index: {}]
  %s4 = inlined_call_operand.hbm [shape: f32[1,256], index: 4, kind: input, shape index: {}]
  %s5 = inlined_call_operand.hbm [shape: bf16[2,3,2,256,128], index: 5, kind: input, shape index: {}]
  %s6 = inlined_call_operand.hbm [shape: bf16[2,2,128,256], index: 6, kind: input, shape index: {}]
  %s7 = inlined_call_operand.hbm [shape: bf16[2,256,1024], index: 7, kind: input, shape index: {}]
  %s8 = inlined_call_operand.hbm [shape: bf16[2,512,256], index: 8, kind: input, shape index: {}]
  %s9 = inlined_call_operand.hbm [shape: f32[16,256], index: 9, kind: output, shape index: {}]
  %s10 = sld [smem:[#allocation0]]
  $region117: #{transformers_model_forward.1} parent=0
    _
  %s12 = ssub.s32 1, %s10
  %s13 = scalar_select 0, %s12, %s10
  $region1: #{transformers_model_forward.1} parent=0
    #allocation2 [shape = 'u8[16384]{0}', space=vmem, size = 0x4000, scoped, tag = 'input window, operand 0, single buffered']
    #allocation3 [shape = 's32[2]{0}', space=sflag, size = 0x8, scoped, tag = 'scoped memory for transformers_model_forward.1']
    #allocation4 [shape = 's32[2]{0}', space=sflag, size = 0x8, scoped, tag = 'scoped memory for transformers_model_forward.1']
    #allocation5 [shape = 'u8[8192]{0}', space=vmem, size = 0x2000, scoped, tag = 'input window, operand 1, single buffered']
    #allocation6 [shape = 's32[1]{0}', space=sflag, size = 0x4, scoped, tag = 'scoped memory for transformers_model_forward.1']
    #allocation7 [shape = 'u8[8192]{0}', space=vmem, size = 0x2000, scoped, tag = 'input window, operand 2, single buffered']
    #allocation8 [shape = 'u8[4096]{0}', space=vmem, size = 0x1000, scoped, tag = 'input window, operand 3']
    #allocation9 [shape = 's32[2]{0}', space=sflag, size = 0x8, scoped, tag = 'scoped memory for transformers_model_forward.1']
    #allocation10 [shape = 'u8[1024]{0}', space=vmem, size = 0x400, scoped, tag = 'input window, operand 4, single buffered']
    #allocation11 [shape = 'u8[786432]{0}', space=vmem, size = 0xc0000, scoped, tag = 'input window, operand 5']
    #allocation12 [shape = 's32[2]{0}', space=sflag, size = 0x8, scoped, tag = 'scoped memory for transformers_model_forward.1']
    #allocation13 [shape = 'u8[262144]{0}', space=vmem, size = 0x40000, scoped, tag = 'input window, operand 6']
    #allocation14 [shape = 'u8[1048576]{0}', space=vmem, size = 0x100000, scoped, tag = 'input window, operand 7']
    #allocation15 [shape = 's32[2]{0}', space=sflag, size = 0x8, scoped, tag = 'scoped memory for transformers_model_forward.1']
    #allocation16 [shape = 'u8[524288]{0}', space=vmem, size = 0x80000, scoped, tag = 'input window, operand 8']
    #allocation17 [shape = 'u8[16384]{0}', space=vmem, size = 0x4000, scoped, tag = 'output window, operand 0, single buffered']
    %14 = vsyncpa [#allocation3], 0
    %15 = vsyncpa [#allocation6], 0
    %16 = vsyncpa [#allocation9], 0
    %s17 = scalar_lea.sflag [#allocation9], 1
    %18 = vsyncpa %s17, 0
    %19 = vsyncpa [#allocation12], 0
    %s20 = scalar_lea.sflag [#allocation12], 1
    %21 = vsyncpa %s20, 0
    %22 = vsyncpa [#allocation15], 0
    %s23 = scalar_lea.sflag [#allocation15], 1
    %24 = vsyncpa %s23, 0
    %25 = vsyncpa [#allocation4], 0
    loop: start=0, step=1, limit=4
    $region2: #{transformers_model_forward.1} parent=1 // loop_pre_header
      _
    $region3: #{transformers_model_forward.1} parent=1 // loop_header
      %s27 = sphi 0, %s31
      %p28 = scmp.ge.s32.totalorder %s27, 4
      %s35 = sphi 0, %s35
      %s37 = sphi 0, %s35
      %s38 = sphi 0, %s37
      %s52 = sphi 0, %s38
      %s56 = sphi 0, %s56
      %s58 = sphi 0, %s56
      %s59 = sphi 0, %s58
      %s73 = sphi 0, %s59
      %s77 = sphi 0, %s77
      %s79 = sphi 0, %s77
      %s80 = sphi 0, %s79
      %s94 = sphi 0, %s80
      %s100 = sphi 0, %s102
      %s103 = sphi 0, %s100
      %s104 = sphi 0, %s103
      %s120 = sphi 0, %s104
      %s124 = sphi 0, %s124
      %s126 = sphi 0, %s124
      %s127 = sphi 0, %s126
      %s141 = sphi 0, %s127
      %s147 = sphi 0, %s149
      %s150 = sphi 0, %s147
      %s151 = sphi 0, %s150
      %s167 = sphi 0, %s151
      %s173 = sphi 0, %s175
      %s176 = sphi 0, %s173
      %s177 = sphi 0, %s176
      %s193 = sphi 0, %s177
      %s199 = sphi 0, %s201
      %s202 = sphi 0, %s199
      %s203 = sphi 0, %s202
      %s219 = sphi 0, %s203
      %s225 = sphi 0, %s227
      %s228 = sphi 0, %s225
      %s229 = sphi 0, %s228
      %s245 = sphi 0, %s229
      %s249 = sphi 0, %s249
      %s251 = sphi 0, %s249
      %s252 = sphi 0, %s251
      %s266 = sphi 0, %s252
    $region4: #{transformers_model_forward.1} parent=1 // loop_header_branch
      %30 = sbr.rel (%p28) target = $region8
    $region5: #{transformers_model_forward.1} parent=1 // loop_body
      %s32 = ssub.s32 %s27, 1
      %s33 = ssub.s32 %s27, 2
      %s34 = sadd.s32 %s27, 1
      %s36 = sadd.s32 %s35, 1
      %p39 = scmp.eq.s32.totalorder %s27, 1
      %p40 = scmp.ne.s32.totalorder %s35, %s37
      %p41 = scmp.eq.s32.totalorder %s27, 0
      %p42 = por %p40, %p41
      %p43 = scmp.ne.s32.totalorder %s35, %s37
      %p44 = scmp.eq.s32.totalorder %s32, 1
      %p45 = por %p43, %p44
      %p46 = scmp.ne.s32.totalorder %s37, %s38
      %p47 = scmp.eq.s32.totalorder %s32, 0
      %p48 = por %p46, %p47
      %p49 = scmp.ne.s32.totalorder %s37, %s38
      %p50 = scmp.eq.s32.totalorder %s33, 1
      %p51 = por %p49, %p50
      %p53 = scmp.ne.s32.totalorder %s38, %s52
      %p54 = scmp.eq.s32.totalorder %s33, 0
      %p55 = por %p53, %p54
      %s57 = sadd.s32 %s56, 1
      %p60 = scmp.eq.s32.totalorder %s27, 1
      %p61 = scmp.ne.s32.totalorder %s56, %s58
      %p62 = scmp.eq.s32.totalorder %s27, 0
      %p63 = por %p61, %p62
      %p64 = scmp.ne.s32.totalorder %s56, %s58
      %p65 = scmp.eq.s32.totalorder %s32, 1
      %p66 = por %p64, %p65
      %p67 = scmp.ne.s32.totalorder %s58, %s59
      %p68 = scmp.eq.s32.totalorder %s32, 0
      %p69 = por %p67, %p68
      %p70 = scmp.ne.s32.totalorder %s58, %s59
      %p71 = scmp.eq.s32.totalorder %s33, 1
      %p72 = por %p70, %p71
      %p74 = scmp.ne.s32.totalorder %s59, %s73
      %p75 = scmp.eq.s32.totalorder %s33, 0
      %p76 = por %p74, %p75
      %s78 = sadd.s32 %s77, 1
      %p81 = scmp.eq.s32.totalorder %s27, 1
      %p82 = scmp.ne.s32.totalorder %s77, %s79
      %p83 = scmp.eq.s32.totalorder %s27, 0
      %p84 = por %p82, %p83
      %p85 = scmp.ne.s32.totalorder %s77, %s79
      %p86 = scmp.eq.s32.totalorder %s32, 1
      %p87 = por %p85, %p86
      %p88 = scmp.ne.s32.totalorder %s79, %s80
      %p89 = scmp.eq.s32.totalorder %s32, 0
      %p90 = por %p88, %p89
      %p91 = scmp.ne.s32.totalorder %s79, %s80
      %p92 = scmp.eq.s32.totalorder %s33, 1
      %p93 = por %p91, %p92
      %p95 = scmp.ne.s32.totalorder %s80, %s94
      %p96 = scmp.eq.s32.totalorder %s33, 0
      %p97 = por %p95, %p96
      %s98 = ssub.s32 %s27, %s34
      %p99 = scmp.eq.s32.totalorder %s98, 0
      %s101 = sadd.s32 %s100, 1
      %s102 = scalar_select %p99, %s100, %s101
      %p105 = pneg %p99
      %p106 = scmp.eq.s32.totalorder %s27, 1
      %p107 = por %p105, %p106
      %p108 = scmp.ne.s32.totalorder %s100, %s103
      %p109 = scmp.eq.s32.totalorder %s27, 0
      %p110 = por %p108, %p109
      %p111 = scmp.ne.s32.totalorder %s100, %s103
      %p112 = scmp.eq.s32.totalorder %s32, 1
      %p113 = por %p111, %p112
      %p114 = scmp.ne.s32.totalorder %s103, %s104
      %p115 = scmp.eq.s32.totalorder %s32, 0
      %p116 = por %p114, %p115
      %p117 = scmp.ne.s32.totalorder %s103, %s104
      %p118 = scmp.eq.s32.totalorder %s33, 1
      %p119 = por %p117, %p118
      %p121 = scmp.ne.s32.totalorder %s104, %s120
      %p122 = scmp.eq.s32.totalorder %s33, 0
      %p123 = por %p121, %p122
      %s125 = sadd.s32 %s124, 1
      %p128 = scmp.eq.s32.totalorder %s27, 1
      %p129 = scmp.ne.s32.totalorder %s124, %s126
      %p130 = scmp.eq.s32.totalorder %s27, 0
      %p131 = por %p129, %p130
      %p132 = scmp.ne.s32.totalorder %s124, %s126
      %p133 = scmp.eq.s32.totalorder %s32, 1
      %p134 = por %p132, %p133
      %p135 = scmp.ne.s32.totalorder %s126, %s127
      %p136 = scmp.eq.s32.totalorder %s32, 0
      %p137 = por %p135, %p136
      %p138 = scmp.ne.s32.totalorder %s126, %s127
      %p139 = scmp.eq.s32.totalorder %s33, 1
      %p140 = por %p138, %p139
      %p142 = scmp.ne.s32.totalorder %s127, %s141
      %p143 = scmp.eq.s32.totalorder %s33, 0
      %p144 = por %p142, %p143
      %s145 = ssub.s32 %s27, %s34
      %p146 = scmp.eq.s32.totalorder %s145, 0
      %s148 = sadd.s32 %s147, 1
      %s149 = scalar_select %p146, %s147, %s148
      %p152 = pneg %p146
      %p153 = scmp.eq.s32.totalorder %s27, 1
      %p154 = por %p152, %p153
      %p155 = scmp.ne.s32.totalorder %s147, %s150
      %p156 = scmp.eq.s32.totalorder %s27, 0
      %p157 = por %p155, %p156
      %p158 = scmp.ne.s32.totalorder %s147, %s150
      %p159 = scmp.eq.s32.totalorder %s32, 1
      %p160 = por %p158, %p159
      %p161 = scmp.ne.s32.totalorder %s150, %s151
      %p162 = scmp.eq.s32.totalorder %s32, 0
      %p163 = por %p161, %p162
      %p164 = scmp.ne.s32.totalorder %s150, %s151
      %p165 = scmp.eq.s32.totalorder %s33, 1
      %p166 = por %p164, %p165
      %p168 = scmp.ne.s32.totalorder %s151, %s167
      %p169 = scmp.eq.s32.totalorder %s33, 0
      %p170 = por %p168, %p169
      %s171 = ssub.s32 %s27, %s34
      %p172 = scmp.eq.s32.totalorder %s171, 0
      %s174 = sadd.s32 %s173, 1
      %s175 = scalar_select %p172, %s173, %s174
      %p178 = pneg %p172
      %p179 = scmp.eq.s32.totalorder %s27, 1
      %p180 = por %p178, %p179
      %p181 = scmp.ne.s32.totalorder %s173, %s176
      %p182 = scmp.eq.s32.totalorder %s27, 0
      %p183 = por %p181, %p182
      %p184 = scmp.ne.s32.totalorder %s173, %s176
      %p185 = scmp.eq.s32.totalorder %s32, 1
      %p186 = por %p184, %p185
      %p187 = scmp.ne.s32.totalorder %s176, %s177
      %p188 = scmp.eq.s32.totalorder %s32, 0
      %p189 = por %p187, %p188
      %p190 = scmp.ne.s32.totalorder %s176, %s177
      %p191 = scmp.eq.s32.totalorder %s33, 1
      %p192 = por %p190, %p191
      %p194 = scmp.ne.s32.totalorder %s177, %s193
      %p195 = scmp.eq.s32.totalorder %s33, 0
      %p196 = por %p194, %p195
      %s197 = ssub.s32 %s27, %s34
      %p198 = scmp.eq.s32.totalorder %s197, 0
      %s200 = sadd.s32 %s199, 1
      %s201 = scalar_select %p198, %s199, %s200
      %p204 = pneg %p198
      %p205 = scmp.eq.s32.totalorder %s27, 1
      %p206 = por %p204, %p205
      %p207 = scmp.ne.s32.totalorder %s199, %s202
      %p208 = scmp.eq.s32.totalorder %s27, 0
      %p209 = por %p207, %p208
      %p210 = scmp.ne.s32.totalorder %s199, %s202
      %p211 = scmp.eq.s32.totalorder %s32, 1
      %p212 = por %p210, %p211
      %p213 = scmp.ne.s32.totalorder %s202, %s203
      %p214 = scmp.eq.s32.totalorder %s32, 0
      %p215 = por %p213, %p214
      %p216 = scmp.ne.s32.totalorder %s202, %s203
      %p217 = scmp.eq.s32.totalorder %s33, 1
      %p218 = por %p216, %p217
      %p220 = scmp.ne.s32.totalorder %s203, %s219
      %p221 = scmp.eq.s32.totalorder %s33, 0
      %p222 = por %p220, %p221
      %s223 = ssub.s32 %s27, %s34
      %p224 = scmp.eq.s32.totalorder %s223, 0
      %s226 = sadd.s32 %s225, 1
      %s227 = scalar_select %p224, %s225, %s226
      %p230 = pneg %p224
      %p231 = scmp.eq.s32.totalorder %s27, 1
      %p232 = por %p230, %p231
      %p233 = scmp.ne.s32.totalorder %s225, %s228
      %p234 = scmp.eq.s32.totalorder %s27, 0
      %p235 = por %p233, %p234
      %p236 = scmp.ne.s32.totalorder %s225, %s228
      %p237 = scmp.eq.s32.totalorder %s32, 1
      %p238 = por %p236, %p237
      %p239 = scmp.ne.s32.totalorder %s228, %s229
      %p240 = scmp.eq.s32.totalorder %s32, 0
      %p241 = por %p239, %p240
      %p242 = scmp.ne.s32.totalorder %s228, %s229
      %p243 = scmp.eq.s32.totalorder %s33, 1
      %p244 = por %p242, %p243
      %p246 = scmp.ne.s32.totalorder %s229, %s245
      %p247 = scmp.eq.s32.totalorder %s33, 0
      %p248 = por %p246, %p247
      %s250 = sadd.s32 %s249, 1
      %p253 = scmp.eq.s32.totalorder %s27, 1
      %p254 = scmp.ne.s32.totalorder %s249, %s251
      %p255 = scmp.eq.s32.totalorder %s27, 0
      %p256 = por %p254, %p255
      %p257 = scmp.ne.s32.totalorder %s249, %s251
      %p258 = scmp.eq.s32.totalorder %s32, 1
      %p259 = por %p257, %p258
      %p260 = scmp.ne.s32.totalorder %s251, %s252
      %p261 = scmp.eq.s32.totalorder %s32, 0
      %p262 = por %p260, %p261
      %p263 = scmp.ne.s32.totalorder %s251, %s252
      %p264 = scmp.eq.s32.totalorder %s33, 1
      %p265 = por %p263, %p264
      %p267 = scmp.ne.s32.totalorder %s252, %s266
      %p268 = scmp.eq.s32.totalorder %s33, 0
      %p269 = por %p267, %p268
      %p270 = scmp.le.s32.totalorder 1, %s27
      %p271 = scmp.lt.s32.totalorder %s27, 3
      %p272 = pnand %p270, %p271
      %p273 = pneg %p272
      // Predicated region
      $region9: #{transformers_model_forward.1} parent=5 // pred_check
        _
      $region10: #{transformers_model_forward.1} parent=5 // pred_check_branch
        %275 = sbr.rel (%p272) target = $region12
      $region11: #{transformers_model_forward.1} parent=5 // pred_region
        %s276 = ssub.s32 %s27, 1
        // Predicated region
        $region13: #{transformers_model_forward.1} parent=11 // pred_check
          %p277 = pneg %p48
        $region14: #{transformers_model_forward.1} parent=11 // pred_check_branch
          %279 = sbr.rel (%p277) target = $region16
        $region15: #{transformers_model_forward.1} parent=11 // pred_region
          %s281 = ssub.s32 512, 512
          %282 = vsyncadd [#allocation3], %s281
          %s283 = sshll.u32 [#allocation2], 4
          %s284 = int_to_ptr.vmem [resolvable:$true] %s283
          %289 = dma.hbm_to_vmem [thread:$0]  %s0, 512, %s284, [#allocation3], 256, 256, 16
        $region16: #{transformers_model_forward.1} parent=11 // pred_fallthru
          _
        // Predicated region
        $region17: #{transformers_model_forward.1} parent=11 // pred_check
          %p290 = pneg %p69
        $region18: #{transformers_model_forward.1} parent=11 // pred_check_branch
          %292 = sbr.rel (%p290) target = $region20
        $region19: #{transformers_model_forward.1} parent=11 // pred_region
          %s294 = ssub.s32 256, 256
          %295 = vsyncadd [#allocation6], %s294
          %s296 = sshll.u32 [#allocation5], 4
          %s297 = int_to_ptr.vmem [resolvable:$true] %s296
          %302 = dma.hbm_to_vmem [thread:$0]  %s1, 256, %s297, [#allocation6], 128, 128, 8
        $region20: #{transformers_model_forward.1} parent=11 // pred_fallthru
          _
        // Predicated region
        $region21: #{transformers_model_forward.1} parent=11 // pred_check
          %p303 = pneg %p90
        $region22: #{transformers_model_forward.1} parent=11 // pred_check_branch
          %305 = sbr.rel (%p303) target = $region24
        $region23: #{transformers_model_forward.1} parent=11 // pred_region
          %s307 = ssub.s32 256, 256
          %308 = vsyncadd [#allocation6], %s307
          %s309 = sshll.u32 [#allocation7], 4
          %s310 = int_to_ptr.vmem [resolvable:$true] %s309
          %315 = dma.hbm_to_vmem [thread:$0]  %s2, 256, %s310, [#allocation6], 128, 128, 8
        $region24: #{transformers_model_forward.1} parent=11 // pred_fallthru
          _
        // Predicated region
        $region25: #{transformers_model_forward.1} parent=11 // pred_check
          %p316 = pneg %p137
        $region26: #{transformers_model_forward.1} parent=11 // pred_check_branch
          %318 = sbr.rel (%p316) target = $region28
        $region27: #{transformers_model_forward.1} parent=11 // pred_region
          %s320 = ssub.s32 32, 32
          %321 = vsyncadd [#allocation9], %s320
          %s323 = sshll.u32 [#allocation10], 4
          %s324 = int_to_ptr.vmem [resolvable:$true] %s323
          %326 = dma.hbm_to_vmem [thread:$0]  %s4, 32, %s324, [#allocation9]
        $region28: #{transformers_model_forward.1} parent=11 // pred_fallthru
          _
      $region12: #{transformers_model_forward.1} parent=5 // pred_fallthru
        _
      %p327 = scmp.lt.s32.totalorder %s27, 2
      // Predicated region
      $region29: #{transformers_model_forward.1} parent=5 // pred_check
        %p328 = pneg %p327
      $region30: #{transformers_model_forward.1} parent=5 // pred_check_branch
        %330 = sbr.rel (%p328) target = $region32
      $region31: #{transformers_model_forward.1} parent=5 // pred_region
        // Predicated region
        $region33: #{transformers_model_forward.1} parent=31 // pred_check
          %p331 = pneg %p110
        $region34: #{transformers_model_forward.1} parent=31 // pred_check_branch
          %333 = sbr.rel (%p331) target = $region36
        $region35: #{transformers_model_forward.1} parent=31 // pred_region
          %s334 = sand.u32 %s27, 1
          %s335 = scalar_lea.sflag [#allocation9], %s334
          %s336 = sand.u32 %s100, 1
          %s337 = smul.addr %s336, 4
          %s338 = scalar_lea.vmem [#allocation8], %s337
          %s340 = ssub.s32 64, 64
          %341 = vsyncadd %s335, %s340
          %s342 = smul.addr %s27, 2
          %s343 = smul.addr %s342, 32
          %s344 = scalar_lea.hbm %s3, %s343
          %s346 = sshll.u32 %s338, 4
          %s347 = int_to_ptr.vmem [resolvable:$true] %s346
          %349 = dma.hbm_to_vmem [thread:$0]  %s344, 64, %s347, %s335
        $region36: #{transformers_model_forward.1} parent=31 // pred_fallthru
          _
        // Predicated region
        $region37: #{transformers_model_forward.1} parent=31 // pred_check
          %p350 = pneg %p157
        $region38: #{transformers_model_forward.1} parent=31 // pred_check_branch
          %352 = sbr.rel (%p350) target = $region40
        $region39: #{transformers_model_forward.1} parent=31 // pred_region
          %s353 = sand.u32 %s27, 1
          %s354 = scalar_lea.sflag [#allocation12], %s353
          %s355 = sand.u32 %s147, 1
          %s356 = smul.addr %s355, 768
          %s357 = scalar_lea.vmem [#allocation11], %s356
          %s359 = ssub.s32 12288, 12288
          %360 = vsyncadd %s354, %s359
          %s361 = smul.addr %s27, 192
          %s362 = smul.addr %s361, 64
          %s363 = scalar_lea.hbm %s5, %s362
          %s364 = sshll.u32 %s357, 4
          %s365 = int_to_ptr.vmem [resolvable:$true] %s364
          %370 = dma.hbm_to_vmem [thread:$0]  %s363, 12288, %s365, %s354, 64, 64, 4
        $region40: #{transformers_model_forward.1} parent=31 // pred_fallthru
          _
        // Predicated region
        $region41: #{transformers_model_forward.1} parent=31 // pred_check
          %p371 = pneg %p183
        $region42: #{transformers_model_forward.1} parent=31 // pred_check_branch
          %373 = sbr.rel (%p371) target = $region44
        $region43: #{transformers_model_forward.1} parent=31 // pred_region
          %s374 = sand.u32 %s27, 1
          %s375 = scalar_lea.sflag [#allocation12], %s374
          %s376 = sand.u32 %s173, 1
          %s377 = smul.addr %s376, 256
          %s378 = scalar_lea.vmem [#allocation13], %s377
          %s380 = ssub.s32 4096, 4096
          %381 = vsyncadd %s375, %s380
          %s382 = smul.addr %s27, 64
          %s383 = smul.addr %s382, 64
          %s384 = scalar_lea.hbm %s6, %s383
          %s385 = sshll.u32 %s378, 4
          %s386 = int_to_ptr.vmem [resolvable:$true] %s385
          %391 = dma.hbm_to_vmem [thread:$0]  %s384, 4096, %s386, %s375, 128, 128, 8
        $region44: #{transformers_model_forward.1} parent=31 // pred_fallthru
          _
        // Predicated region
        $region45: #{transformers_model_forward.1} parent=31 // pred_check
          %p392 = pneg %p209
        $region46: #{transformers_model_forward.1} parent=31 // pred_check_branch
          %394 = sbr.rel (%p392) target = $region48
        $region47: #{transformers_model_forward.1} parent=31 // pred_region
          %s395 = sand.u32 %s27, 1
          %s396 = scalar_lea.sflag [#allocation15], %s395
          %s397 = sand.u32 %s199, 1
          %s398 = smul.addr %s397, 1024
          %s399 = scalar_lea.vmem [#allocation14], %s398
          %s401 = ssub.s32 16384, 16384
          %402 = vsyncadd %s396, %s401
          %s403 = smul.addr %s27, 256
          %s404 = smul.addr %s403, 64
          %s405 = scalar_lea.hbm %s7, %s404
          %s406 = sshll.u32 %s399, 4
          %s407 = int_to_ptr.vmem [resolvable:$true] %s406
          %412 = dma.hbm_to_vmem [thread:$0]  %s405, 16384, %s407, %s396, 512, 512, 32
        $region48: #{transformers_model_forward.1} parent=31 // pred_fallthru
          _
        // Predicated region
        $region49: #{transformers_model_forward.1} parent=31 // pred_check
          %p413 = pneg %p235
        $region50: #{transformers_model_forward.1} parent=31 // pred_check_branch
          %415 = sbr.rel (%p413) target = $region52
        $region51: #{transformers_model_forward.1} parent=31 // pred_region
          %s416 = sand.u32 %s27, 1
          %s417 = scalar_lea.sflag [#allocation15], %s416
          %s418 = sand.u32 %s225, 1
          %s419 = smul.addr %s418, 512
          %s420 = scalar_lea.vmem [#allocation16], %s419
          %s422 = ssub.s32 8192, 8192
          %423 = vsyncadd %s417, %s422
          %s424 = smul.addr %s27, 128
          %s425 = smul.addr %s424, 64
          %s426 = scalar_lea.hbm %s8, %s425
          %s427 = sshll.u32 %s420, 4
          %s428 = int_to_ptr.vmem [resolvable:$true] %s427
          %433 = dma.hbm_to_vmem [thread:$0]  %s426, 8192, %s428, %s417, 128, 128, 8
        $region52: #{transformers_model_forward.1} parent=31 // pred_fallthru
          _
      $region32: #{transformers_model_forward.1} parent=5 // pred_fallthru
        _
      %p434 = scmp.le.s32.totalorder 1, %s27
      %p435 = scmp.lt.s32.totalorder %s27, 3
      %p436 = pnand %p434, %p435
      %p437 = pneg %p436
      // Predicated region
      $region53: #{transformers_model_forward.1} parent=5 // pred_check
        _
      $region54: #{transformers_model_forward.1} parent=5 // pred_check_branch
        %439 = sbr.rel (%p436) target = $region56
      $region55: #{transformers_model_forward.1} parent=5 // pred_region
        %s440 = ssub.s32 %s27, 1
        // Predicated region
        $region57: #{transformers_model_forward.1} parent=55 // pred_check
          %p441 = pneg %p48
        $region58: #{transformers_model_forward.1} parent=55 // pred_check_branch
          %443 = sbr.rel (%p441) target = $region60
        $region59: #{transformers_model_forward.1} parent=55 // pred_region
          %444 = dma.done [#allocation3], 512
        $region60: #{transformers_model_forward.1} parent=55 // pred_fallthru
          _
        // Predicated region
        $region61: #{transformers_model_forward.1} parent=55 // pred_check
          %p445 = pneg %p69
        $region62: #{transformers_model_forward.1} parent=55 // pred_check_branch
          %447 = sbr.rel (%p445) target = $region64
        $region63: #{transformers_model_forward.1} parent=55 // pred_region
          %448 = dma.done [#allocation6], 256
        $region64: #{transformers_model_forward.1} parent=55 // pred_fallthru
          _
        // Predicated region
        $region65: #{transformers_model_forward.1} parent=55 // pred_check
          %p449 = pneg %p90
        $region66: #{transformers_model_forward.1} parent=55 // pred_check_branch
          %451 = sbr.rel (%p449) target = $region68
        $region67: #{transformers_model_forward.1} parent=55 // pred_region
          %452 = dma.done [#allocation6], 256
        $region68: #{transformers_model_forward.1} parent=55 // pred_fallthru
          _
        %s453 = sand.u32 %s32, 1
        %s454 = scalar_lea.sflag [#allocation9], %s453
        %s455 = sand.u32 %s103, 1
        %s456 = smul.addr %s455, 4
        %s457 = scalar_lea.vmem [#allocation8], %s456
        // Predicated region
        $region69: #{transformers_model_forward.1} parent=55 // pred_check
          %p458 = pneg %p116
        $region70: #{transformers_model_forward.1} parent=55 // pred_check_branch
          %460 = sbr.rel (%p458) target = $region72
        $region71: #{transformers_model_forward.1} parent=55 // pred_region
          %461 = dma.done %s454, 64
        $region72: #{transformers_model_forward.1} parent=55 // pred_fallthru
          _
        // Predicated region
        $region73: #{transformers_model_forward.1} parent=55 // pred_check
          %p462 = pneg %p137
        $region74: #{transformers_model_forward.1} parent=55 // pred_check_branch
          %464 = sbr.rel (%p462) target = $region76
        $region75: #{transformers_model_forward.1} parent=55 // pred_region
          %465 = dma.done [#allocation9], 32
        $region76: #{transformers_model_forward.1} parent=55 // pred_fallthru
          _
        %s466 = sand.u32 %s32, 1
        %s467 = scalar_lea.sflag [#allocation12], %s466
        %s468 = sand.u32 %s150, 1
        %s469 = smul.addr %s468, 768
        %s470 = scalar_lea.vmem [#allocation11], %s469
        // Predicated region
        $region77: #{transformers_model_forward.1} parent=55 // pred_check
          %p471 = pneg %p163
        $region78: #{transformers_model_forward.1} parent=55 // pred_check_branch
          %473 = sbr.rel (%p471) target = $region80
        $region79: #{transformers_model_forward.1} parent=55 // pred_region
          %474 = dma.done %s467, 12288
        $region80: #{transformers_model_forward.1} parent=55 // pred_fallthru
          _
        %s475 = sand.u32 %s32, 1
        %s476 = scalar_lea.sflag [#allocation12], %s475
        %s477 = sand.u32 %s176, 1
        %s478 = smul.addr %s477, 256
        %s479 = scalar_lea.vmem [#allocation13], %s478
        // Predicated region
        $region81: #{transformers_model_forward.1} parent=55 // pred_check
          %p480 = pneg %p189
        $region82: #{transformers_model_forward.1} parent=55 // pred_check_branch
          %482 = sbr.rel (%p480) target = $region84
        $region83: #{transformers_model_forward.1} parent=55 // pred_region
          %483 = dma.done %s476, 4096
        $region84: #{transformers_model_forward.1} parent=55 // pred_fallthru
          _
        %s484 = sand.u32 %s32, 1
        %s485 = scalar_lea.sflag [#allocation15], %s484
        %s486 = sand.u32 %s202, 1
        %s487 = smul.addr %s486, 1024
        %s488 = scalar_lea.vmem [#allocation14], %s487
        // Predicated region
        $region85: #{transformers_model_forward.1} parent=55 // pred_check
          %p489 = pneg %p215
        $region86: #{transformers_model_forward.1} parent=55 // pred_check_branch
          %491 = sbr.rel (%p489) target = $region88
        $region87: #{transformers_model_forward.1} parent=55 // pred_region
          %492 = dma.done %s485, 16384
        $region88: #{transformers_model_forward.1} parent=55 // pred_fallthru
          _
        %s493 = sand.u32 %s32, 1
        %s494 = scalar_lea.sflag [#allocation15], %s493
        %s495 = sand.u32 %s228, 1
        %s496 = smul.addr %s495, 512
        %s497 = scalar_lea.vmem [#allocation16], %s496
        // Predicated region
        $region89: #{transformers_model_forward.1} parent=55 // pred_check
          %p498 = pneg %p241
        $region90: #{transformers_model_forward.1} parent=55 // pred_check_branch
          %500 = sbr.rel (%p498) target = $region92
        $region91: #{transformers_model_forward.1} parent=55 // pred_region
          %501 = dma.done %s494, 8192
        $region92: #{transformers_model_forward.1} parent=55 // pred_fallthru
          _
        %p502 = pneg %p48
        %p503 = pneg %p45
        %p504 = pneg %p69
        %p505 = pneg %p66
        %p506 = pneg %p90
        %p507 = pneg %p87
        %s508 = sand.u32 %s32, 1
        %s509 = scalar_lea.sflag [#allocation9], %s508
        %s510 = sand.u32 %s103, 1
        %s511 = smul.addr %s510, 4
        %s512 = scalar_lea.vmem [#allocation8], %s511
        %p513 = pneg %p116
        %p514 = pneg %p113
        %p515 = pneg %p137
        %p516 = pneg %p134
        %s517 = sand.u32 %s32, 1
        %s518 = scalar_lea.sflag [#allocation12], %s517
        %s519 = sand.u32 %s150, 1
        %s520 = smul.addr %s519, 768
        %s521 = scalar_lea.vmem [#allocation11], %s520
        %p522 = pneg %p163
        %p523 = pneg %p160
        %s524 = sand.u32 %s32, 1
        %s525 = scalar_lea.sflag [#allocation12], %s524
        %s526 = sand.u32 %s176, 1
        %s527 = smul.addr %s526, 256
        %s528 = scalar_lea.vmem [#allocation13], %s527
        %p529 = pneg %p189
        %p530 = pneg %p186
        %s531 = sand.u32 %s32, 1
        %s532 = scalar_lea.sflag [#allocation15], %s531
        %s533 = sand.u32 %s202, 1
        %s534 = smul.addr %s533, 1024
        %s535 = scalar_lea.vmem [#allocation14], %s534
        %p536 = pneg %p215
        %p537 = pneg %p212
        %s538 = sand.u32 %s32, 1
        %s539 = scalar_lea.sflag [#allocation15], %s538
        %s540 = sand.u32 %s228, 1
        %s541 = smul.addr %s540, 512
        %s542 = scalar_lea.vmem [#allocation16], %s541
        %p543 = pneg %p241
        %p544 = pneg %p238
        %p545 = pneg %p262
        %p546 = pneg %p259
        %p548 = scmp.eq.s32.totalorder %s32, 0
        // Predicated region
        $region93: #{transformers_model_forward.1} parent=55 // pred_check
          %p549 = pneg %p548
        $region94: #{transformers_model_forward.1} parent=55 // pred_check_branch
          %551 = sbr.rel (%p549) target = $region96
        $region95: #{transformers_model_forward.1} parent=55 // pred_region
          %v552 = vld [vmem:[#allocation2] sm:$0xff]
          %v553 = vld [vmem:[#allocation2 + $0x8] sm:$0xff]
          %v554 = vld [vmem:[#allocation2 + $0x10] sm:$0xff]
          %v555 = vld [vmem:[#allocation2 + $0x18] sm:$0xff]
          %556 = vst [vmem:[#allocation17] sm:$0xff] %v552
          %557 = vst [vmem:[#allocation17 + $0x8] sm:$0xff] %v553
          %558 = vst [vmem:[#allocation17 + $0x10] sm:$0xff] %v554
          %559 = vst [vmem:[#allocation17 + $0x18] sm:$0xff] %v555
        $region96: #{transformers_model_forward.1} parent=55 // pred_fallthru
          _
        %v560 = vld [vmem:[#allocation17] sm:$0xff]
        %v561 = vld [vmem:[#allocation17 + $0x8] sm:$0xff]
        %v562 = vld [vmem:[#allocation17 + $0x10] sm:$0xff]
        %v563 = vld [vmem:[#allocation17 + $0x18] sm:$0xff]
        %v564 = vld [vmem:[%s457] sm:$0xf]
        %v565 = vld [vmem:[#allocation5] sm:$0xff]
        %v566 = vld [vmem:[#allocation5 + $0x8] sm:$0xff]
        %v567 = vld [vmem:[#allocation7] sm:$0xff]
        %v568 = vld [vmem:[#allocation7 + $0x8] sm:$0xff]
        %v569 = vmul.f32 %v560, %v560
        %v570 = vmul.f32 %v561, %v561
        %v571 = vmul.f32 %v562, %v562
        %v572 = vmul.f32 %v563, %v563
        %v573 = vadd.f32 %v569, %v570
        %574 = vadd.xlane.f32.xlu0 %v573
        %v575 = vpop.xlane.xlu0 %574
        %v576 = vadd.f32 %v571, %v572
        %577 = vadd.xlane.f32.xlu0 %v576
        %v578 = vpop.xlane.xlu0 %577
        %v579 = vrcp.pop 256.0
        %v580 = vmul.f32 %v575, %v579
        %v581 = vmul.f32 %v578, %v579
        %v582 = vadd.f32 %v580, 1e-06
        %v583 = vadd.f32 %v581, 1e-06
        %v584 = vrsqrt.pop %v582
        %v585 = vrsqrt.pop %v583
        %v586 = vmul.f32 %v560, %v584
        %v587 = vmul.f32 %v561, %v584
        %v588 = vmul.f32 %v562, %v585
        %v589 = vmul.f32 %v563, %v585
        %v591 = vlaneseq
        %v592 = vshrl.u32 %v591, 7
        %v593 = vsub.s32 0, %v592
        %v594 = vrot.slane %v564, %v593
        %v595 = vlaneseq
        %v596 = vshrl.u32 %v595, 7
        %v597 = vsub.s32 2, %v596
        %v598 = vrot.slane %v564, %v597
        %v601 = vlaneseq
        %v602 = vshrl.u32 %v601, 7
        %v603 = vsub.s32 0, %v602
        %v604 = vrot.slane %v594, %v603
        %v605 = vlaneseq
        %v606 = vshrl.u32 %v605, 7
        %v607 = vsub.s32 0, %v606
        %v608 = vrot.slane %v598, %v607
        %v609 = vmul.f32 %v586, %v604
        %v610 = vmul.f32 %v587, %v608
        %v611 = vmul.f32 %v588, %v604
        %v612 = vmul.f32 %v589, %v608
        %v613 = vpack.c.bf16 %v611, %v609
        %v614 = vpack.c.bf16 %v612, %v610
        %v615 = vld [vmem:[%s470] sm:$0xf]
        %v616 = vld [vmem:[%s470 + $0x4] sm:$0xf]
        %v617 = vld [vmem:[%s470 + $0x8] sm:$0xf]
        %v618 = vld [vmem:[%s470 + $0xc] sm:$0xf]
        %v619 = vld [vmem:[%s470 + $0x10] sm:$0xf]
        %v620 = vld [vmem:[%s470 + $0x14] sm:$0xf]
        %v621 = vld [vmem:[%s470 + $0x18] sm:$0xf]
        %v622 = vld [vmem:[%s470 + $0x1c] sm:$0xf]
        %v623 = vld [vmem:[%s470 + $0x20] sm:$0xf]
        %v624 = vld [vmem:[%s470 + $0x24] sm:$0xf]
        %v625 = vld [vmem:[%s470 + $0x28] sm:$0xf]
        %v626 = vld [vmem:[%s470 + $0x2c] sm:$0xf]
        %v627 = vld [vmem:[%s470 + $0x30] sm:$0xf]
        %v628 = vld [vmem:[%s470 + $0x34] sm:$0xf]
        %v629 = vld [vmem:[%s470 + $0x38] sm:$0xf]
        %v630 = vld [vmem:[%s470 + $0x3c] sm:$0xf]
        %v631 = vld [vmem:[%s470 + $0x40] sm:$0xf]
        %v632 = vld [vmem:[%s470 + $0x44] sm:$0xf]
        %v633 = vld [vmem:[%s470 + $0x48] sm:$0xf]
        %v634 = vld [vmem:[%s470 + $0x4c] sm:$0xf]
        %v635 = vld [vmem:[%s470 + $0x50] sm:$0xf]
        %v636 = vld [vmem:[%s470 + $0x54] sm:$0xf]
        %v637 = vld [vmem:[%s470 + $0x58] sm:$0xf]
        %v638 = vld [vmem:[%s470 + $0x5c] sm:$0xf]
        %v639 = vld [vmem:[%s470 + $0x60] sm:$0xf]
        %v640 = vld [vmem:[%s470 + $0x64] sm:$0xf]
        %v641 = vld [vmem:[%s470 + $0x68] sm:$0xf]
        %v642 = vld [vmem:[%s470 + $0x6c] sm:$0xf]
        %v643 = vld [vmem:[%s470 + $0x70] sm:$0xf]
        %v644 = vld [vmem:[%s470 + $0x74] sm:$0xf]
        %v645 = vld [vmem:[%s470 + $0x78] sm:$0xf]
        %v646 = vld [vmem:[%s470 + $0x7c] sm:$0xf]
        %v647 = vld [vmem:[%s470 + $0x80] sm:$0xf]
        %v648 = vld [vmem:[%s470 + $0x84] sm:$0xf]
        %v649 = vld [vmem:[%s470 + $0x88] sm:$0xf]
        %v650 = vld [vmem:[%s470 + $0x8c] sm:$0xf]
        %v651 = vld [vmem:[%s470 + $0x90] sm:$0xf]
        %v652 = vld [vmem:[%s470 + $0x94] sm:$0xf]
        %v653 = vld [vmem:[%s470 + $0x98] sm:$0xf]
        %v654 = vld [vmem:[%s470 + $0x9c] sm:$0xf]
        %v655 = vld [vmem:[%s470 + $0xa0] sm:$0xf]
        %v656 = vld [vmem:[%s470 + $0xa4] sm:$0xf]
        %v657 = vld [vmem:[%s470 + $0xa8] sm:$0xf]
        %v658 = vld [vmem:[%s470 + $0xac] sm:$0xf]
        %v659 = vld [vmem:[%s470 + $0xb0] sm:$0xf]
        %v660 = vld [vmem:[%s470 + $0xb4] sm:$0xf]
        %v661 = vld [vmem:[%s470 + $0xb8] sm:$0xf]
        %v662 = vld [vmem:[%s470 + $0xbc] sm:$0xf]
        %v663 = vld [vmem:[%s470 + $0xc0] sm:$0xf]
        %v664 = vld [vmem:[%s470 + $0xc4] sm:$0xf]
        %v665 = vld [vmem:[%s470 + $0xc8] sm:$0xf]
        %v666 = vld [vmem:[%s470 + $0xcc] sm:$0xf]
        %v667 = vld [vmem:[%s470 + $0xd0] sm:$0xf]
        %v668 = vld [vmem:[%s470 + $0xd4] sm:$0xf]
        %v669 = vld [vmem:[%s470 + $0xd8] sm:$0xf]
        %v670 = vld [vmem:[%s470 + $0xdc] sm:$0xf]
        %v671 = vld [vmem:[%s470 + $0xe0] sm:$0xf]
        %v672 = vld [vmem:[%s470 + $0xe4] sm:$0xf]
        %v673 = vld [vmem:[%s470 + $0xe8] sm:$0xf]
        %v674 = vld [vmem:[%s470 + $0xec] sm:$0xf]
        %v675 = vld [vmem:[%s470 + $0xf0] sm:$0xf]
        %v676 = vld [vmem:[%s470 + $0xf4] sm:$0xf]
        %v677 = vld [vmem:[%s470 + $0xf8] sm:$0xf]
        %v678 = vld [vmem:[%s470 + $0xfc] sm:$0xf]
        %v711 = vunpack.c.l.b16 %v615
        %v712 = vunpack.c.l.b16 %v616
        %v713 = vunpack.c.l.b16 %v617
        %v714 = vunpack.c.l.b16 %v618
        %v715 = vunpack.c.l.b16 %v619
        %v716 = vunpack.c.l.b16 %v620
        %v717 = vunpack.c.l.b16 %v621
        %v718 = vunpack.c.l.b16 %v622
        %v719 = vunpack.c.l.b16 %v623
        %v720 = vunpack.c.l.b16 %v624
        %v721 = vunpack.c.l.b16 %v625
        %v722 = vunpack.c.l.b16 %v626
        %v723 = vunpack.c.l.b16 %v627
        %v724 = vunpack.c.l.b16 %v628
        %v725 = vunpack.c.l.b16 %v629
        %v726 = vunpack.c.l.b16 %v630
        %v727 = vunpack.c.l.b16 %v631
        %v728 = vunpack.c.l.b16 %v632
        %v729 = vunpack.c.l.b16 %v633
        %v730 = vunpack.c.l.b16 %v634
        %v731 = vunpack.c.l.b16 %v635
        %v732 = vunpack.c.l.b16 %v636
        %v733 = vunpack.c.l.b16 %v637
        %v734 = vunpack.c.l.b16 %v638
        %v735 = vunpack.c.l.b16 %v639
        %v736 = vunpack.c.l.b16 %v640
        %v737 = vunpack.c.l.b16 %v641
        %v738 = vunpack.c.l.b16 %v642
        %v739 = vunpack.c.l.b16 %v643
        %v740 = vunpack.c.l.b16 %v644
        %v741 = vunpack.c.l.b16 %v645
        %v742 = vunpack.c.l.b16 %v646
        %v743 = vpack.c.b16 %v712, %v711
        %v744 = vpack.c.b16 %v714, %v713
        %v745 = vpack.c.b16 %v716, %v715
        %v746 = vpack.c.b16 %v718, %v717
        %v747 = vpack.c.b16 %v720, %v719
        %v748 = vpack.c.b16 %v722, %v721
        %v749 = vpack.c.b16 %v724, %v723
        %v750 = vpack.c.b16 %v726, %v725
        %v751 = vpack.c.b16 %v728, %v727
        %v752 = vpack.c.b16 %v730, %v729
        %v753 = vpack.c.b16 %v732, %v731
        %v754 = vpack.c.b16 %v734, %v733
        %v755 = vpack.c.b16 %v736, %v735
        %v756 = vpack.c.b16 %v738, %v737
        %v757 = vpack.c.b16 %v740, %v739
        %v758 = vpack.c.b16 %v742, %v741
        %775 = vmatprep.subr.bf16.mxu0 0
        %776 = vmatpush1.bf16.msra.mxu0 %v743
        %777 = vmatprep.subr.bf16.mxu0 0
        %778 = vmatpush1.bf16.msra.mxu0 %v744
        %779 = vmatprep.subr.bf16.mxu0 0
        %780 = vmatpush1.bf16.msra.mxu0 %v745
        %781 = vmatprep.subr.bf16.mxu0 0
        %782 = vmatpush1.bf16.msra.mxu0 %v746
        %783 = vmatprep.subr.bf16.mxu0 0
        %784 = vmatpush1.bf16.msra.mxu0 %v747
        %785 = vmatprep.subr.bf16.mxu0 0
        %786 = vmatpush1.bf16.msra.mxu0 %v748
        %787 = vmatprep.subr.bf16.mxu0 0
        %788 = vmatpush1.bf16.msra.mxu0 %v749
        %789 = vmatprep.subr.bf16.mxu0 0
        %790 = vmatpush1.bf16.msra.mxu0 %v750
        %791 = vmatprep.subr.bf16.mxu0 0
        %792 = vmatpush1.bf16.msra.mxu0 %v751
        %793 = vmatprep.subr.bf16.mxu0 0
        %794 = vmatpush1.bf16.msra.mxu0 %v752
        %795 = vmatprep.subr.bf16.mxu0 0
        %796 = vmatpush1.bf16.msra.mxu0 %v753
        %797 = vmatprep.subr.bf16.mxu0 0
        %798 = vmatpush1.bf16.msra.mxu0 %v754
        %799 = vmatprep.subr.bf16.mxu0 0
        %800 = vmatpush1.bf16.msra.mxu0 %v755
        %801 = vmatprep.subr.bf16.mxu0 0
        %802 = vmatpush1.bf16.msra.mxu0 %v756
        %803 = vmatprep.subr.bf16.mxu0 0
        %804 = vmatpush1.bf16.msra.mxu0 %v757
        %805 = vmatprep.subr.bf16.mxu0 0
        %806 = vmatpush1.bf16.msra.mxu0 %v758
        %807 = vmatprep.mubr.bf16.mxu0 %v614
        %808 = vmatmul.mubr.bf16.gmra.mrb[0].mxu0 %v613
        %v809 = vpop.f32.mrb[0].mxu0
        %v810 = vadd.f32 0.0, %v809
        %v811 = vpop.f32.mrb[0].mxu0
        %v812 = vpop.f32.mrb[0].mxu0
        %v813 = vadd.f32 0.0, %v812
        %v814 = vpop.f32.mrb[0].mxu0
        %815 = vdwg.mxu0
        %v848 = vunpack.c.l.b16 %v647
        %v849 = vunpack.c.l.b16 %v648
        %v850 = vunpack.c.l.b16 %v649
        %v851 = vunpack.c.l.b16 %v650
        %v852 = vunpack.c.l.b16 %v651
        %v853 = vunpack.c.l.b16 %v652
        %v854 = vunpack.c.l.b16 %v653
        %v855 = vunpack.c.l.b16 %v654
        %v856 = vunpack.c.l.b16 %v655
        %v857 = vunpack.c.l.b16 %v656
        %v858 = vunpack.c.l.b16 %v657
        %v859 = vunpack.c.l.b16 %v658
        %v860 = vunpack.c.l.b16 %v659
        %v861 = vunpack.c.l.b16 %v660
        %v862 = vunpack.c.l.b16 %v661
        %v863 = vunpack.c.l.b16 %v662
        %v864 = vunpack.c.l.b16 %v663
        %v865 = vunpack.c.l.b16 %v664
        %v866 = vunpack.c.l.b16 %v665
        %v867 = vunpack.c.l.b16 %v666
        %v868 = vunpack.c.l.b16 %v667
        %v869 = vunpack.c.l.b16 %v668
        %v870 = vunpack.c.l.b16 %v669
        %v871 = vunpack.c.l.b16 %v670
        %v872 = vunpack.c.l.b16 %v671
        %v873 = vunpack.c.l.b16 %v672
        %v874 = vunpack.c.l.b16 %v673
        %v875 = vunpack.c.l.b16 %v674
        %v876 = vunpack.c.l.b16 %v675
        %v877 = vunpack.c.l.b16 %v676
        %v878 = vunpack.c.l.b16 %v677
        %v879 = vunpack.c.l.b16 %v678
        %v880 = vpack.c.b16 %v849, %v848
        %v881 = vpack.c.b16 %v851, %v850
        %v882 = vpack.c.b16 %v853, %v852
        %v883 = vpack.c.b16 %v855, %v854
        %v884 = vpack.c.b16 %v857, %v856
        %v885 = vpack.c.b16 %v859, %v858
        %v886 = vpack.c.b16 %v861, %v860
        %v887 = vpack.c.b16 %v863, %v862
        %v888 = vpack.c.b16 %v865, %v864
        %v889 = vpack.c.b16 %v867, %v866
        %v890 = vpack.c.b16 %v869, %v868
        %v891 = vpack.c.b16 %v871, %v870
        %v892 = vpack.c.b16 %v873, %v872
        %v893 = vpack.c.b16 %v875, %v874
        %v894 = vpack.c.b16 %v877, %v876
        %v895 = vpack.c.b16 %v879, %v878
        %912 = vmatprep.subr.bf16.mxu0 0
        %913 = vmatpush1.bf16.msra.mxu0 %v880
        %914 = vmatprep.subr.bf16.mxu0 0
        %915 = vmatpush1.bf16.msra.mxu0 %v881
        %916 = vmatprep.subr.bf16.mxu0 0
        %917 = vmatpush1.bf16.msra.mxu0 %v882
        %918 = vmatprep.subr.bf16.mxu0 0
        %919 = vmatpush1.bf16.msra.mxu0 %v883
        %920 = vmatprep.subr.bf16.mxu0 0
        %921 = vmatpush1.bf16.msra.mxu0 %v884
        %922 = vmatprep.subr.bf16.mxu0 0
        %923 = vmatpush1.bf16.msra.mxu0 %v885
        %924 = vmatprep.subr.bf16.mxu0 0
        %925 = vmatpush1.bf16.msra.mxu0 %v886
        %926 = vmatprep.subr.bf16.mxu0 0
        %927 = vmatpush1.bf16.msra.mxu0 %v887
        %928 = vmatprep.subr.bf16.mxu0 0
        %929 = vmatpush1.bf16.msra.mxu0 %v888
        %930 = vmatprep.subr.bf16.mxu0 0
        %931 = vmatpush1.bf16.msra.mxu0 %v889
        %932 = vmatprep.subr.bf16.mxu0 0
        %933 = vmatpush1.bf16.msra.mxu0 %v890
        %934 = vmatprep.subr.bf16.mxu0 0
        %935 = vmatpush1.bf16.msra.mxu0 %v891
        %936 = vmatprep.subr.bf16.mxu0 0
        %937 = vmatpush1.bf16.msra.mxu0 %v892
        %938 = vmatprep.subr.bf16.mxu0 0
        %939 = vmatpush1.bf16.msra.mxu0 %v893
        %940 = vmatprep.subr.bf16.mxu0 0
        %941 = vmatpush1.bf16.msra.mxu0 %v894
        %942 = vmatprep.subr.bf16.mxu0 0
        %943 = vmatpush1.bf16.msra.mxu0 %v895
        %944 = vmatprep.mubr.bf16.mxu0 %v614
        %945 = vmatmul.mubr.bf16.gmra.mrb[0].mxu0 %v613
        %v946 = vpop.f32.mrb[0].mxu0
        %v947 = vadd.f32 0.0, %v946
        %v948 = vpop.f32.mrb[0].mxu0
        %v949 = vpop.f32.mrb[0].mxu0
        %v950 = vadd.f32 0.0, %v949
        %v951 = vpop.f32.mrb[0].mxu0
        %952 = vdwg.mxu0
        %s953 = scalar_lea.vmem %s470, 256 [#allocation11]
        %v954 = vld [vmem:[%s953] sm:$0xf]
        %v955 = vld [vmem:[%s953 + $0x4] sm:$0xf]
        %v956 = vld [vmem:[%s953 + $0x8] sm:$0xf]
        %v957 = vld [vmem:[%s953 + $0xc] sm:$0xf]
        %v958 = vld [vmem:[%s953 + $0x10] sm:$0xf]
        %v959 = vld [vmem:[%s953 + $0x14] sm:$0xf]
        %v960 = vld [vmem:[%s953 + $0x18] sm:$0xf]
        %v961 = vld [vmem:[%s953 + $0x1c] sm:$0xf]
        %v962 = vld [vmem:[%s953 + $0x20] sm:$0xf]
        %v963 = vld [vmem:[%s953 + $0x24] sm:$0xf]
        %v964 = vld [vmem:[%s953 + $0x28] sm:$0xf]
        %v965 = vld [vmem:[%s953 + $0x2c] sm:$0xf]
        %v966 = vld [vmem:[%s953 + $0x30] sm:$0xf]
        %v967 = vld [vmem:[%s953 + $0x34] sm:$0xf]
        %v968 = vld [vmem:[%s953 + $0x38] sm:$0xf]
        %v969 = vld [vmem:[%s953 + $0x3c] sm:$0xf]
        %v970 = vld [vmem:[%s953 + $0x40] sm:$0xf]
        %v971 = vld [vmem:[%s953 + $0x44] sm:$0xf]
        %v972 = vld [vmem:[%s953 + $0x48] sm:$0xf]
        %v973 = vld [vmem:[%s953 + $0x4c] sm:$0xf]
        %v974 = vld [vmem:[%s953 + $0x50] sm:$0xf]
        %v975 = vld [vmem:[%s953 + $0x54] sm:$0xf]
        %v976 = vld [vmem:[%s953 + $0x58] sm:$0xf]
        %v977 = vld [vmem:[%s953 + $0x5c] sm:$0xf]
        %v978 = vld [vmem:[%s953 + $0x60] sm:$0xf]
        %v979 = vld [vmem:[%s953 + $0x64] sm:$0xf]
        %v980 = vld [vmem:[%s953 + $0x68] sm:$0xf]
        %v981 = vld [vmem:[%s953 + $0x6c] sm:$0xf]
        %v982 = vld [vmem:[%s953 + $0x70] sm:$0xf]
        %v983 = vld [vmem:[%s953 + $0x74] sm:$0xf]
        %v984 = vld [vmem:[%s953 + $0x78] sm:$0xf]
        %v985 = vld [vmem:[%s953 + $0x7c] sm:$0xf]
        %v986 = vld [vmem:[%s953 + $0x80] sm:$0xf]
        %v987 = vld [vmem:[%s953 + $0x84] sm:$0xf]
        %v988 = vld [vmem:[%s953 + $0x88] sm:$0xf]
        %v989 = vld [vmem:[%s953 + $0x8c] sm:$0xf]
        %v990 = vld [vmem:[%s953 + $0x90] sm:$0xf]
        %v991 = vld [vmem:[%s953 + $0x94] sm:$0xf]
        %v992 = vld [vmem:[%s953 + $0x98] sm:$0xf]
        %v993 = vld [vmem:[%s953 + $0x9c] sm:$0xf]
        %v994 = vld [vmem:[%s953 + $0xa0] sm:$0xf]
        %v995 = vld [vmem:[%s953 + $0xa4] sm:$0xf]
        %v996 = vld [vmem:[%s953 + $0xa8] sm:$0xf]
        %v997 = vld [vmem:[%s953 + $0xac] sm:$0xf]
        %v998 = vld [vmem:[%s953 + $0xb0] sm:$0xf]
        %v999 = vld [vmem:[%s953 + $0xb4] sm:$0xf]
        %v1000 = vld [vmem:[%s953 + $0xb8] sm:$0xf]
        %v1001 = vld [vmem:[%s953 + $0xbc] sm:$0xf]
        %v1002 = vld [vmem:[%s953 + $0xc0] sm:$0xf]
        %v1003 = vld [vmem:[%s953 + $0xc4] sm:$0xf]
        %v1004 = vld [vmem:[%s953 + $0xc8] sm:$0xf]
        %v1005 = vld [vmem:[%s953 + $0xcc] sm:$0xf]
        %v1006 = vld [vmem:[%s953 + $0xd0] sm:$0xf]
        %v1007 = vld [vmem:[%s953 + $0xd4] sm:$0xf]
        %v1008 = vld [vmem:[%s953 + $0xd8] sm:$0xf]
        %v1009 = vld [vmem:[%s953 + $0xdc] sm:$0xf]
        %v1010 = vld [vmem:[%s953 + $0xe0] sm:$0xf]
        %v1011 = vld [vmem:[%s953 + $0xe4] sm:$0xf]
        %v1012 = vld [vmem:[%s953 + $0xe8] sm:$0xf]
        %v1013 = vld [vmem:[%s953 + $0xec] sm:$0xf]
        %v1014 = vld [vmem:[%s953 + $0xf0] sm:$0xf]
        %v1015 = vld [vmem:[%s953 + $0xf4] sm:$0xf]
        %v1016 = vld [vmem:[%s953 + $0xf8] sm:$0xf]
        %v1017 = vld [vmem:[%s953 + $0xfc] sm:$0xf]
        %v1050 = vunpack.c.l.b16 %v954
        %v1051 = vunpack.c.l.b16 %v955
        %v1052 = vunpack.c.l.b16 %v956
        %v1053 = vunpack.c.l.b16 %v957
        %v1054 = vunpack.c.l.b16 %v958
        %v1055 = vunpack.c.l.b16 %v959
        %v1056 = vunpack.c.l.b16 %v960
        %v1057 = vunpack.c.l.b16 %v961
        %v1058 = vunpack.c.l.b16 %v962
        %v1059 = vunpack.c.l.b16 %v963
        %v1060 = vunpack.c.l.b16 %v964
        %v1061 = vunpack.c.l.b16 %v965
        %v1062 = vunpack.c.l.b16 %v966
        %v1063 = vunpack.c.l.b16 %v967
        %v1064 = vunpack.c.l.b16 %v968
        %v1065 = vunpack.c.l.b16 %v969
        %v1066 = vunpack.c.l.b16 %v970
        %v1067 = vunpack.c.l.b16 %v971
        %v1068 = vunpack.c.l.b16 %v972
        %v1069 = vunpack.c.l.b16 %v973
        %v1070 = vunpack.c.l.b16 %v974
        %v1071 = vunpack.c.l.b16 %v975
        %v1072 = vunpack.c.l.b16 %v976
        %v1073 = vunpack.c.l.b16 %v977
        %v1074 = vunpack.c.l.b16 %v978
        %v1075 = vunpack.c.l.b16 %v979
        %v1076 = vunpack.c.l.b16 %v980
        %v1077 = vunpack.c.l.b16 %v981
        %v1078 = vunpack.c.l.b16 %v982
        %v1079 = vunpack.c.l.b16 %v983
        %v1080 = vunpack.c.l.b16 %v984
        %v1081 = vunpack.c.l.b16 %v985
        %v1082 = vpack.c.b16 %v1051, %v1050
        %v1083 = vpack.c.b16 %v1053, %v1052
        %v1084 = vpack.c.b16 %v1055, %v1054
        %v1085 = vpack.c.b16 %v1057, %v1056
        %v1086 = vpack.c.b16 %v1059, %v1058
        %v1087 = vpack.c.b16 %v1061, %v1060
        %v1088 = vpack.c.b16 %v1063, %v1062
        %v1089 = vpack.c.b16 %v1065, %v1064
        %v1090 = vpack.c.b16 %v1067, %v1066
        %v1091 = vpack.c.b16 %v1069, %v1068
        %v1092 = vpack.c.b16 %v1071, %v1070
        %v1093 = vpack.c.b16 %v1073, %v1072
        %v1094 = vpack.c.b16 %v1075, %v1074
        %v1095 = vpack.c.b16 %v1077, %v1076
        %v1096 = vpack.c.b16 %v1079, %v1078
        %v1097 = vpack.c.b16 %v1081, %v1080
        %1114 = vmatprep.subr.bf16.mxu0 0
        %1115 = vmatpush1.bf16.msra.mxu0 %v1082
        %1116 = vmatprep.subr.bf16.mxu0 0
        %1117 = vmatpush1.bf16.msra.mxu0 %v1083
        %1118 = vmatprep.subr.bf16.mxu0 0
        %1119 = vmatpush1.bf16.msra.mxu0 %v1084
        %1120 = vmatprep.subr.bf16.mxu0 0
        %1121 = vmatpush1.bf16.msra.mxu0 %v1085
        %1122 = vmatprep.subr.bf16.mxu0 0
        %1123 = vmatpush1.bf16.msra.mxu0 %v1086
        %1124 = vmatprep.subr.bf16.mxu0 0
        %1125 = vmatpush1.bf16.msra.mxu0 %v1087
        %1126 = vmatprep.subr.bf16.mxu0 0
        %1127 = vmatpush1.bf16.msra.mxu0 %v1088
        %1128 = vmatprep.subr.bf16.mxu0 0
        %1129 = vmatpush1.bf16.msra.mxu0 %v1089
        %1130 = vmatprep.subr.bf16.mxu0 0
        %1131 = vmatpush1.bf16.msra.mxu0 %v1090
        %1132 = vmatprep.subr.bf16.mxu0 0
        %1133 = vmatpush1.bf16.msra.mxu0 %v1091
        %1134 = vmatprep.subr.bf16.mxu0 0
        %1135 = vmatpush1.bf16.msra.mxu0 %v1092
        %1136 = vmatprep.subr.bf16.mxu0 0
        %1137 = vmatpush1.bf16.msra.mxu0 %v1093
        %1138 = vmatprep.subr.bf16.mxu0 0
        %1139 = vmatpush1.bf16.msra.mxu0 %v1094
        %1140 = vmatprep.subr.bf16.mxu0 0
        %1141 = vmatpush1.bf16.msra.mxu0 %v1095
        %1142 = vmatprep.subr.bf16.mxu0 0
        %1143 = vmatpush1.bf16.msra.mxu0 %v1096
        %1144 = vmatprep.subr.bf16.mxu0 0
        %1145 = vmatpush1.bf16.msra.mxu0 %v1097
        %1146 = vmatprep.mubr.bf16.mxu0 %v614
        %1147 = vmatmul.mubr.bf16.gmra.mrb[0].mxu0 %v613
        %v1148 = vpop.f32.mrb[0].mxu0
        %v1149 = vadd.f32 0.0, %v1148
        %v1150 = vpop.f32.mrb[0].mxu0
        %v1151 = vpop.f32.mrb[0].mxu0
        %v1152 = vadd.f32 0.0, %v1151
        %v1153 = vpop.f32.mrb[0].mxu0
        %1154 = vdwg.mxu0
        %v1187 = vunpack.c.l.b16 %v986
        %v1188 = vunpack.c.l.b16 %v987
        %v1189 = vunpack.c.l.b16 %v988
        %v1190 = vunpack.c.l.b16 %v989
        %v1191 = vunpack.c.l.b16 %v990
        %v1192 = vunpack.c.l.b16 %v991
        %v1193 = vunpack.c.l.b16 %v992
        %v1194 = vunpack.c.l.b16 %v993
        %v1195 = vunpack.c.l.b16 %v994
        %v1196 = vunpack.c.l.b16 %v995
        %v1197 = vunpack.c.l.b16 %v996
        %v1198 = vunpack.c.l.b16 %v997
        %v1199 = vunpack.c.l.b16 %v998
        %v1200 = vunpack.c.l.b16 %v999
        %v1201 = vunpack.c.l.b16 %v1000
        %v1202 = vunpack.c.l.b16 %v1001
        %v1203 = vunpack.c.l.b16 %v1002
        %v1204 = vunpack.c.l.b16 %v1003
        %v1205 = vunpack.c.l.b16 %v1004
        %v1206 = vunpack.c.l.b16 %v1005
        %v1207 = vunpack.c.l.b16 %v1006
        %v1208 = vunpack.c.l.b16 %v1007
        %v1209 = vunpack.c.l.b16 %v1008
        %v1210 = vunpack.c.l.b16 %v1009
        %v1211 = vunpack.c.l.b16 %v1010
        %v1212 = vunpack.c.l.b16 %v1011
        %v1213 = vunpack.c.l.b16 %v1012
        %v1214 = vunpack.c.l.b16 %v1013
        %v1215 = vunpack.c.l.b16 %v1014
        %v1216 = vunpack.c.l.b16 %v1015
        %v1217 = vunpack.c.l.b16 %v1016
        %v1218 = vunpack.c.l.b16 %v1017
        %v1219 = vpack.c.b16 %v1188, %v1187
        %v1220 = vpack.c.b16 %v1190, %v1189
        %v1221 = vpack.c.b16 %v1192, %v1191
        %v1222 = vpack.c.b16 %v1194, %v1193
        %v1223 = vpack.c.b16 %v1196, %v1195
        %v1224 = vpack.c.b16 %v1198, %v1197
        %v1225 = vpack.c.b16 %v1200, %v1199
        %v1226 = vpack.c.b16 %v1202, %v1201
        %v1227 = vpack.c.b16 %v1204, %v1203
        %v1228 = vpack.c.b16 %v1206, %v1205
        %v1229 = vpack.c.b16 %v1208, %v1207
        %v1230 = vpack.c.b16 %v1210, %v1209
        %v1231 = vpack.c.b16 %v1212, %v1211
        %v1232 = vpack.c.b16 %v1214, %v1213
        %v1233 = vpack.c.b16 %v1216, %v1215
        %v1234 = vpack.c.b16 %v1218, %v1217
        %1251 = vmatprep.subr.bf16.mxu0 0
        %1252 = vmatpush1.bf16.msra.mxu0 %v1219
        %1253 = vmatprep.subr.bf16.mxu0 0
        %1254 = vmatpush1.bf16.msra.mxu0 %v1220
        %1255 = vmatprep.subr.bf16.mxu0 0
        %1256 = vmatpush1.bf16.msra.mxu0 %v1221
        %1257 = vmatprep.subr.bf16.mxu0 0
        %1258 = vmatpush1.bf16.msra.mxu0 %v1222
        %1259 = vmatprep.subr.bf16.mxu0 0
        %1260 = vmatpush1.bf16.msra.mxu0 %v1223
        %1261 = vmatprep.subr.bf16.mxu0 0
        %1262 = vmatpush1.bf16.msra.mxu0 %v1224
        %1263 = vmatprep.subr.bf16.mxu0 0
        %1264 = vmatpush1.bf16.msra.mxu0 %v1225
        %1265 = vmatprep.subr.bf16.mxu0 0
        %1266 = vmatpush1.bf16.msra.mxu0 %v1226
        %1267 = vmatprep.subr.bf16.mxu0 0
        %1268 = vmatpush1.bf16.msra.mxu0 %v1227
        %1269 = vmatprep.subr.bf16.mxu0 0
        %1270 = vmatpush1.bf16.msra.mxu0 %v1228
        %1271 = vmatprep.subr.bf16.mxu0 0
        %1272 = vmatpush1.bf16.msra.mxu0 %v1229
        %1273 = vmatprep.subr.bf16.mxu0 0
        %1274 = vmatpush1.bf16.msra.mxu0 %v1230
        %1275 = vmatprep.subr.bf16.mxu0 0
        %1276 = vmatpush1.bf16.msra.mxu0 %v1231
        %1277 = vmatprep.subr.bf16.mxu0 0
        %1278 = vmatpush1.bf16.msra.mxu0 %v1232
        %1279 = vmatprep.subr.bf16.mxu0 0
        %1280 = vmatpush1.bf16.msra.mxu0 %v1233
        %1281 = vmatprep.subr.bf16.mxu0 0
        %1282 = vmatpush1.bf16.msra.mxu0 %v1234
        %1283 = vmatprep.mubr.bf16.mxu0 %v614
        %1284 = vmatmul.mubr.bf16.gmra.mrb[0].mxu0 %v613
        %v1285 = vpop.f32.mrb[0].mxu0
        %v1286 = vadd.f32 0.0, %v1285
        %v1287 = vpop.f32.mrb[0].mxu0
        %v1288 = vpop.f32.mrb[0].mxu0
        %v1289 = vadd.f32 0.0, %v1288
        %v1290 = vpop.f32.mrb[0].mxu0
        %1291 = vdwg.mxu0
        %s1292 = scalar_lea.vmem %s470, 512 [#allocation11]
        %v1293 = vld [vmem:[%s1292] sm:$0xf]
        %v1294 = vld [vmem:[%s1292 + $0x4] sm:$0xf]
        %v1295 = vld [vmem:[%s1292 + $0x8] sm:$0xf]
        %v1296 = vld [vmem:[%s1292 + $0xc] sm:$0xf]
        %v1297 = vld [vmem:[%s1292 + $0x10] sm:$0xf]
        %v1298 = vld [vmem:[%s1292 + $0x14] sm:$0xf]
        %v1299 = vld [vmem:[%s1292 + $0x18] sm:$0xf]
        %v1300 = vld [vmem:[%s1292 + $0x1c] sm:$0xf]
        %v1301 = vld [vmem:[%s1292 + $0x20] sm:$0xf]
        %v1302 = vld [vmem:[%s1292 + $0x24] sm:$0xf]
        %v1303 = vld [vmem:[%s1292 + $0x28] sm:$0xf]
        %v1304 = vld [vmem:[%s1292 + $0x2c] sm:$0xf]
        %v1305 = vld [vmem:[%s1292 + $0x30] sm:$0xf]
        %v1306 = vld [vmem:[%s1292 + $0x34] sm:$0xf]
        %v1307 = vld [vmem:[%s1292 + $0x38] sm:$0xf]
        %v1308 = vld [vmem:[%s1292 + $0x3c] sm:$0xf]
        %v1309 = vld [vmem:[%s1292 + $0x40] sm:$0xf]
        %v1310 = vld [vmem:[%s1292 + $0x44] sm:$0xf]
        %v1311 = vld [vmem:[%s1292 + $0x48] sm:$0xf]
        %v1312 = vld [vmem:[%s1292 + $0x4c] sm:$0xf]
        %v1313 = vld [vmem:[%s1292 + $0x50] sm:$0xf]
        %v1314 = vld [vmem:[%s1292 + $0x54] sm:$0xf]
        %v1315 = vld [vmem:[%s1292 + $0x58] sm:$0xf]
        %v1316 = vld [vmem:[%s1292 + $0x5c] sm:$0xf]
        %v1317 = vld [vmem:[%s1292 + $0x60] sm:$0xf]
        %v1318 = vld [vmem:[%s1292 + $0x64] sm:$0xf]
        %v1319 = vld [vmem:[%s1292 + $0x68] sm:$0xf]
        %v1320 = vld [vmem:[%s1292 + $0x6c] sm:$0xf]
        %v1321 = vld [vmem:[%s1292 + $0x70] sm:$0xf]
        %v1322 = vld [vmem:[%s1292 + $0x74] sm:$0xf]
        %v1323 = vld [vmem:[%s1292 + $0x78] sm:$0xf]
        %v1324 = vld [vmem:[%s1292 + $0x7c] sm:$0xf]
        %v1325 = vld [vmem:[%s1292 + $0x80] sm:$0xf]
        %v1326 = vld [vmem:[%s1292 + $0x84] sm:$0xf]
        %v1327 = vld [vmem:[%s1292 + $0x88] sm:$0xf]
        %v1328 = vld [vmem:[%s1292 + $0x8c] sm:$0xf]
        %v1329 = vld [vmem:[%s1292 + $0x90] sm:$0xf]
        %v1330 = vld [vmem:[%s1292 + $0x94] sm:$0xf]
        %v1331 = vld [vmem:[%s1292 + $0x98] sm:$0xf]
        %v1332 = vld [vmem:[%s1292 + $0x9c] sm:$0xf]
        %v1333 = vld [vmem:[%s1292 + $0xa0] sm:$0xf]
        %v1334 = vld [vmem:[%s1292 + $0xa4] sm:$0xf]
        %v1335 = vld [vmem:[%s1292 + $0xa8] sm:$0xf]
        %v1336 = vld [vmem:[%s1292 + $0xac] sm:$0xf]
        %v1337 = vld [vmem:[%s1292 + $0xb0] sm:$0xf]
        %v1338 = vld [vmem:[%s1292 + $0xb4] sm:$0xf]
        %v1339 = vld [vmem:[%s1292 + $0xb8] sm:$0xf]
        %v1340 = vld [vmem:[%s1292 + $0xbc] sm:$0xf]
        %v1341 = vld [vmem:[%s1292 + $0xc0] sm:$0xf]
        %v1342 = vld [vmem:[%s1292 + $0xc4] sm:$0xf]
        %v1343 = vld [vmem:[%s1292 + $0xc8] sm:$0xf]
        %v1344 = vld [vmem:[%s1292 + $0xcc] sm:$0xf]
        %v1345 = vld [vmem:[%s1292 + $0xd0] sm:$0xf]
        %v1346 = vld [vmem:[%s1292 + $0xd4] sm:$0xf]
        %v1347 = vld [vmem:[%s1292 + $0xd8] sm:$0xf]
        %v1348 = vld [vmem:[%s1292 + $0xdc] sm:$0xf]
        %v1349 = vld [vmem:[%s1292 + $0xe0] sm:$0xf]
        %v1350 = vld [vmem:[%s1292 + $0xe4] sm:$0xf]
        %v1351 = vld [vmem:[%s1292 + $0xe8] sm:$0xf]
        %v1352 = vld [vmem:[%s1292 + $0xec] sm:$0xf]
        %v1353 = vld [vmem:[%s1292 + $0xf0] sm:$0xf]
        %v1354 = vld [vmem:[%s1292 + $0xf4] sm:$0xf]
        %v1355 = vld [vmem:[%s1292 + $0xf8] sm:$0xf]
        %v1356 = vld [vmem:[%s1292 + $0xfc] sm:$0xf]
        %v1389 = vunpack.c.l.b16 %v1293
        %v1390 = vunpack.c.l.b16 %v1294
        %v1391 = vunpack.c.l.b16 %v1295
        %v1392 = vunpack.c.l.b16 %v1296
        %v1393 = vunpack.c.l.b16 %v1297
        %v1394 = vunpack.c.l.b16 %v1298
        %v1395 = vunpack.c.l.b16 %v1299
        %v1396 = vunpack.c.l.b16 %v1300
        %v1397 = vunpack.c.l.b16 %v1301
        %v1398 = vunpack.c.l.b16 %v1302
        %v1399 = vunpack.c.l.b16 %v1303
        %v1400 = vunpack.c.l.b16 %v1304
        %v1401 = vunpack.c.l.b16 %v1305
        %v1402 = vunpack.c.l.b16 %v1306
        %v1403 = vunpack.c.l.b16 %v1307
        %v1404 = vunpack.c.l.b16 %v1308
        %v1405 = vunpack.c.l.b16 %v1309
        %v1406 = vunpack.c.l.b16 %v1310
        %v1407 = vunpack.c.l.b16 %v1311
        %v1408 = vunpack.c.l.b16 %v1312
        %v1409 = vunpack.c.l.b16 %v1313
        %v1410 = vunpack.c.l.b16 %v1314
        %v1411 = vunpack.c.l.b16 %v1315
        %v1412 = vunpack.c.l.b16 %v1316
        %v1413 = vunpack.c.l.b16 %v1317
        %v1414 = vunpack.c.l.b16 %v1318
        %v1415 = vunpack.c.l.b16 %v1319
        %v1416 = vunpack.c.l.b16 %v1320
        %v1417 = vunpack.c.l.b16 %v1321
        %v1418 = vunpack.c.l.b16 %v1322
        %v1419 = vunpack.c.l.b16 %v1323
        %v1420 = vunpack.c.l.b16 %v1324
        %v1421 = vpack.c.b16 %v1390, %v1389
        %v1422 = vpack.c.b16 %v1392, %v1391
        %v1423 = vpack.c.b16 %v1394, %v1393
        %v1424 = vpack.c.b16 %v1396, %v1395
        %v1425 = vpack.c.b16 %v1398, %v1397
        %v1426 = vpack.c.b16 %v1400, %v1399
        %v1427 = vpack.c.b16 %v1402, %v1401
        %v1428 = vpack.c.b16 %v1404, %v1403
        %v1429 = vpack.c.b16 %v1406, %v1405
        %v1430 = vpack.c.b16 %v1408, %v1407
        %v1431 = vpack.c.b16 %v1410, %v1409
        %v1432 = vpack.c.b16 %v1412, %v1411
        %v1433 = vpack.c.b16 %v1414, %v1413
        %v1434 = vpack.c.b16 %v1416, %v1415
        %v1435 = vpack.c.b16 %v1418, %v1417
        %v1436 = vpack.c.b16 %v1420, %v1419
        %1453 = vmatprep.subr.bf16.mxu0 0
        %1454 = vmatpush1.bf16.msra.mxu0 %v1421
        %1455 = vmatprep.subr.bf16.mxu0 0
        %1456 = vmatpush1.bf16.msra.mxu0 %v1422
        %1457 = vmatprep.subr.bf16.mxu0 0
        %1458 = vmatpush1.bf16.msra.mxu0 %v1423
        %1459 = vmatprep.subr.bf16.mxu0 0
        %1460 = vmatpush1.bf16.msra.mxu0 %v1424
        %1461 = vmatprep.subr.bf16.mxu0 0
        %1462 = vmatpush1.bf16.msra.mxu0 %v1425
        %1463 = vmatprep.subr.bf16.mxu0 0
        %1464 = vmatpush1.bf16.msra.mxu0 %v1426
        %1465 = vmatprep.subr.bf16.mxu0 0
        %1466 = vmatpush1.bf16.msra.mxu0 %v1427
        %1467 = vmatprep.subr.bf16.mxu0 0
        %1468 = vmatpush1.bf16.msra.mxu0 %v1428
        %1469 = vmatprep.subr.bf16.mxu0 0
        %1470 = vmatpush1.bf16.msra.mxu0 %v1429
        %1471 = vmatprep.subr.bf16.mxu0 0
        %1472 = vmatpush1.bf16.msra.mxu0 %v1430
        %1473 = vmatprep.subr.bf16.mxu0 0
        %1474 = vmatpush1.bf16.msra.mxu0 %v1431
        %1475 = vmatprep.subr.bf16.mxu0 0
        %1476 = vmatpush1.bf16.msra.mxu0 %v1432
        %1477 = vmatprep.subr.bf16.mxu0 0
        %1478 = vmatpush1.bf16.msra.mxu0 %v1433
        %1479 = vmatprep.subr.bf16.mxu0 0
        %1480 = vmatpush1.bf16.msra.mxu0 %v1434
        %1481 = vmatprep.subr.bf16.mxu0 0
        %1482 = vmatpush1.bf16.msra.mxu0 %v1435
        %1483 = vmatprep.subr.bf16.mxu0 0
        %1484 = vmatpush1.bf16.msra.mxu0 %v1436
        %1485 = vmatprep.mubr.bf16.mxu0 %v614
        %1486 = vmatmul.mubr.bf16.gmra.mrb[0].mxu0 %v613
        %v1487 = vpop.f32.mrb[0].mxu0
        %v1488 = vadd.f32 0.0, %v1487
        %v1489 = vpop.f32.mrb[0].mxu0
        %v1490 = vpop.f32.mrb[0].mxu0
        %v1491 = vadd.f32 0.0, %v1490
        %v1492 = vpop.f32.mrb[0].mxu0
        %1493 = vdwg.mxu0
        %v1526 = vunpack.c.l.b16 %v1325
        %v1527 = vunpack.c.l.b16 %v1326
        %v1528 = vunpack.c.l.b16 %v1327
        %v1529 = vunpack.c.l.b16 %v1328
        %v1530 = vunpack.c.l.b16 %v1329
        %v1531 = vunpack.c.l.b16 %v1330
        %v1532 = vunpack.c.l.b16 %v1331
        %v1533 = vunpack.c.l.b16 %v1332
        %v1534 = vunpack.c.l.b16 %v1333
        %v1535 = vunpack.c.l.b16 %v1334
        %v1536 = vunpack.c.l.b16 %v1335
        %v1537 = vunpack.c.l.b16 %v1336
        %v1538 = vunpack.c.l.b16 %v1337
        %v1539 = vunpack.c.l.b16 %v1338
        %v1540 = vunpack.c.l.b16 %v1339
        %v1541 = vunpack.c.l.b16 %v1340
        %v1542 = vunpack.c.l.b16 %v1341
        %v1543 = vunpack.c.l.b16 %v1342
        %v1544 = vunpack.c.l.b16 %v1343
        %v1545 = vunpack.c.l.b16 %v1344
        %v1546 = vunpack.c.l.b16 %v1345
        %v1547 = vunpack.c.l.b16 %v1346
        %v1548 = vunpack.c.l.b16 %v1347
        %v1549 = vunpack.c.l.b16 %v1348
        %v1550 = vunpack.c.l.b16 %v1349
        %v1551 = vunpack.c.l.b16 %v1350
        %v1552 = vunpack.c.l.b16 %v1351
        %v1553 = vunpack.c.l.b16 %v1352
        %v1554 = vunpack.c.l.b16 %v1353
        %v1555 = vunpack.c.l.b16 %v1354
        %v1556 = vunpack.c.l.b16 %v1355
        %v1557 = vunpack.c.l.b16 %v1356
        %v1558 = vpack.c.b16 %v1527, %v1526
        %v1559 = vpack.c.b16 %v1529, %v1528
        %v1560 = vpack.c.b16 %v1531, %v1530
        %v1561 = vpack.c.b16 %v1533, %v1532
        %v1562 = vpack.c.b16 %v1535, %v1534
        %v1563 = vpack.c.b16 %v1537, %v1536
        %v1564 = vpack.c.b16 %v1539, %v1538
        %v1565 = vpack.c.b16 %v1541, %v1540
        %v1566 = vpack.c.b16 %v1543, %v1542
        %v1567 = vpack.c.b16 %v1545, %v1544
        %v1568 = vpack.c.b16 %v1547, %v1546
        %v1569 = vpack.c.b16 %v1549, %v1548
        %v1570 = vpack.c.b16 %v1551, %v1550
        %v1571 = vpack.c.b16 %v1553, %v1552
        %v1572 = vpack.c.b16 %v1555, %v1554
        %v1573 = vpack.c.b16 %v1557, %v1556
        %1590 = vmatprep.subr.bf16.mxu0 0
        %1591 = vmatpush1.bf16.msra.mxu0 %v1558
        %1592 = vmatprep.subr.bf16.mxu0 0
        %1593 = vmatpush1.bf16.msra.mxu0 %v1559
        %1594 = vmatprep.subr.bf16.mxu0 0
        %1595 = vmatpush1.bf16.msra.mxu0 %v1560
        %1596 = vmatprep.subr.bf16.mxu0 0
        %1597 = vmatpush1.bf16.msra.mxu0 %v1561
        %1598 = vmatprep.subr.bf16.mxu0 0
        %1599 = vmatpush1.bf16.msra.mxu0 %v1562
        %1600 = vmatprep.subr.bf16.mxu0 0
        %1601 = vmatpush1.bf16.msra.mxu0 %v1563
        %1602 = vmatprep.subr.bf16.mxu0 0
        %1603 = vmatpush1.bf16.msra.mxu0 %v1564
        %1604 = vmatprep.subr.bf16.mxu0 0
        %1605 = vmatpush1.bf16.msra.mxu0 %v1565
        %1606 = vmatprep.subr.bf16.mxu0 0
        %1607 = vmatpush1.bf16.msra.mxu0 %v1566
        %1608 = vmatprep.subr.bf16.mxu0 0
        %1609 = vmatpush1.bf16.msra.mxu0 %v1567
        %1610 = vmatprep.subr.bf16.mxu0 0
        %1611 = vmatpush1.bf16.msra.mxu0 %v1568
        %1612 = vmatprep.subr.bf16.mxu0 0
        %1613 = vmatpush1.bf16.msra.mxu0 %v1569
        %1614 = vmatprep.subr.bf16.mxu0 0
        %1615 = vmatpush1.bf16.msra.mxu0 %v1570
        %1616 = vmatprep.subr.bf16.mxu0 0
        %1617 = vmatpush1.bf16.msra.mxu0 %v1571
        %1618 = vmatprep.subr.bf16.mxu0 0
        %1619 = vmatpush1.bf16.msra.mxu0 %v1572
        %1620 = vmatprep.subr.bf16.mxu0 0
        %1621 = vmatpush1.bf16.msra.mxu0 %v1573
        %1622 = vmatprep.mubr.bf16.mxu0 %v614
        %1623 = vmatmul.mubr.bf16.gmra.mrb[0].mxu0 %v613
        %v1624 = vpop.f32.mrb[0].mxu0
        %v1625 = vadd.f32 0.0, %v1624
        %v1626 = vpop.f32.mrb[0].mxu0
        %v1627 = vpop.f32.mrb[0].mxu0
        %v1628 = vadd.f32 0.0, %v1627
        %v1629 = vpop.f32.mrb[0].mxu0
        %1630 = vdwg.mxu0
        %1631 = vrot.lane.b32.xlu0 %v810, 64
        %v1632 = vpop.permute.xlu0 %1631
        %1633 = vrot.lane.b32.xlu0 %v813, 64
        %v1634 = vpop.permute.xlu0 %1633
        %1635 = vrot.lane.b32.xlu0 %v947, 64
        %v1636 = vpop.permute.xlu0 %1635
        %1637 = vrot.lane.b32.xlu0 %v950, 64
        %v1638 = vpop.permute.xlu0 %1637
        %v1639 = vmul.f32 %v810, %v565
        %v1640 = vmul.f32 %v813, %v566
        %v1641 = vmul.f32 %v947, %v565
        %v1642 = vmul.f32 %v950, %v566
        %v1643 = vmul.f32 %v1632, %v567
        %v1644 = vmul.f32 %v1634, %v568
        %v1645 = vmul.f32 %v1636, %v567
        %v1646 = vmul.f32 %v1638, %v568
        %v1647 = vadd.f32 %v1639, %v1643
        %v1648 = vadd.f32 %v1640, %v1644
        %v1649 = vadd.f32 %v1641, %v1645
        %v1650 = vadd.f32 %v1642, %v1646
        %v1651 = vpack.c.bf16 %v1648, %v1647
        %v1652 = vpack.c.bf16 %v1650, %v1649
        %1653 = vrot.lane.b32.xlu0 %v1149, 64
        %v1654 = vpop.permute.xlu0 %1653
        %1655 = vrot.lane.b32.xlu0 %v1152, 64
        %v1656 = vpop.permute.xlu0 %1655
        %1657 = vrot.lane.b32.xlu0 %v1286, 64
        %v1658 = vpop.permute.xlu0 %1657
        %1659 = vrot.lane.b32.xlu0 %v1289, 64
        %v1660 = vpop.permute.xlu0 %1659
        %v1661 = vmul.f32 %v1149, %v565
        %v1662 = vmul.f32 %v1152, %v566
        %v1663 = vmul.f32 %v1286, %v565
        %v1664 = vmul.f32 %v1289, %v566
        %v1665 = vmul.f32 %v1654, %v567
        %v1666 = vmul.f32 %v1656, %v568
        %v1667 = vmul.f32 %v1658, %v567
        %v1668 = vmul.f32 %v1660, %v568
        %v1669 = vadd.f32 %v1661, %v1665
        %v1670 = vadd.f32 %v1662, %v1666
        %v1671 = vadd.f32 %v1663, %v1667
        %v1672 = vadd.f32 %v1664, %v1668
        %v1673 = vpack.c.bf16 %v1670, %v1669
        %v1674 = vpack.c.bf16 %v1672, %v1671
        %v1675 = vlaneseq
        %v1676 = vshrl.u32 %v1675, 7
        %v1677 = vadd.s32 %v1676, 8
        %v1678 = vlaneseq
        %v1679 = vand.u32 %v1678, 127
        %vm1680 = vcmp.le.s32.totalorder %v1679, %v1676
        %vm1681 = vcmp.le.s32.totalorder %v1679, %v1677
        %1682 = vmatprep.subr.bf16.mxu0 0
        %1683 = vmatpush1.bf16.xpose.msra.mxu0 %v1673
        %1684 = vmatprep.subr.bf16.mxu0 0
        %1685 = vmatpush1.bf16.xpose.msra.mxu0 0
        %1686 = vmatprep.subr.bf16.mxu0 0
        %1687 = vmatpush1.bf16.xpose.msra.mxu0 0
        %1688 = vmatprep.subr.bf16.mxu0 0
        %1689 = vmatpush1.bf16.xpose.msra.mxu0 0
        %1690 = vmatprep.subr.bf16.mxu0 0
        %1691 = vmatpush1.bf16.xpose.msra.mxu0 0
        %1692 = vmatprep.subr.bf16.mxu0 0
        %1693 = vmatpush1.bf16.xpose.msra.mxu0 0
        %1694 = vmatprep.subr.bf16.mxu0 0
        %1695 = vmatpush1.bf16.xpose.msra.mxu0 0
        %1696 = vmatprep.subr.bf16.mxu0 0
        %1697 = vmatpush1.bf16.xpose.msra.mxu0 0
        %1698 = vmatprep.subr.bf16.mxu0 0
        %1699 = vmatpush1.bf16.xpose.msra.mxu0 0
        %1700 = vmatprep.subr.bf16.mxu0 0
        %1701 = vmatpush1.bf16.xpose.msra.mxu0 0
        %1702 = vmatprep.subr.bf16.mxu0 0
        %1703 = vmatpush1.bf16.xpose.msra.mxu0 0
        %1704 = vmatprep.subr.bf16.mxu0 0
        %1705 = vmatpush1.bf16.xpose.msra.mxu0 0
        %1706 = vmatprep.subr.bf16.mxu0 0
        %1707 = vmatpush1.bf16.xpose.msra.mxu0 0
        %1708 = vmatprep.subr.bf16.mxu0 0
        %1709 = vmatpush1.bf16.xpose.msra.mxu0 0
        %1710 = vmatprep.subr.bf16.mxu0 0
        %1711 = vmatpush1.bf16.xpose.msra.mxu0 0
        %1712 = vmatprep.subr.bf16.mxu0 0
        %1713 = vmatpush1.bf16.xpose.msra.mxu0 0
        %1714 = vmatprep.mubr.bf16.mxu0 0
        %1715 = vmatmul.mubr.bf16.gmra.mrb[0].mxu0 %v1651
        %v1716 = vpop.f32.mrb[0].mxu0
        %v1717 = vadd.f32 0.0, %v1716
        %v1718 = vpop.f32.mrb[0].mxu0
        %v1719 = vpop.f32.mrb[0].mxu0
        %v1720 = vadd.f32 0.0, %v1719
        %v1721 = vpop.f32.mrb[0].mxu0
        %1722 = vdwg.mxu0
        %1723 = vmatprep.subr.bf16.mxu0 0
        %1724 = vmatpush1.bf16.xpose.msra.mxu0 %v1674
        %1725 = vmatprep.subr.bf16.mxu0 0
        %1726 = vmatpush1.bf16.xpose.msra.mxu0 0
        %1727 = vmatprep.subr.bf16.mxu0 0
        %1728 = vmatpush1.bf16.xpose.msra.mxu0 0
        %1729 = vmatprep.subr.bf16.mxu0 0
        %1730 = vmatpush1.bf16.xpose.msra.mxu0 0
        %1731 = vmatprep.subr.bf16.mxu0 0
        %1732 = vmatpush1.bf16.xpose.msra.mxu0 0
        %1733 = vmatprep.subr.bf16.mxu0 0
        %1734 = vmatpush1.bf16.xpose.msra.mxu0 0
        %1735 = vmatprep.subr.bf16.mxu0 0
        %1736 = vmatpush1.bf16.xpose.msra.mxu0 0
        %1737 = vmatprep.subr.bf16.mxu0 0
        %1738 = vmatpush1.bf16.xpose.msra.mxu0 0
        %1739 = vmatprep.subr.bf16.mxu0 0
        %1740 = vmatpush1.bf16.xpose.msra.mxu0 0
        %1741 = vmatprep.subr.bf16.mxu0 0
        %1742 = vmatpush1.bf16.xpose.msra.mxu0 0
        %1743 = vmatprep.subr.bf16.mxu0 0
        %1744 = vmatpush1.bf16.xpose.msra.mxu0 0
        %1745 = vmatprep.subr.bf16.mxu0 0
        %1746 = vmatpush1.bf16.xpose.msra.mxu0 0
        %1747 = vmatprep.subr.bf16.mxu0 0
        %1748 = vmatpush1.bf16.xpose.msra.mxu0 0
        %1749 = vmatprep.subr.bf16.mxu0 0
        %1750 = vmatpush1.bf16.xpose.msra.mxu0 0
        %1751 = vmatprep.subr.bf16.mxu0 0
        %1752 = vmatpush1.bf16.xpose.msra.mxu0 0
        %1753 = vmatprep.subr.bf16.mxu0 0
        %1754 = vmatpush1.bf16.xpose.msra.mxu0 0
        %1755 = vmatprep.mubr.bf16.mxu0 0
        %1756 = vmatmul.mubr.bf16.gmra.mrb[0].mxu0 %v1652
        %v1757 = vpop.f32.mrb[0].mxu0
        %v1758 = vadd.f32 0.0, %v1757
        %v1759 = vpop.f32.mrb[0].mxu0
        %v1760 = vpop.f32.mrb[0].mxu0
        %v1761 = vadd.f32 0.0, %v1760
        %v1762 = vpop.f32.mrb[0].mxu0
        %1763 = vdwg.mxu0
        %v1764 = vsel %vm1680, 1, 0
        %v1765 = vsel %vm1681, 1, 0
        %vm1766 = vcmp.eq.s32.totalorder %v1764, 1
        %vm1767 = vcmp.eq.s32.totalorder %v1765, 1
        %v1768 = vsel %vm1766, %v1717, -1e+30
        %v1769 = vsel %vm1767, %v1720, -1e+30
        %v1770 = vsel %vm1766, %v1758, -1e+30
        %v1771 = vsel %vm1767, %v1761, -1e+30
        %vm1772 = vcmask 130048
        %v1773 = vsel %vm1772, %v1768, -inf
        %1774 = vmax.xlane.f32.xlu0 %v1773
        %v1775 = vpop.xlane.xlu0 %1774
        %v1776 = vsel %vm1772, %v1769, -inf
        %1777 = vmax.xlane.f32.xlu0 %v1776
        %v1778 = vpop.xlane.xlu0 %1777
        %v1779 = vsel %vm1772, %v1770, -inf
        %1780 = vmax.xlane.f32.xlu0 %v1779
        %v1781 = vpop.xlane.xlu0 %1780
        %v1782 = vsel %vm1772, %v1771, -inf
        %1783 = vmax.xlane.f32.xlu0 %v1782
        %v1784 = vpop.xlane.xlu0 %1783
        %v1785 = vsub.f32 %v1768, %v1775
        %v1786 = vsub.f32 %v1769, %v1778
        %v1787 = vsub.f32 %v1770, %v1781
        %v1788 = vsub.f32 %v1771, %v1784
        %v1789 = vmul.f32 %v1785, 1.442695
        %v1790 = vpow.pop %v1789
        %v1791 = vmul.f32 %v1786, 1.442695
        %v1792 = vpow.pop %v1791
        %v1793 = vmul.f32 %v1787, 1.442695
        %v1794 = vpow.pop %v1793
        %v1795 = vmul.f32 %v1788, 1.442695
        %v1796 = vpow.pop %v1795
        %v1797 = vsel %vm1772, %v1790, 0.0
        %1798 = vadd.xlane.f32.xlu0 %v1797
        %v1799 = vpop.xlane.xlu0 %1798
        %v1800 = vsel %vm1772, %v1792, 0.0
        %1801 = vadd.xlane.f32.xlu0 %v1800
        %v1802 = vpop.xlane.xlu0 %1801
        %v1803 = vsel %vm1772, %v1794, 0.0
        %1804 = vadd.xlane.f32.xlu0 %v1803
        %v1805 = vpop.xlane.xlu0 %1804
        %v1806 = vsel %vm1772, %v1796, 0.0
        %1807 = vadd.xlane.f32.xlu0 %v1806
        %v1808 = vpop.xlane.xlu0 %1807
        %v1809 = vpack.c.bf16 %v1792, %v1790
        %v1810 = vpack.c.bf16 %v1796, %v1794
        %v1811 = vpack.c.bf16 %v1491, %v1488
        %v1812 = vpack.c.bf16 %v1628, %v1625
        %v1814 = vsel %vm1772, %v1809, 0
        %1816 = vmatprep.subr.bf16.mxu0 0
        %1817 = vmatpush1.bf16.msra.mxu0 %v1811
        %1818 = vmatprep.subr.bf16.mxu0 0
        %1819 = vmatpush1.bf16.msra.mxu0 0
        %1820 = vmatprep.subr.bf16.mxu0 0
        %1821 = vmatpush1.bf16.msra.mxu0 0
        %1822 = vmatprep.subr.bf16.mxu0 0
        %1823 = vmatpush1.bf16.msra.mxu0 0
        %1824 = vmatprep.subr.bf16.mxu0 0
        %1825 = vmatpush1.bf16.msra.mxu0 0
        %1826 = vmatprep.subr.bf16.mxu0 0
        %1827 = vmatpush1.bf16.msra.mxu0 0
        %1828 = vmatprep.subr.bf16.mxu0 0
        %1829 = vmatpush1.bf16.msra.mxu0 0
        %1830 = vmatprep.subr.bf16.mxu0 0
        %1831 = vmatpush1.bf16.msra.mxu0 0
        %1832 = vmatprep.subr.bf16.mxu0 0
        %1833 = vmatpush1.bf16.msra.mxu0 0
        %1834 = vmatprep.subr.bf16.mxu0 0
        %1835 = vmatpush1.bf16.msra.mxu0 0
        %1836 = vmatprep.subr.bf16.mxu0 0
        %1837 = vmatpush1.bf16.msra.mxu0 0
        %1838 = vmatprep.subr.bf16.mxu0 0
        %1839 = vmatpush1.bf16.msra.mxu0 0
        %1840 = vmatprep.subr.bf16.mxu0 0
        %1841 = vmatpush1.bf16.msra.mxu0 0
        %1842 = vmatprep.subr.bf16.mxu0 0
        %1843 = vmatpush1.bf16.msra.mxu0 0
        %1844 = vmatprep.subr.bf16.mxu0 0
        %1845 = vmatpush1.bf16.msra.mxu0 0
        %1846 = vmatprep.subr.bf16.mxu0 0
        %1847 = vmatpush1.bf16.msra.mxu0 0
        %1848 = vmatprep.mubr.bf16.mxu0 0
        %1849 = vmatmul.mubr.bf16.gmra.mrb[0].mxu0 %v1814
        %v1850 = vpop.f32.mrb[0].mxu0
        %v1851 = vadd.f32 0.0, %v1850
        %v1852 = vpop.f32.mrb[0].mxu0
        %v1853 = vpop.f32.mrb[0].mxu0
        %v1854 = vadd.f32 0.0, %v1853
        %v1855 = vpop.f32.mrb[0].mxu0
        %1856 = vdwg.mxu0
        %v1858 = vsel %vm1772, %v1810, 0
        %1860 = vmatprep.subr.bf16.mxu0 0
        %1861 = vmatpush1.bf16.msra.mxu0 %v1812
        %1862 = vmatprep.subr.bf16.mxu0 0
        %1863 = vmatpush1.bf16.msra.mxu0 0
        %1864 = vmatprep.subr.bf16.mxu0 0
        %1865 = vmatpush1.bf16.msra.mxu0 0
        %1866 = vmatprep.subr.bf16.mxu0 0
        %1867 = vmatpush1.bf16.msra.mxu0 0
        %1868 = vmatprep.subr.bf16.mxu0 0
        %1869 = vmatpush1.bf16.msra.mxu0 0
        %1870 = vmatprep.subr.bf16.mxu0 0
        %1871 = vmatpush1.bf16.msra.mxu0 0
        %1872 = vmatprep.subr.bf16.mxu0 0
        %1873 = vmatpush1.bf16.msra.mxu0 0
        %1874 = vmatprep.subr.bf16.mxu0 0
        %1875 = vmatpush1.bf16.msra.mxu0 0
        %1876 = vmatprep.subr.bf16.mxu0 0
        %1877 = vmatpush1.bf16.msra.mxu0 0
        %1878 = vmatprep.subr.bf16.mxu0 0
        %1879 = vmatpush1.bf16.msra.mxu0 0
        %1880 = vmatprep.subr.bf16.mxu0 0
        %1881 = vmatpush1.bf16.msra.mxu0 0
        %1882 = vmatprep.subr.bf16.mxu0 0
        %1883 = vmatpush1.bf16.msra.mxu0 0
        %1884 = vmatprep.subr.bf16.mxu0 0
        %1885 = vmatpush1.bf16.msra.mxu0 0
        %1886 = vmatprep.subr.bf16.mxu0 0
        %1887 = vmatpush1.bf16.msra.mxu0 0
        %1888 = vmatprep.subr.bf16.mxu0 0
        %1889 = vmatpush1.bf16.msra.mxu0 0
        %1890 = vmatprep.subr.bf16.mxu0 0
        %1891 = vmatpush1.bf16.msra.mxu0 0
        %1892 = vmatprep.mubr.bf16.mxu0 0
        %1893 = vmatmul.mubr.bf16.gmra.mrb[0].mxu0 %v1858
        %v1894 = vpop.f32.mrb[0].mxu0
        %v1895 = vadd.f32 0.0, %v1894
        %v1896 = vpop.f32.mrb[0].mxu0
        %v1897 = vpop.f32.mrb[0].mxu0
        %v1898 = vadd.f32 0.0, %v1897
        %v1899 = vpop.f32.mrb[0].mxu0
        %1900 = vdwg.mxu0
        %v1901 = vrcp.pop %v1799
        %v1902 = vmul.f32 %v1851, %v1901
        %v1903 = vrcp.pop %v1802
        %v1904 = vmul.f32 %v1854, %v1903
        %v1905 = vrcp.pop %v1805
        %v1906 = vmul.f32 %v1895, %v1905
        %v1907 = vrcp.pop %v1808
        %v1908 = vmul.f32 %v1898, %v1907
        %v1909 = vpack.c.bf16 %v1904, %v1902
        %v1910 = vpack.c.bf16 %v1908, %v1906
        %v1911 = vld [vmem:[%s479] sm:$0xff]
        %v1912 = vld [vmem:[%s479 + $0x8] sm:$0xff]
        %v1913 = vld [vmem:[%s479 + $0x10] sm:$0xff]
        %v1914 = vld [vmem:[%s479 + $0x18] sm:$0xff]
        %v1915 = vld [vmem:[%s479 + $0x20] sm:$0xff]
        %v1916 = vld [vmem:[%s479 + $0x28] sm:$0xff]
        %v1917 = vld [vmem:[%s479 + $0x30] sm:$0xff]
        %v1918 = vld [vmem:[%s479 + $0x38] sm:$0xff]
        %v1919 = vld [vmem:[%s479 + $0x40] sm:$0xff]
        %v1920 = vld [vmem:[%s479 + $0x48] sm:$0xff]
        %v1921 = vld [vmem:[%s479 + $0x50] sm:$0xff]
        %v1922 = vld [vmem:[%s479 + $0x58] sm:$0xff]
        %v1923 = vld [vmem:[%s479 + $0x60] sm:$0xff]
        %v1924 = vld [vmem:[%s479 + $0x68] sm:$0xff]
        %v1925 = vld [vmem:[%s479 + $0x70] sm:$0xff]
        %v1926 = vld [vmem:[%s479 + $0x78] sm:$0xff]
        %v1927 = vld [vmem:[%s479 + $0x80] sm:$0xff]
        %v1928 = vld [vmem:[%s479 + $0x88] sm:$0xff]
        %v1929 = vld [vmem:[%s479 + $0x90] sm:$0xff]
        %v1930 = vld [vmem:[%s479 + $0x98] sm:$0xff]
        %v1931 = vld [vmem:[%s479 + $0xa0] sm:$0xff]
        %v1932 = vld [vmem:[%s479 + $0xa8] sm:$0xff]
        %v1933 = vld [vmem:[%s479 + $0xb0] sm:$0xff]
        %v1934 = vld [vmem:[%s479 + $0xb8] sm:$0xff]
        %v1935 = vld [vmem:[%s479 + $0xc0] sm:$0xff]
        %v1936 = vld [vmem:[%s479 + $0xc8] sm:$0xff]
        %v1937 = vld [vmem:[%s479 + $0xd0] sm:$0xff]
        %v1938 = vld [vmem:[%s479 + $0xd8] sm:$0xff]
        %v1939 = vld [vmem:[%s479 + $0xe0] sm:$0xff]
        %v1940 = vld [vmem:[%s479 + $0xe8] sm:$0xff]
        %v1941 = vld [vmem:[%s479 + $0xf0] sm:$0xff]
        %v1942 = vld [vmem:[%s479 + $0xf8] sm:$0xff]
        %v1959 = vunpack.c.l.b16 %v1911
        %v1960 = vunpack.c.h.b16 %v1911
        %v1961 = vunpack.c.l.b16 %v1912
        %v1962 = vunpack.c.h.b16 %v1912
        %v1963 = vunpack.c.l.b16 %v1913
        %v1964 = vunpack.c.h.b16 %v1913
        %v1965 = vunpack.c.l.b16 %v1914
        %v1966 = vunpack.c.h.b16 %v1914
        %v1967 = vunpack.c.l.b16 %v1915
        %v1968 = vunpack.c.h.b16 %v1915
        %v1969 = vunpack.c.l.b16 %v1916
        %v1970 = vunpack.c.h.b16 %v1916
        %v1971 = vunpack.c.l.b16 %v1917
        %v1972 = vunpack.c.h.b16 %v1917
        %v1973 = vunpack.c.l.b16 %v1918
        %v1974 = vunpack.c.h.b16 %v1918
        %v1975 = vunpack.c.l.b16 %v1919
        %v1976 = vunpack.c.h.b16 %v1919
        %v1977 = vunpack.c.l.b16 %v1920
        %v1978 = vunpack.c.h.b16 %v1920
        %v1979 = vunpack.c.l.b16 %v1921
        %v1980 = vunpack.c.h.b16 %v1921
        %v1981 = vunpack.c.l.b16 %v1922
        %v1982 = vunpack.c.h.b16 %v1922
        %v1983 = vunpack.c.l.b16 %v1923
        %v1984 = vunpack.c.h.b16 %v1923
        %v1985 = vunpack.c.l.b16 %v1924
        %v1986 = vunpack.c.h.b16 %v1924
        %v1987 = vunpack.c.l.b16 %v1925
        %v1988 = vunpack.c.h.b16 %v1925
        %v1989 = vunpack.c.l.b16 %v1926
        %v1990 = vunpack.c.h.b16 %v1926
        %v1991 = vpack.c.b16 %v1961, %v1959
        %v1992 = vpack.c.b16 %v1962, %v1960
        %v1993 = vpack.c.b16 %v1965, %v1963
        %v1994 = vpack.c.b16 %v1966, %v1964
        %v1995 = vpack.c.b16 %v1969, %v1967
        %v1996 = vpack.c.b16 %v1970, %v1968
        %v1997 = vpack.c.b16 %v1973, %v1971
        %v1998 = vpack.c.b16 %v1974, %v1972
        %v1999 = vpack.c.b16 %v1977, %v1975
        %v2000 = vpack.c.b16 %v1978, %v1976
        %v2001 = vpack.c.b16 %v1981, %v1979
        %v2002 = vpack.c.b16 %v1982, %v1980
        %v2003 = vpack.c.b16 %v1985, %v1983
        %v2004 = vpack.c.b16 %v1986, %v1984
        %v2005 = vpack.c.b16 %v1989, %v1987
        %v2006 = vpack.c.b16 %v1990, %v1988
        %2023 = vmatprep.subr.bf16.mxu0 %v1992
        %2024 = vmatpush1.bf16.msra.mxu0 %v1991
        %2025 = vmatprep.subr.bf16.mxu0 %v1994
        %2026 = vmatpush1.bf16.msra.mxu0 %v1993
        %2027 = vmatprep.subr.bf16.mxu0 %v1996
        %2028 = vmatpush1.bf16.msra.mxu0 %v1995
        %2029 = vmatprep.subr.bf16.mxu0 %v1998
        %2030 = vmatpush1.bf16.msra.mxu0 %v1997
        %2031 = vmatprep.subr.bf16.mxu0 %v2000
        %2032 = vmatpush1.bf16.msra.mxu0 %v1999
        %2033 = vmatprep.subr.bf16.mxu0 %v2002
        %2034 = vmatpush1.bf16.msra.mxu0 %v2001
        %2035 = vmatprep.subr.bf16.mxu0 %v2004
        %2036 = vmatpush1.bf16.msra.mxu0 %v2003
        %2037 = vmatprep.subr.bf16.mxu0 %v2006
        %2038 = vmatpush1.bf16.msra.mxu0 %v2005
        %2039 = vmatprep.subr.bf16.mxu0 0
        %2040 = vmatpush1.bf16.msra.mxu0 0
        %2041 = vmatprep.subr.bf16.mxu0 0
        %2042 = vmatpush1.bf16.msra.mxu0 0
        %2043 = vmatprep.subr.bf16.mxu0 0
        %2044 = vmatpush1.bf16.msra.mxu0 0
        %2045 = vmatprep.subr.bf16.mxu0 0
        %2046 = vmatpush1.bf16.msra.mxu0 0
        %2047 = vmatprep.subr.bf16.mxu0 0
        %2048 = vmatpush1.bf16.msra.mxu0 0
        %2049 = vmatprep.subr.bf16.mxu0 0
        %2050 = vmatpush1.bf16.msra.mxu0 0
        %2051 = vmatprep.subr.bf16.mxu0 0
        %2052 = vmatpush1.bf16.msra.mxu0 0
        %2053 = vmatprep.subr.bf16.mxu0 0
        %2054 = vmatpush1.bf16.msra.mxu0 0
        %2055 = vmatprep.mubr.bf16.mxu0 0
        %2056 = vmatmul.mubr.bf16.gmra.mrb[0].mxu0 %v1909
        %v2057 = vpop.f32.mrb[0].mxu0
        %v2058 = vadd.f32 0.0, %v2057
        %v2059 = vpop.f32.mrb[0].mxu0
        %v2060 = vadd.f32 0.0, %v2059
        %v2061 = vpop.f32.mrb[0].mxu0
        %v2062 = vadd.f32 0.0, %v2061
        %v2063 = vpop.f32.mrb[0].mxu0
        %v2064 = vadd.f32 0.0, %v2063
        %2065 = vdwg.mxu0
        %v2082 = vunpack.c.l.b16 %v1927
        %v2083 = vunpack.c.h.b16 %v1927
        %v2084 = vunpack.c.l.b16 %v1928
        %v2085 = vunpack.c.h.b16 %v1928
        %v2086 = vunpack.c.l.b16 %v1929
        %v2087 = vunpack.c.h.b16 %v1929
        %v2088 = vunpack.c.l.b16 %v1930
        %v2089 = vunpack.c.h.b16 %v1930
        %v2090 = vunpack.c.l.b16 %v1931
        %v2091 = vunpack.c.h.b16 %v1931
        %v2092 = vunpack.c.l.b16 %v1932
        %v2093 = vunpack.c.h.b16 %v1932
        %v2094 = vunpack.c.l.b16 %v1933
        %v2095 = vunpack.c.h.b16 %v1933
        %v2096 = vunpack.c.l.b16 %v1934
        %v2097 = vunpack.c.h.b16 %v1934
        %v2098 = vunpack.c.l.b16 %v1935
        %v2099 = vunpack.c.h.b16 %v1935
        %v2100 = vunpack.c.l.b16 %v1936
        %v2101 = vunpack.c.h.b16 %v1936
        %v2102 = vunpack.c.l.b16 %v1937
        %v2103 = vunpack.c.h.b16 %v1937
        %v2104 = vunpack.c.l.b16 %v1938
        %v2105 = vunpack.c.h.b16 %v1938
        %v2106 = vunpack.c.l.b16 %v1939
        %v2107 = vunpack.c.h.b16 %v1939
        %v2108 = vunpack.c.l.b16 %v1940
        %v2109 = vunpack.c.h.b16 %v1940
        %v2110 = vunpack.c.l.b16 %v1941
        %v2111 = vunpack.c.h.b16 %v1941
        %v2112 = vunpack.c.l.b16 %v1942
        %v2113 = vunpack.c.h.b16 %v1942
        %v2114 = vpack.c.b16 %v2084, %v2082
        %v2115 = vpack.c.b16 %v2085, %v2083
        %v2116 = vpack.c.b16 %v2088, %v2086
        %v2117 = vpack.c.b16 %v2089, %v2087
        %v2118 = vpack.c.b16 %v2092, %v2090
        %v2119 = vpack.c.b16 %v2093, %v2091
        %v2120 = vpack.c.b16 %v2096, %v2094
        %v2121 = vpack.c.b16 %v2097, %v2095
        %v2122 = vpack.c.b16 %v2100, %v2098
        %v2123 = vpack.c.b16 %v2101, %v2099
        %v2124 = vpack.c.b16 %v2104, %v2102
        %v2125 = vpack.c.b16 %v2105, %v2103
        %v2126 = vpack.c.b16 %v2108, %v2106
        %v2127 = vpack.c.b16 %v2109, %v2107
        %v2128 = vpack.c.b16 %v2112, %v2110
        %v2129 = vpack.c.b16 %v2113, %v2111
        %2146 = vmatprep.subr.bf16.mxu0 %v2115
        %2147 = vmatpush1.bf16.msra.mxu0 %v2114
        %2148 = vmatprep.subr.bf16.mxu0 %v2117
        %2149 = vmatpush1.bf16.msra.mxu0 %v2116
        %2150 = vmatprep.subr.bf16.mxu0 %v2119
        %2151 = vmatpush1.bf16.msra.mxu0 %v2118
        %2152 = vmatprep.subr.bf16.mxu0 %v2121
        %2153 = vmatpush1.bf16.msra.mxu0 %v2120
        %2154 = vmatprep.subr.bf16.mxu0 %v2123
        %2155 = vmatpush1.bf16.msra.mxu0 %v2122
        %2156 = vmatprep.subr.bf16.mxu0 %v2125
        %2157 = vmatpush1.bf16.msra.mxu0 %v2124
        %2158 = vmatprep.subr.bf16.mxu0 %v2127
        %2159 = vmatpush1.bf16.msra.mxu0 %v2126
        %2160 = vmatprep.subr.bf16.mxu0 %v2129
        %2161 = vmatpush1.bf16.msra.mxu0 %v2128
        %2162 = vmatprep.subr.bf16.mxu0 0
        %2163 = vmatpush1.bf16.msra.mxu0 0
        %2164 = vmatprep.subr.bf16.mxu0 0
        %2165 = vmatpush1.bf16.msra.mxu0 0
        %2166 = vmatprep.subr.bf16.mxu0 0
        %2167 = vmatpush1.bf16.msra.mxu0 0
        %2168 = vmatprep.subr.bf16.mxu0 0
        %2169 = vmatpush1.bf16.msra.mxu0 0
        %2170 = vmatprep.subr.bf16.mxu0 0
        %2171 = vmatpush1.bf16.msra.mxu0 0
        %2172 = vmatprep.subr.bf16.mxu0 0
        %2173 = vmatpush1.bf16.msra.mxu0 0
        %2174 = vmatprep.subr.bf16.mxu0 0
        %2175 = vmatpush1.bf16.msra.mxu0 0
        %2176 = vmatprep.subr.bf16.mxu0 0
        %2177 = vmatpush1.bf16.msra.mxu0 0
        %2178 = vmatprep.mubr.bf16.mxu0 0
        %2179 = vmatmul.mubr.bf16.gmra.mrb[0].mxu0 %v1910
        %v2180 = vpop.f32.mrb[0].mxu0
        %v2181 = vadd.f32 0.0, %v2180
        %v2182 = vpop.f32.mrb[0].mxu0
        %v2183 = vadd.f32 0.0, %v2182
        %v2184 = vpop.f32.mrb[0].mxu0
        %v2185 = vadd.f32 0.0, %v2184
        %v2186 = vpop.f32.mrb[0].mxu0
        %v2187 = vadd.f32 0.0, %v2186
        %2188 = vdwg.mxu0
        %v2189 = vadd.f32 %v2058, %v2181
        %v2190 = vadd.f32 %v2060, %v2183
        %v2191 = vadd.f32 %v2062, %v2185
        %v2192 = vadd.f32 %v2064, %v2187
        %v2193 = vadd.f32 %v560, %v2189
        %v2194 = vadd.f32 %v561, %v2190
        %v2195 = vadd.f32 %v562, %v2191
        %v2196 = vadd.f32 %v563, %v2192
        %v2197 = vmul.f32 %v2193, %v2193
        %v2198 = vmul.f32 %v2194, %v2194
        %v2199 = vmul.f32 %v2195, %v2195
        %v2200 = vmul.f32 %v2196, %v2196
        %v2201 = vadd.f32 %v2197, %v2198
        %2202 = vadd.xlane.f32.xlu0 %v2201
        %v2203 = vpop.xlane.xlu0 %2202
        %v2204 = vadd.f32 %v2199, %v2200
        %2205 = vadd.xlane.f32.xlu0 %v2204
        %v2206 = vpop.xlane.xlu0 %2205
        %v2207 = vmul.f32 %v2203, %v579
        %v2208 = vmul.f32 %v2206, %v579
        %v2209 = vadd.f32 %v2207, 1e-06
        %v2210 = vadd.f32 %v2208, 1e-06
        %v2211 = vrsqrt.pop %v2209
        %v2212 = vrsqrt.pop %v2210
        %v2213 = vmul.f32 %v2193, %v2211
        %v2214 = vmul.f32 %v2194, %v2211
        %v2215 = vmul.f32 %v2195, %v2212
        %v2216 = vmul.f32 %v2196, %v2212
        %v2217 = vlaneseq
        %v2218 = vshrl.u32 %v2217, 7
        %v2219 = vsub.s32 1, %v2218
        %v2220 = vrot.slane %v564, %v2219
        %v2221 = vlaneseq
        %v2222 = vshrl.u32 %v2221, 7
        %v2223 = vsub.s32 3, %v2222
        %v2224 = vrot.slane %v564, %v2223
        %v2227 = vlaneseq
        %v2228 = vshrl.u32 %v2227, 7
        %v2229 = vsub.s32 1, %v2228
        %v2230 = vrot.slane %v2220, %v2229
        %v2231 = vlaneseq
        %v2232 = vshrl.u32 %v2231, 7
        %v2233 = vsub.s32 1, %v2232
        %v2234 = vrot.slane %v2224, %v2233
        %v2235 = vmul.f32 %v2213, %v2230
        %v2236 = vmul.f32 %v2214, %v2234
        %v2237 = vmul.f32 %v2215, %v2230
        %v2238 = vmul.f32 %v2216, %v2234
        %v2239 = vpack.c.bf16 %v2237, %v2235
        %v2240 = vpack.c.bf16 %v2238, %v2236
        %v2241 = vld [vmem:[%s488] sm:$0xff]
        %v2242 = vld [vmem:[%s488 + $0x8] sm:$0xff]
        %v2243 = vld [vmem:[%s488 + $0x10] sm:$0xff]
        %v2244 = vld [vmem:[%s488 + $0x18] sm:$0xff]
        %v2245 = vld [vmem:[%s488 + $0x20] sm:$0xff]
        %v2246 = vld [vmem:[%s488 + $0x28] sm:$0xff]
        %v2247 = vld [vmem:[%s488 + $0x30] sm:$0xff]
        %v2248 = vld [vmem:[%s488 + $0x38] sm:$0xff]
        %v2249 = vld [vmem:[%s488 + $0x40] sm:$0xff]
        %v2250 = vld [vmem:[%s488 + $0x48] sm:$0xff]
        %v2251 = vld [vmem:[%s488 + $0x50] sm:$0xff]
        %v2252 = vld [vmem:[%s488 + $0x58] sm:$0xff]
        %v2253 = vld [vmem:[%s488 + $0x60] sm:$0xff]
        %v2254 = vld [vmem:[%s488 + $0x68] sm:$0xff]
        %v2255 = vld [vmem:[%s488 + $0x70] sm:$0xff]
        %v2256 = vld [vmem:[%s488 + $0x78] sm:$0xff]
        %v2257 = vld [vmem:[%s488 + $0x80] sm:$0xff]
        %v2258 = vld [vmem:[%s488 + $0x88] sm:$0xff]
        %v2259 = vld [vmem:[%s488 + $0x90] sm:$0xff]
        %v2260 = vld [vmem:[%s488 + $0x98] sm:$0xff]
        %v2261 = vld [vmem:[%s488 + $0xa0] sm:$0xff]
        %v2262 = vld [vmem:[%s488 + $0xa8] sm:$0xff]
        %v2263 = vld [vmem:[%s488 + $0xb0] sm:$0xff]
        %v2264 = vld [vmem:[%s488 + $0xb8] sm:$0xff]
        %v2265 = vld [vmem:[%s488 + $0xc0] sm:$0xff]
        %v2266 = vld [vmem:[%s488 + $0xc8] sm:$0xff]
        %v2267 = vld [vmem:[%s488 + $0xd0] sm:$0xff]
        %v2268 = vld [vmem:[%s488 + $0xd8] sm:$0xff]
        %v2269 = vld [vmem:[%s488 + $0xe0] sm:$0xff]
        %v2270 = vld [vmem:[%s488 + $0xe8] sm:$0xff]
        %v2271 = vld [vmem:[%s488 + $0xf0] sm:$0xff]
        %v2272 = vld [vmem:[%s488 + $0xf8] sm:$0xff]
        %v2273 = vld [vmem:[%s488 + $0x100] sm:$0xff]
        %v2274 = vld [vmem:[%s488 + $0x108] sm:$0xff]
        %v2275 = vld [vmem:[%s488 + $0x110] sm:$0xff]
        %v2276 = vld [vmem:[%s488 + $0x118] sm:$0xff]
        %v2277 = vld [vmem:[%s488 + $0x120] sm:$0xff]
        %v2278 = vld [vmem:[%s488 + $0x128] sm:$0xff]
        %v2279 = vld [vmem:[%s488 + $0x130] sm:$0xff]
        %v2280 = vld [vmem:[%s488 + $0x138] sm:$0xff]
        %v2281 = vld [vmem:[%s488 + $0x140] sm:$0xff]
        %v2282 = vld [vmem:[%s488 + $0x148] sm:$0xff]
        %v2283 = vld [vmem:[%s488 + $0x150] sm:$0xff]
        %v2284 = vld [vmem:[%s488 + $0x158] sm:$0xff]
        %v2285 = vld [vmem:[%s488 + $0x160] sm:$0xff]
        %v2286 = vld [vmem:[%s488 + $0x168] sm:$0xff]
        %v2287 = vld [vmem:[%s488 + $0x170] sm:$0xff]
        %v2288 = vld [vmem:[%s488 + $0x178] sm:$0xff]
        %v2289 = vld [vmem:[%s488 + $0x180] sm:$0xff]
        %v2290 = vld [vmem:[%s488 + $0x188] sm:$0xff]
        %v2291 = vld [vmem:[%s488 + $0x190] sm:$0xff]
        %v2292 = vld [vmem:[%s488 + $0x198] sm:$0xff]
        %v2293 = vld [vmem:[%s488 + $0x1a0] sm:$0xff]
        %v2294 = vld [vmem:[%s488 + $0x1a8] sm:$0xff]
        %v2295 = vld [vmem:[%s488 + $0x1b0] sm:$0xff]
        %v2296 = vld [vmem:[%s488 + $0x1b8] sm:$0xff]
        %v2297 = vld [vmem:[%s488 + $0x1c0] sm:$0xff]
        %v2298 = vld [vmem:[%s488 + $0x1c8] sm:$0xff]
        %v2299 = vld [vmem:[%s488 + $0x1d0] sm:$0xff]
        %v2300 = vld [vmem:[%s488 + $0x1d8] sm:$0xff]
        %v2301 = vld [vmem:[%s488 + $0x1e0] sm:$0xff]
        %v2302 = vld [vmem:[%s488 + $0x1e8] sm:$0xff]
        %v2303 = vld [vmem:[%s488 + $0x1f0] sm:$0xff]
        %v2304 = vld [vmem:[%s488 + $0x1f8] sm:$0xff]
        %v2305 = vld [vmem:[%s488 + $0x200] sm:$0xff]
        %v2306 = vld [vmem:[%s488 + $0x208] sm:$0xff]
        %v2307 = vld [vmem:[%s488 + $0x210] sm:$0xff]
        %v2308 = vld [vmem:[%s488 + $0x218] sm:$0xff]
        %v2309 = vld [vmem:[%s488 + $0x220] sm:$0xff]
        %v2310 = vld [vmem:[%s488 + $0x228] sm:$0xff]
        %v2311 = vld [vmem:[%s488 + $0x230] sm:$0xff]
        %v2312 = vld [vmem:[%s488 + $0x238] sm:$0xff]
        %v2313 = vld [vmem:[%s488 + $0x240] sm:$0xff]
        %v2314 = vld [vmem:[%s488 + $0x248] sm:$0xff]
        %v2315 = vld [vmem:[%s488 + $0x250] sm:$0xff]
        %v2316 = vld [vmem:[%s488 + $0x258] sm:$0xff]
        %v2317 = vld [vmem:[%s488 + $0x260] sm:$0xff]
        %v2318 = vld [vmem:[%s488 + $0x268] sm:$0xff]
        %v2319 = vld [vmem:[%s488 + $0x270] sm:$0xff]
        %v2320 = vld [vmem:[%s488 + $0x278] sm:$0xff]
        %v2321 = vld [vmem:[%s488 + $0x280] sm:$0xff]
        %v2322 = vld [vmem:[%s488 + $0x288] sm:$0xff]
        %v2323 = vld [vmem:[%s488 + $0x290] sm:$0xff]
        %v2324 = vld [vmem:[%s488 + $0x298] sm:$0xff]
        %v2325 = vld [vmem:[%s488 + $0x2a0] sm:$0xff]
        %v2326 = vld [vmem:[%s488 + $0x2a8] sm:$0xff]
        %v2327 = vld [vmem:[%s488 + $0x2b0] sm:$0xff]
        %v2328 = vld [vmem:[%s488 + $0x2b8] sm:$0xff]
        %v2329 = vld [vmem:[%s488 + $0x2c0] sm:$0xff]
        %v2330 = vld [vmem:[%s488 + $0x2c8] sm:$0xff]
        %v2331 = vld [vmem:[%s488 + $0x2d0] sm:$0xff]
        %v2332 = vld [vmem:[%s488 + $0x2d8] sm:$0xff]
        %v2333 = vld [vmem:[%s488 + $0x2e0] sm:$0xff]
        %v2334 = vld [vmem:[%s488 + $0x2e8] sm:$0xff]
        %v2335 = vld [vmem:[%s488 + $0x2f0] sm:$0xff]
        %v2336 = vld [vmem:[%s488 + $0x2f8] sm:$0xff]
        %v2337 = vld [vmem:[%s488 + $0x300] sm:$0xff]
        %v2338 = vld [vmem:[%s488 + $0x308] sm:$0xff]
        %v2339 = vld [vmem:[%s488 + $0x310] sm:$0xff]
        %v2340 = vld [vmem:[%s488 + $0x318] sm:$0xff]
        %v2341 = vld [vmem:[%s488 + $0x320] sm:$0xff]
        %v2342 = vld [vmem:[%s488 + $0x328] sm:$0xff]
        %v2343 = vld [vmem:[%s488 + $0x330] sm:$0xff]
        %v2344 = vld [vmem:[%s488 + $0x338] sm:$0xff]
        %v2345 = vld [vmem:[%s488 + $0x340] sm:$0xff]
        %v2346 = vld [vmem:[%s488 + $0x348] sm:$0xff]
        %v2347 = vld [vmem:[%s488 + $0x350] sm:$0xff]
        %v2348 = vld [vmem:[%s488 + $0x358] sm:$0xff]
        %v2349 = vld [vmem:[%s488 + $0x360] sm:$0xff]
        %v2350 = vld [vmem:[%s488 + $0x368] sm:$0xff]
        %v2351 = vld [vmem:[%s488 + $0x370] sm:$0xff]
        %v2352 = vld [vmem:[%s488 + $0x378] sm:$0xff]
        %v2353 = vld [vmem:[%s488 + $0x380] sm:$0xff]
        %v2354 = vld [vmem:[%s488 + $0x388] sm:$0xff]
        %v2355 = vld [vmem:[%s488 + $0x390] sm:$0xff]
        %v2356 = vld [vmem:[%s488 + $0x398] sm:$0xff]
        %v2357 = vld [vmem:[%s488 + $0x3a0] sm:$0xff]
        %v2358 = vld [vmem:[%s488 + $0x3a8] sm:$0xff]
        %v2359 = vld [vmem:[%s488 + $0x3b0] sm:$0xff]
        %v2360 = vld [vmem:[%s488 + $0x3b8] sm:$0xff]
        %v2361 = vld [vmem:[%s488 + $0x3c0] sm:$0xff]
        %v2362 = vld [vmem:[%s488 + $0x3c8] sm:$0xff]
        %v2363 = vld [vmem:[%s488 + $0x3d0] sm:$0xff]
        %v2364 = vld [vmem:[%s488 + $0x3d8] sm:$0xff]
        %v2365 = vld [vmem:[%s488 + $0x3e0] sm:$0xff]
        %v2366 = vld [vmem:[%s488 + $0x3e8] sm:$0xff]
        %v2367 = vld [vmem:[%s488 + $0x3f0] sm:$0xff]
        %v2368 = vld [vmem:[%s488 + $0x3f8] sm:$0xff]
        %v2497 = vunpack.c.l.b16 %v2241
        %v2498 = vunpack.c.h.b16 %v2241
        %v2499 = vunpack.c.l.b16 %v2242
        %v2500 = vunpack.c.h.b16 %v2242
        %v2501 = vunpack.c.l.b16 %v2243
        %v2502 = vunpack.c.h.b16 %v2243
        %v2503 = vunpack.c.l.b16 %v2244
        %v2504 = vunpack.c.h.b16 %v2244
        %v2505 = vunpack.c.l.b16 %v2245
        %v2506 = vunpack.c.h.b16 %v2245
        %v2507 = vunpack.c.l.b16 %v2246
        %v2508 = vunpack.c.h.b16 %v2246
        %v2509 = vunpack.c.l.b16 %v2247
        %v2510 = vunpack.c.h.b16 %v2247
        %v2511 = vunpack.c.l.b16 %v2248
        %v2512 = vunpack.c.h.b16 %v2248
        %v2513 = vunpack.c.l.b16 %v2249
        %v2514 = vunpack.c.h.b16 %v2249
        %v2515 = vunpack.c.l.b16 %v2250
        %v2516 = vunpack.c.h.b16 %v2250
        %v2517 = vunpack.c.l.b16 %v2251
        %v2518 = vunpack.c.h.b16 %v2251
        %v2519 = vunpack.c.l.b16 %v2252
        %v2520 = vunpack.c.h.b16 %v2252
        %v2521 = vunpack.c.l.b16 %v2253
        %v2522 = vunpack.c.h.b16 %v2253
        %v2523 = vunpack.c.l.b16 %v2254
        %v2524 = vunpack.c.h.b16 %v2254
        %v2525 = vunpack.c.l.b16 %v2255
        %v2526 = vunpack.c.h.b16 %v2255
        %v2527 = vunpack.c.l.b16 %v2256
        %v2528 = vunpack.c.h.b16 %v2256
        %v2529 = vunpack.c.l.b16 %v2257
        %v2530 = vunpack.c.h.b16 %v2257
        %v2531 = vunpack.c.l.b16 %v2258
        %v2532 = vunpack.c.h.b16 %v2258
        %v2533 = vunpack.c.l.b16 %v2259
        %v2534 = vunpack.c.h.b16 %v2259
        %v2535 = vunpack.c.l.b16 %v2260
        %v2536 = vunpack.c.h.b16 %v2260
        %v2537 = vunpack.c.l.b16 %v2261
        %v2538 = vunpack.c.h.b16 %v2261
        %v2539 = vunpack.c.l.b16 %v2262
        %v2540 = vunpack.c.h.b16 %v2262
        %v2541 = vunpack.c.l.b16 %v2263
        %v2542 = vunpack.c.h.b16 %v2263
        %v2543 = vunpack.c.l.b16 %v2264
        %v2544 = vunpack.c.h.b16 %v2264
        %v2545 = vunpack.c.l.b16 %v2265
        %v2546 = vunpack.c.h.b16 %v2265
        %v2547 = vunpack.c.l.b16 %v2266
        %v2548 = vunpack.c.h.b16 %v2266
        %v2549 = vunpack.c.l.b16 %v2267
        %v2550 = vunpack.c.h.b16 %v2267
        %v2551 = vunpack.c.l.b16 %v2268
        %v2552 = vunpack.c.h.b16 %v2268
        %v2553 = vunpack.c.l.b16 %v2269
        %v2554 = vunpack.c.h.b16 %v2269
        %v2555 = vunpack.c.l.b16 %v2270
        %v2556 = vunpack.c.h.b16 %v2270
        %v2557 = vunpack.c.l.b16 %v2271
        %v2558 = vunpack.c.h.b16 %v2271
        %v2559 = vunpack.c.l.b16 %v2272
        %v2560 = vunpack.c.h.b16 %v2272
        %v2561 = vunpack.c.l.b16 %v2273
        %v2562 = vunpack.c.h.b16 %v2273
        %v2563 = vunpack.c.l.b16 %v2274
        %v2564 = vunpack.c.h.b16 %v2274
        %v2565 = vunpack.c.l.b16 %v2275
        %v2566 = vunpack.c.h.b16 %v2275
        %v2567 = vunpack.c.l.b16 %v2276
        %v2568 = vunpack.c.h.b16 %v2276
        %v2569 = vunpack.c.l.b16 %v2277
        %v2570 = vunpack.c.h.b16 %v2277
        %v2571 = vunpack.c.l.b16 %v2278
        %v2572 = vunpack.c.h.b16 %v2278
        %v2573 = vunpack.c.l.b16 %v2279
        %v2574 = vunpack.c.h.b16 %v2279
        %v2575 = vunpack.c.l.b16 %v2280
        %v2576 = vunpack.c.h.b16 %v2280
        %v2577 = vunpack.c.l.b16 %v2281
        %v2578 = vunpack.c.h.b16 %v2281
        %v2579 = vunpack.c.l.b16 %v2282
        %v2580 = vunpack.c.h.b16 %v2282
        %v2581 = vunpack.c.l.b16 %v2283
        %v2582 = vunpack.c.h.b16 %v2283
        %v2583 = vunpack.c.l.b16 %v2284
        %v2584 = vunpack.c.h.b16 %v2284
        %v2585 = vunpack.c.l.b16 %v2285
        %v2586 = vunpack.c.h.b16 %v2285
        %v2587 = vunpack.c.l.b16 %v2286
        %v2588 = vunpack.c.h.b16 %v2286
        %v2589 = vunpack.c.l.b16 %v2287
        %v2590 = vunpack.c.h.b16 %v2287
        %v2591 = vunpack.c.l.b16 %v2288
        %v2592 = vunpack.c.h.b16 %v2288
        %v2593 = vunpack.c.l.b16 %v2289
        %v2594 = vunpack.c.h.b16 %v2289
        %v2595 = vunpack.c.l.b16 %v2290
        %v2596 = vunpack.c.h.b16 %v2290
        %v2597 = vunpack.c.l.b16 %v2291
        %v2598 = vunpack.c.h.b16 %v2291
        %v2599 = vunpack.c.l.b16 %v2292
        %v2600 = vunpack.c.h.b16 %v2292
        %v2601 = vunpack.c.l.b16 %v2293
        %v2602 = vunpack.c.h.b16 %v2293
        %v2603 = vunpack.c.l.b16 %v2294
        %v2604 = vunpack.c.h.b16 %v2294
        %v2605 = vunpack.c.l.b16 %v2295
        %v2606 = vunpack.c.h.b16 %v2295
        %v2607 = vunpack.c.l.b16 %v2296
        %v2608 = vunpack.c.h.b16 %v2296
        %v2609 = vunpack.c.l.b16 %v2297
        %v2610 = vunpack.c.h.b16 %v2297
        %v2611 = vunpack.c.l.b16 %v2298
        %v2612 = vunpack.c.h.b16 %v2298
        %v2613 = vunpack.c.l.b16 %v2299
        %v2614 = vunpack.c.h.b16 %v2299
        %v2615 = vunpack.c.l.b16 %v2300
        %v2616 = vunpack.c.h.b16 %v2300
        %v2617 = vunpack.c.l.b16 %v2301
        %v2618 = vunpack.c.h.b16 %v2301
        %v2619 = vunpack.c.l.b16 %v2302
        %v2620 = vunpack.c.h.b16 %v2302
        %v2621 = vunpack.c.l.b16 %v2303
        %v2622 = vunpack.c.h.b16 %v2303
        %v2623 = vunpack.c.l.b16 %v2304
        %v2624 = vunpack.c.h.b16 %v2304
        %v2625 = vunpack.c.l.b16 %v2305
        %v2626 = vunpack.c.h.b16 %v2305
        %v2627 = vunpack.c.l.b16 %v2306
        %v2628 = vunpack.c.h.b16 %v2306
        %v2629 = vunpack.c.l.b16 %v2307
        %v2630 = vunpack.c.h.b16 %v2307
        %v2631 = vunpack.c.l.b16 %v2308
        %v2632 = vunpack.c.h.b16 %v2308
        %v2633 = vunpack.c.l.b16 %v2309
        %v2634 = vunpack.c.h.b16 %v2309
        %v2635 = vunpack.c.l.b16 %v2310
        %v2636 = vunpack.c.h.b16 %v2310
        %v2637 = vunpack.c.l.b16 %v2311
        %v2638 = vunpack.c.h.b16 %v2311
        %v2639 = vunpack.c.l.b16 %v2312
        %v2640 = vunpack.c.h.b16 %v2312
        %v2641 = vunpack.c.l.b16 %v2313
        %v2642 = vunpack.c.h.b16 %v2313
        %v2643 = vunpack.c.l.b16 %v2314
        %v2644 = vunpack.c.h.b16 %v2314
        %v2645 = vunpack.c.l.b16 %v2315
        %v2646 = vunpack.c.h.b16 %v2315
        %v2647 = vunpack.c.l.b16 %v2316
        %v2648 = vunpack.c.h.b16 %v2316
        %v2649 = vunpack.c.l.b16 %v2317
        %v2650 = vunpack.c.h.b16 %v2317
        %v2651 = vunpack.c.l.b16 %v2318
        %v2652 = vunpack.c.h.b16 %v2318
        %v2653 = vunpack.c.l.b16 %v2319
        %v2654 = vunpack.c.h.b16 %v2319
        %v2655 = vunpack.c.l.b16 %v2320
        %v2656 = vunpack.c.h.b16 %v2320
        %v2657 = vunpack.c.l.b16 %v2321
        %v2658 = vunpack.c.h.b16 %v2321
        %v2659 = vunpack.c.l.b16 %v2322
        %v2660 = vunpack.c.h.b16 %v2322
        %v2661 = vunpack.c.l.b16 %v2323
        %v2662 = vunpack.c.h.b16 %v2323
        %v2663 = vunpack.c.l.b16 %v2324
        %v2664 = vunpack.c.h.b16 %v2324
        %v2665 = vunpack.c.l.b16 %v2325
        %v2666 = vunpack.c.h.b16 %v2325
        %v2667 = vunpack.c.l.b16 %v2326
        %v2668 = vunpack.c.h.b16 %v2326
        %v2669 = vunpack.c.l.b16 %v2327
        %v2670 = vunpack.c.h.b16 %v2327
        %v2671 = vunpack.c.l.b16 %v2328
        %v2672 = vunpack.c.h.b16 %v2328
        %v2673 = vunpack.c.l.b16 %v2329
        %v2674 = vunpack.c.h.b16 %v2329
        %v2675 = vunpack.c.l.b16 %v2330
        %v2676 = vunpack.c.h.b16 %v2330
        %v2677 = vunpack.c.l.b16 %v2331
        %v2678 = vunpack.c.h.b16 %v2331
        %v2679 = vunpack.c.l.b16 %v2332
        %v2680 = vunpack.c.h.b16 %v2332
        %v2681 = vunpack.c.l.b16 %v2333
        %v2682 = vunpack.c.h.b16 %v2333
        %v2683 = vunpack.c.l.b16 %v2334
        %v2684 = vunpack.c.h.b16 %v2334
        %v2685 = vunpack.c.l.b16 %v2335
        %v2686 = vunpack.c.h.b16 %v2335
        %v2687 = vunpack.c.l.b16 %v2336
        %v2688 = vunpack.c.h.b16 %v2336
        %v2689 = vunpack.c.l.b16 %v2337
        %v2690 = vunpack.c.h.b16 %v2337
        %v2691 = vunpack.c.l.b16 %v2338
        %v2692 = vunpack.c.h.b16 %v2338
        %v2693 = vunpack.c.l.b16 %v2339
        %v2694 = vunpack.c.h.b16 %v2339
        %v2695 = vunpack.c.l.b16 %v2340
        %v2696 = vunpack.c.h.b16 %v2340
        %v2697 = vunpack.c.l.b16 %v2341
        %v2698 = vunpack.c.h.b16 %v2341
        %v2699 = vunpack.c.l.b16 %v2342
        %v2700 = vunpack.c.h.b16 %v2342
        %v2701 = vunpack.c.l.b16 %v2343
        %v2702 = vunpack.c.h.b16 %v2343
        %v2703 = vunpack.c.l.b16 %v2344
        %v2704 = vunpack.c.h.b16 %v2344
        %v2705 = vunpack.c.l.b16 %v2345
        %v2706 = vunpack.c.h.b16 %v2345
        %v2707 = vunpack.c.l.b16 %v2346
        %v2708 = vunpack.c.h.b16 %v2346
        %v2709 = vunpack.c.l.b16 %v2347
        %v2710 = vunpack.c.h.b16 %v2347
        %v2711 = vunpack.c.l.b16 %v2348
        %v2712 = vunpack.c.h.b16 %v2348
        %v2713 = vunpack.c.l.b16 %v2349
        %v2714 = vunpack.c.h.b16 %v2349
        %v2715 = vunpack.c.l.b16 %v2350
        %v2716 = vunpack.c.h.b16 %v2350
        %v2717 = vunpack.c.l.b16 %v2351
        %v2718 = vunpack.c.h.b16 %v2351
        %v2719 = vunpack.c.l.b16 %v2352
        %v2720 = vunpack.c.h.b16 %v2352
        %v2721 = vunpack.c.l.b16 %v2353
        %v2722 = vunpack.c.h.b16 %v2353
        %v2723 = vunpack.c.l.b16 %v2354
        %v2724 = vunpack.c.h.b16 %v2354
        %v2725 = vunpack.c.l.b16 %v2355
        %v2726 = vunpack.c.h.b16 %v2355
        %v2727 = vunpack.c.l.b16 %v2356
        %v2728 = vunpack.c.h.b16 %v2356
        %v2729 = vunpack.c.l.b16 %v2357
        %v2730 = vunpack.c.h.b16 %v2357
        %v2731 = vunpack.c.l.b16 %v2358
        %v2732 = vunpack.c.h.b16 %v2358
        %v2733 = vunpack.c.l.b16 %v2359
        %v2734 = vunpack.c.h.b16 %v2359
        %v2735 = vunpack.c.l.b16 %v2360
        %v2736 = vunpack.c.h.b16 %v2360
        %v2737 = vunpack.c.l.b16 %v2361
        %v2738 = vunpack.c.h.b16 %v2361
        %v2739 = vunpack.c.l.b16 %v2362
        %v2740 = vunpack.c.h.b16 %v2362
        %v2741 = vunpack.c.l.b16 %v2363
        %v2742 = vunpack.c.h.b16 %v2363
        %v2743 = vunpack.c.l.b16 %v2364
        %v2744 = vunpack.c.h.b16 %v2364
        %v2745 = vunpack.c.l.b16 %v2365
        %v2746 = vunpack.c.h.b16 %v2365
        %v2747 = vunpack.c.l.b16 %v2366
        %v2748 = vunpack.c.h.b16 %v2366
        %v2749 = vunpack.c.l.b16 %v2367
        %v2750 = vunpack.c.h.b16 %v2367
        %v2751 = vunpack.c.l.b16 %v2368
        %v2752 = vunpack.c.h.b16 %v2368
        %v2753 = vpack.c.b16 %v2505, %v2497
        %v2754 = vpack.c.b16 %v2506, %v2498
        %v2755 = vpack.c.b16 %v2507, %v2499
        %v2756 = vpack.c.b16 %v2508, %v2500
        %v2757 = vpack.c.b16 %v2509, %v2501
        %v2758 = vpack.c.b16 %v2510, %v2502
        %v2759 = vpack.c.b16 %v2511, %v2503
        %v2760 = vpack.c.b16 %v2512, %v2504
        %v2761 = vpack.c.b16 %v2521, %v2513
        %v2762 = vpack.c.b16 %v2522, %v2514
        %v2763 = vpack.c.b16 %v2523, %v2515
        %v2764 = vpack.c.b16 %v2524, %v2516
        %v2765 = vpack.c.b16 %v2525, %v2517
        %v2766 = vpack.c.b16 %v2526, %v2518
        %v2767 = vpack.c.b16 %v2527, %v2519
        %v2768 = vpack.c.b16 %v2528, %v2520
        %v2769 = vpack.c.b16 %v2537, %v2529
        %v2770 = vpack.c.b16 %v2538, %v2530
        %v2771 = vpack.c.b16 %v2539, %v2531
        %v2772 = vpack.c.b16 %v2540, %v2532
        %v2773 = vpack.c.b16 %v2541, %v2533
        %v2774 = vpack.c.b16 %v2542, %v2534
        %v2775 = vpack.c.b16 %v2543, %v2535
        %v2776 = vpack.c.b16 %v2544, %v2536
        %v2777 = vpack.c.b16 %v2553, %v2545
        %v2778 = vpack.c.b16 %v2554, %v2546
        %v2779 = vpack.c.b16 %v2555, %v2547
        %v2780 = vpack.c.b16 %v2556, %v2548
        %v2781 = vpack.c.b16 %v2557, %v2549
        %v2782 = vpack.c.b16 %v2558, %v2550
        %v2783 = vpack.c.b16 %v2559, %v2551
        %v2784 = vpack.c.b16 %v2560, %v2552
        %v2785 = vpack.c.b16 %v2569, %v2561
        %v2786 = vpack.c.b16 %v2570, %v2562
        %v2787 = vpack.c.b16 %v2571, %v2563
        %v2788 = vpack.c.b16 %v2572, %v2564
        %v2789 = vpack.c.b16 %v2573, %v2565
        %v2790 = vpack.c.b16 %v2574, %v2566
        %v2791 = vpack.c.b16 %v2575, %v2567
        %v2792 = vpack.c.b16 %v2576, %v2568
        %v2793 = vpack.c.b16 %v2585, %v2577
        %v2794 = vpack.c.b16 %v2586, %v2578
        %v2795 = vpack.c.b16 %v2587, %v2579
        %v2796 = vpack.c.b16 %v2588, %v2580
        %v2797 = vpack.c.b16 %v2589, %v2581
        %v2798 = vpack.c.b16 %v2590, %v2582
        %v2799 = vpack.c.b16 %v2591, %v2583
        %v2800 = vpack.c.b16 %v2592, %v2584
        %v2801 = vpack.c.b16 %v2601, %v2593
        %v2802 = vpack.c.b16 %v2602, %v2594
        %v2803 = vpack.c.b16 %v2603, %v2595
        %v2804 = vpack.c.b16 %v2604, %v2596
        %v2805 = vpack.c.b16 %v2605, %v2597
        %v2806 = vpack.c.b16 %v2606, %v2598
        %v2807 = vpack.c.b16 %v2607, %v2599
        %v2808 = vpack.c.b16 %v2608, %v2600
        %v2809 = vpack.c.b16 %v2617, %v2609
        %v2810 = vpack.c.b16 %v2618, %v2610
        %v2811 = vpack.c.b16 %v2619, %v2611
        %v2812 = vpack.c.b16 %v2620, %v2612
        %v2813 = vpack.c.b16 %v2621, %v2613
        %v2814 = vpack.c.b16 %v2622, %v2614
        %v2815 = vpack.c.b16 %v2623, %v2615
        %v2816 = vpack.c.b16 %v2624, %v2616
        %v2817 = vpack.c.b16 %v2633, %v2625
        %v2818 = vpack.c.b16 %v2634, %v2626
        %v2819 = vpack.c.b16 %v2635, %v2627
        %v2820 = vpack.c.b16 %v2636, %v2628
        %v2821 = vpack.c.b16 %v2637, %v2629
        %v2822 = vpack.c.b16 %v2638, %v2630
        %v2823 = vpack.c.b16 %v2639, %v2631
        %v2824 = vpack.c.b16 %v2640, %v2632
        %v2825 = vpack.c.b16 %v2649, %v2641
        %v2826 = vpack.c.b16 %v2650, %v2642
        %v2827 = vpack.c.b16 %v2651, %v2643
        %v2828 = vpack.c.b16 %v2652, %v2644
        %v2829 = vpack.c.b16 %v2653, %v2645
        %v2830 = vpack.c.b16 %v2654, %v2646
        %v2831 = vpack.c.b16 %v2655, %v2647
        %v2832 = vpack.c.b16 %v2656, %v2648
        %v2833 = vpack.c.b16 %v2665, %v2657
        %v2834 = vpack.c.b16 %v2666, %v2658
        %v2835 = vpack.c.b16 %v2667, %v2659
        %v2836 = vpack.c.b16 %v2668, %v2660
        %v2837 = vpack.c.b16 %v2669, %v2661
        %v2838 = vpack.c.b16 %v2670, %v2662
        %v2839 = vpack.c.b16 %v2671, %v2663
        %v2840 = vpack.c.b16 %v2672, %v2664
        %v2841 = vpack.c.b16 %v2681, %v2673
        %v2842 = vpack.c.b16 %v2682, %v2674
        %v2843 = vpack.c.b16 %v2683, %v2675
        %v2844 = vpack.c.b16 %v2684, %v2676
        %v2845 = vpack.c.b16 %v2685, %v2677
        %v2846 = vpack.c.b16 %v2686, %v2678
        %v2847 = vpack.c.b16 %v2687, %v2679
        %v2848 = vpack.c.b16 %v2688, %v2680
        %v2849 = vpack.c.b16 %v2697, %v2689
        %v2850 = vpack.c.b16 %v2698, %v2690
        %v2851 = vpack.c.b16 %v2699, %v2691
        %v2852 = vpack.c.b16 %v2700, %v2692
        %v2853 = vpack.c.b16 %v2701, %v2693
        %v2854 = vpack.c.b16 %v2702, %v2694
        %v2855 = vpack.c.b16 %v2703, %v2695
        %v2856 = vpack.c.b16 %v2704, %v2696
        %v2857 = vpack.c.b16 %v2713, %v2705
        %v2858 = vpack.c.b16 %v2714, %v2706
        %v2859 = vpack.c.b16 %v2715, %v2707
        %v2860 = vpack.c.b16 %v2716, %v2708
        %v2861 = vpack.c.b16 %v2717, %v2709
        %v2862 = vpack.c.b16 %v2718, %v2710
        %v2863 = vpack.c.b16 %v2719, %v2711
        %v2864 = vpack.c.b16 %v2720, %v2712
        %v2865 = vpack.c.b16 %v2729, %v2721
        %v2866 = vpack.c.b16 %v2730, %v2722
        %v2867 = vpack.c.b16 %v2731, %v2723
        %v2868 = vpack.c.b16 %v2732, %v2724
        %v2869 = vpack.c.b16 %v2733, %v2725
        %v2870 = vpack.c.b16 %v2734, %v2726
        %v2871 = vpack.c.b16 %v2735, %v2727
        %v2872 = vpack.c.b16 %v2736, %v2728
        %v2873 = vpack.c.b16 %v2745, %v2737
        %v2874 = vpack.c.b16 %v2746, %v2738
        %v2875 = vpack.c.b16 %v2747, %v2739
        %v2876 = vpack.c.b16 %v2748, %v2740
        %v2877 = vpack.c.b16 %v2749, %v2741
        %v2878 = vpack.c.b16 %v2750, %v2742
        %v2879 = vpack.c.b16 %v2751, %v2743
        %v2880 = vpack.c.b16 %v2752, %v2744
        %3009 = vmatprep.subr.bf16.mxu0 %v2754
        %3010 = vmatpush1.bf16.msra.mxu0 %v2753
        %3011 = vmatprep.subr.bf16.mxu0 %v2762
        %3012 = vmatpush1.bf16.msra.mxu0 %v2761
        %3013 = vmatprep.subr.bf16.mxu0 %v2770
        %3014 = vmatpush1.bf16.msra.mxu0 %v2769
        %3015 = vmatprep.subr.bf16.mxu0 %v2778
        %3016 = vmatpush1.bf16.msra.mxu0 %v2777
        %3017 = vmatprep.subr.bf16.mxu0 %v2786
        %3018 = vmatpush1.bf16.msra.mxu0 %v2785
        %3019 = vmatprep.subr.bf16.mxu0 %v2794
        %3020 = vmatpush1.bf16.msra.mxu0 %v2793
        %3021 = vmatprep.subr.bf16.mxu0 %v2802
        %3022 = vmatpush1.bf16.msra.mxu0 %v2801
        %3023 = vmatprep.subr.bf16.mxu0 %v2810
        %3024 = vmatpush1.bf16.msra.mxu0 %v2809
        %3025 = vmatprep.subr.bf16.mxu0 %v2818
        %3026 = vmatpush1.bf16.msra.mxu0 %v2817
        %3027 = vmatprep.subr.bf16.mxu0 %v2826
        %3028 = vmatpush1.bf16.msra.mxu0 %v2825
        %3029 = vmatprep.subr.bf16.mxu0 %v2834
        %3030 = vmatpush1.bf16.msra.mxu0 %v2833
        %3031 = vmatprep.subr.bf16.mxu0 %v2842
        %3032 = vmatpush1.bf16.msra.mxu0 %v2841
        %3033 = vmatprep.subr.bf16.mxu0 %v2850
        %3034 = vmatpush1.bf16.msra.mxu0 %v2849
        %3035 = vmatprep.subr.bf16.mxu0 %v2858
        %3036 = vmatpush1.bf16.msra.mxu0 %v2857
        %3037 = vmatprep.subr.bf16.mxu0 %v2866
        %3038 = vmatpush1.bf16.msra.mxu0 %v2865
        %3039 = vmatprep.subr.bf16.mxu0 %v2874
        %3040 = vmatpush1.bf16.msra.mxu0 %v2873
        %3041 = vmatprep.mubr.bf16.mxu0 %v2240
        %3042 = vmatmul.mubr.bf16.gmra.mrb[0].mxu0 %v2239
        %v3043 = vpop.f32.mrb[0].mxu0
        %v3044 = vadd.f32 0.0, %v3043
        %v3045 = vpop.f32.mrb[0].mxu0
        %v3046 = vadd.f32 0.0, %v3045
        %v3047 = vpop.f32.mrb[0].mxu0
        %v3048 = vadd.f32 0.0, %v3047
        %v3049 = vpop.f32.mrb[0].mxu0
        %v3050 = vadd.f32 0.0, %v3049
        %3051 = vdwg.mxu0
        %3052 = vmatprep.subr.bf16.mxu0 %v2756
        %3053 = vmatpush1.bf16.msra.mxu0 %v2755
        %3054 = vmatprep.subr.bf16.mxu0 %v2764
        %3055 = vmatpush1.bf16.msra.mxu0 %v2763
        %3056 = vmatprep.subr.bf16.mxu0 %v2772
        %3057 = vmatpush1.bf16.msra.mxu0 %v2771
        %3058 = vmatprep.subr.bf16.mxu0 %v2780
        %3059 = vmatpush1.bf16.msra.mxu0 %v2779
        %3060 = vmatprep.subr.bf16.mxu0 %v2788
        %3061 = vmatpush1.bf16.msra.mxu0 %v2787
        %3062 = vmatprep.subr.bf16.mxu0 %v2796
        %3063 = vmatpush1.bf16.msra.mxu0 %v2795
        %3064 = vmatprep.subr.bf16.mxu0 %v2804
        %3065 = vmatpush1.bf16.msra.mxu0 %v2803
        %3066 = vmatprep.subr.bf16.mxu0 %v2812
        %3067 = vmatpush1.bf16.msra.mxu0 %v2811
        %3068 = vmatprep.subr.bf16.mxu0 %v2820
        %3069 = vmatpush1.bf16.msra.mxu0 %v2819
        %3070 = vmatprep.subr.bf16.mxu0 %v2828
        %3071 = vmatpush1.bf16.msra.mxu0 %v2827
        %3072 = vmatprep.subr.bf16.mxu0 %v2836
        %3073 = vmatpush1.bf16.msra.mxu0 %v2835
        %3074 = vmatprep.subr.bf16.mxu0 %v2844
        %3075 = vmatpush1.bf16.msra.mxu0 %v2843
        %3076 = vmatprep.subr.bf16.mxu0 %v2852
        %3077 = vmatpush1.bf16.msra.mxu0 %v2851
        %3078 = vmatprep.subr.bf16.mxu0 %v2860
        %3079 = vmatpush1.bf16.msra.mxu0 %v2859
        %3080 = vmatprep.subr.bf16.mxu0 %v2868
        %3081 = vmatpush1.bf16.msra.mxu0 %v2867
        %3082 = vmatprep.subr.bf16.mxu0 %v2876
        %3083 = vmatpush1.bf16.msra.mxu0 %v2875
        %3084 = vmatprep.mubr.bf16.mxu0 %v2240
        %3085 = vmatmul.mubr.bf16.gmra.mrb[0].mxu0 %v2239
        %v3086 = vpop.f32.mrb[0].mxu0
        %v3087 = vadd.f32 0.0, %v3086
        %v3088 = vpop.f32.mrb[0].mxu0
        %v3089 = vadd.f32 0.0, %v3088
        %v3090 = vpop.f32.mrb[0].mxu0
        %v3091 = vadd.f32 0.0, %v3090
        %v3092 = vpop.f32.mrb[0].mxu0
        %v3093 = vadd.f32 0.0, %v3092
        %3094 = vdwg.mxu0
        %3095 = vmatprep.subr.bf16.mxu0 %v2758
        %3096 = vmatpush1.bf16.msra.mxu0 %v2757
        %3097 = vmatprep.subr.bf16.mxu0 %v2766
        %3098 = vmatpush1.bf16.msra.mxu0 %v2765
        %3099 = vmatprep.subr.bf16.mxu0 %v2774
        %3100 = vmatpush1.bf16.msra.mxu0 %v2773
        %3101 = vmatprep.subr.bf16.mxu0 %v2782
        %3102 = vmatpush1.bf16.msra.mxu0 %v2781
        %3103 = vmatprep.subr.bf16.mxu0 %v2790
        %3104 = vmatpush1.bf16.msra.mxu0 %v2789
        %3105 = vmatprep.subr.bf16.mxu0 %v2798
        %3106 = vmatpush1.bf16.msra.mxu0 %v2797
        %3107 = vmatprep.subr.bf16.mxu0 %v2806
        %3108 = vmatpush1.bf16.msra.mxu0 %v2805
        %3109 = vmatprep.subr.bf16.mxu0 %v2814
        %3110 = vmatpush1.bf16.msra.mxu0 %v2813
        %3111 = vmatprep.subr.bf16.mxu0 %v2822
        %3112 = vmatpush1.bf16.msra.mxu0 %v2821
        %3113 = vmatprep.subr.bf16.mxu0 %v2830
        %3114 = vmatpush1.bf16.msra.mxu0 %v2829
        %3115 = vmatprep.subr.bf16.mxu0 %v2838
        %3116 = vmatpush1.bf16.msra.mxu0 %v2837
        %3117 = vmatprep.subr.bf16.mxu0 %v2846
        %3118 = vmatpush1.bf16.msra.mxu0 %v2845
        %3119 = vmatprep.subr.bf16.mxu0 %v2854
        %3120 = vmatpush1.bf16.msra.mxu0 %v2853
        %3121 = vmatprep.subr.bf16.mxu0 %v2862
        %3122 = vmatpush1.bf16.msra.mxu0 %v2861
        %3123 = vmatprep.subr.bf16.mxu0 %v2870
        %3124 = vmatpush1.bf16.msra.mxu0 %v2869
        %3125 = vmatprep.subr.bf16.mxu0 %v2878
        %3126 = vmatpush1.bf16.msra.mxu0 %v2877
        %3127 = vmatprep.mubr.bf16.mxu0 %v2240
        %3128 = vmatmul.mubr.bf16.gmra.mrb[0].mxu0 %v2239
        %v3129 = vpop.f32.mrb[0].mxu0
        %v3130 = vadd.f32 0.0, %v3129
        %v3131 = vpop.f32.mrb[0].mxu0
        %v3132 = vadd.f32 0.0, %v3131
        %v3133 = vpop.f32.mrb[0].mxu0
        %v3134 = vadd.f32 0.0, %v3133
        %v3135 = vpop.f32.mrb[0].mxu0
        %v3136 = vadd.f32 0.0, %v3135
        %3137 = vdwg.mxu0
        %3138 = vmatprep.subr.bf16.mxu0 %v2760
        %3139 = vmatpush1.bf16.msra.mxu0 %v2759
        %3140 = vmatprep.subr.bf16.mxu0 %v2768
        %3141 = vmatpush1.bf16.msra.mxu0 %v2767
        %3142 = vmatprep.subr.bf16.mxu0 %v2776
        %3143 = vmatpush1.bf16.msra.mxu0 %v2775
        %3144 = vmatprep.subr.bf16.mxu0 %v2784
        %3145 = vmatpush1.bf16.msra.mxu0 %v2783
        %3146 = vmatprep.subr.bf16.mxu0 %v2792
        %3147 = vmatpush1.bf16.msra.mxu0 %v2791
        %3148 = vmatprep.subr.bf16.mxu0 %v2800
        %3149 = vmatpush1.bf16.msra.mxu0 %v2799
        %3150 = vmatprep.subr.bf16.mxu0 %v2808
        %3151 = vmatpush1.bf16.msra.mxu0 %v2807
        %3152 = vmatprep.subr.bf16.mxu0 %v2816
        %3153 = vmatpush1.bf16.msra.mxu0 %v2815
        %3154 = vmatprep.subr.bf16.mxu0 %v2824
        %3155 = vmatpush1.bf16.msra.mxu0 %v2823
        %3156 = vmatprep.subr.bf16.mxu0 %v2832
        %3157 = vmatpush1.bf16.msra.mxu0 %v2831
        %3158 = vmatprep.subr.bf16.mxu0 %v2840
        %3159 = vmatpush1.bf16.msra.mxu0 %v2839
        %3160 = vmatprep.subr.bf16.mxu0 %v2848
        %3161 = vmatpush1.bf16.msra.mxu0 %v2847
        %3162 = vmatprep.subr.bf16.mxu0 %v2856
        %3163 = vmatpush1.bf16.msra.mxu0 %v2855
        %3164 = vmatprep.subr.bf16.mxu0 %v2864
        %3165 = vmatpush1.bf16.msra.mxu0 %v2863
        %3166 = vmatprep.subr.bf16.mxu0 %v2872
        %3167 = vmatpush1.bf16.msra.mxu0 %v2871
        %3168 = vmatprep.subr.bf16.mxu0 %v2880
        %3169 = vmatpush1.bf16.msra.mxu0 %v2879
        %3170 = vmatprep.mubr.bf16.mxu0 %v2240
        %3171 = vmatmul.mubr.bf16.gmra.mrb[0].mxu0 %v2239
        %v3172 = vpop.f32.mrb[0].mxu0
        %v3173 = vadd.f32 0.0, %v3172
        %v3174 = vpop.f32.mrb[0].mxu0
        %v3175 = vadd.f32 0.0, %v3174
        %v3176 = vpop.f32.mrb[0].mxu0
        %v3177 = vadd.f32 0.0, %v3176
        %v3178 = vpop.f32.mrb[0].mxu0
        %v3179 = vadd.f32 0.0, %v3178
        %3180 = vdwg.mxu0
        %v3181 = vxor.u32 %v3044, 2147483648
        %v3182 = vxor.u32 %v3046, 2147483648
        %v3183 = vxor.u32 %v3087, 2147483648
        %v3184 = vxor.u32 %v3089, 2147483648
        %v3185 = vxor.u32 %v3048, 2147483648
        %v3186 = vxor.u32 %v3050, 2147483648
        %v3187 = vxor.u32 %v3091, 2147483648
        %v3188 = vxor.u32 %v3093, 2147483648
        %v3189 = vmul.f32 %v3181, 1.442695
        %v3190 = vpow.pop %v3189
        %v3191 = vmul.f32 %v3182, 1.442695
        %v3192 = vpow.pop %v3191
        %v3193 = vmul.f32 %v3183, 1.442695
        %v3194 = vpow.pop %v3193
        %v3195 = vmul.f32 %v3184, 1.442695
        %v3196 = vpow.pop %v3195
        %v3197 = vmul.f32 %v3185, 1.442695
        %v3198 = vpow.pop %v3197
        %v3199 = vmul.f32 %v3186, 1.442695
        %v3200 = vpow.pop %v3199
        %v3201 = vmul.f32 %v3187, 1.442695
        %v3202 = vpow.pop %v3201
        %v3203 = vmul.f32 %v3188, 1.442695
        %v3204 = vpow.pop %v3203
        %v3205 = vadd.f32 %v3190, 1.0
        %v3206 = vadd.f32 %v3192, 1.0
        %v3207 = vadd.f32 %v3194, 1.0
        %v3208 = vadd.f32 %v3196, 1.0
        %v3209 = vadd.f32 %v3198, 1.0
        %v3210 = vadd.f32 %v3200, 1.0
        %v3211 = vadd.f32 %v3202, 1.0
        %v3212 = vadd.f32 %v3204, 1.0
        %v3213 = vrcp.pop %v3205
        %v3214 = vmul.f32 1.0, %v3213
        %v3215 = vrcp.pop %v3206
        %v3216 = vmul.f32 1.0, %v3215
        %v3217 = vrcp.pop %v3207
        %v3218 = vmul.f32 1.0, %v3217
        %v3219 = vrcp.pop %v3208
        %v3220 = vmul.f32 1.0, %v3219
        %v3221 = vrcp.pop %v3209
        %v3222 = vmul.f32 1.0, %v3221
        %v3223 = vrcp.pop %v3210
        %v3224 = vmul.f32 1.0, %v3223
        %v3225 = vrcp.pop %v3211
        %v3226 = vmul.f32 1.0, %v3225
        %v3227 = vrcp.pop %v3212
        %v3228 = vmul.f32 1.0, %v3227
        %v3229 = vmul.f32 %v3044, %v3214
        %v3230 = vmul.f32 %v3046, %v3216
        %v3231 = vmul.f32 %v3087, %v3218
        %v3232 = vmul.f32 %v3089, %v3220
        %v3233 = vmul.f32 %v3048, %v3222
        %v3234 = vmul.f32 %v3050, %v3224
        %v3235 = vmul.f32 %v3091, %v3226
        %v3236 = vmul.f32 %v3093, %v3228
        %v3237 = vmul.f32 %v3229, %v3130
        %v3238 = vmul.f32 %v3230, %v3132
        %v3239 = vmul.f32 %v3231, %v3173
        %v3240 = vmul.f32 %v3232, %v3175
        %v3241 = vmul.f32 %v3233, %v3134
        %v3242 = vmul.f32 %v3234, %v3136
        %v3243 = vmul.f32 %v3235, %v3177
        %v3244 = vmul.f32 %v3236, %v3179
        %v3245 = vpack.c.bf16 %v3241, %v3237
        %v3246 = vpack.c.bf16 %v3242, %v3238
        %v3247 = vpack.c.bf16 %v3243, %v3239
        %v3248 = vpack.c.bf16 %v3244, %v3240
        %v3249 = vld [vmem:[%s497] sm:$0xff]
        %v3250 = vld [vmem:[%s497 + $0x8] sm:$0xff]
        %v3251 = vld [vmem:[%s497 + $0x10] sm:$0xff]
        %v3252 = vld [vmem:[%s497 + $0x18] sm:$0xff]
        %v3253 = vld [vmem:[%s497 + $0x20] sm:$0xff]
        %v3254 = vld [vmem:[%s497 + $0x28] sm:$0xff]
        %v3255 = vld [vmem:[%s497 + $0x30] sm:$0xff]
        %v3256 = vld [vmem:[%s497 + $0x38] sm:$0xff]
        %v3257 = vld [vmem:[%s497 + $0x40] sm:$0xff]
        %v3258 = vld [vmem:[%s497 + $0x48] sm:$0xff]
        %v3259 = vld [vmem:[%s497 + $0x50] sm:$0xff]
        %v3260 = vld [vmem:[%s497 + $0x58] sm:$0xff]
        %v3261 = vld [vmem:[%s497 + $0x60] sm:$0xff]
        %v3262 = vld [vmem:[%s497 + $0x68] sm:$0xff]
        %v3263 = vld [vmem:[%s497 + $0x70] sm:$0xff]
        %v3264 = vld [vmem:[%s497 + $0x78] sm:$0xff]
        %v3265 = vld [vmem:[%s497 + $0x80] sm:$0xff]
        %v3266 = vld [vmem:[%s497 + $0x88] sm:$0xff]
        %v3267 = vld [vmem:[%s497 + $0x90] sm:$0xff]
        %v3268 = vld [vmem:[%s497 + $0x98] sm:$0xff]
        %v3269 = vld [vmem:[%s497 + $0xa0] sm:$0xff]
        %v3270 = vld [vmem:[%s497 + $0xa8] sm:$0xff]
        %v3271 = vld [vmem:[%s497 + $0xb0] sm:$0xff]
        %v3272 = vld [vmem:[%s497 + $0xb8] sm:$0xff]
        %v3273 = vld [vmem:[%s497 + $0xc0] sm:$0xff]
        %v3274 = vld [vmem:[%s497 + $0xc8] sm:$0xff]
        %v3275 = vld [vmem:[%s497 + $0xd0] sm:$0xff]
        %v3276 = vld [vmem:[%s497 + $0xd8] sm:$0xff]
        %v3277 = vld [vmem:[%s497 + $0xe0] sm:$0xff]
        %v3278 = vld [vmem:[%s497 + $0xe8] sm:$0xff]
        %v3279 = vld [vmem:[%s497 + $0xf0] sm:$0xff]
        %v3280 = vld [vmem:[%s497 + $0xf8] sm:$0xff]
        %v3281 = vld [vmem:[%s497 + $0x100] sm:$0xff]
        %v3282 = vld [vmem:[%s497 + $0x108] sm:$0xff]
        %v3283 = vld [vmem:[%s497 + $0x110] sm:$0xff]
        %v3284 = vld [vmem:[%s497 + $0x118] sm:$0xff]
        %v3285 = vld [vmem:[%s497 + $0x120] sm:$0xff]
        %v3286 = vld [vmem:[%s497 + $0x128] sm:$0xff]
        %v3287 = vld [vmem:[%s497 + $0x130] sm:$0xff]
        %v3288 = vld [vmem:[%s497 + $0x138] sm:$0xff]
        %v3289 = vld [vmem:[%s497 + $0x140] sm:$0xff]
        %v3290 = vld [vmem:[%s497 + $0x148] sm:$0xff]
        %v3291 = vld [vmem:[%s497 + $0x150] sm:$0xff]
        %v3292 = vld [vmem:[%s497 + $0x158] sm:$0xff]
        %v3293 = vld [vmem:[%s497 + $0x160] sm:$0xff]
        %v3294 = vld [vmem:[%s497 + $0x168] sm:$0xff]
        %v3295 = vld [vmem:[%s497 + $0x170] sm:$0xff]
        %v3296 = vld [vmem:[%s497 + $0x178] sm:$0xff]
        %v3297 = vld [vmem:[%s497 + $0x180] sm:$0xff]
        %v3298 = vld [vmem:[%s497 + $0x188] sm:$0xff]
        %v3299 = vld [vmem:[%s497 + $0x190] sm:$0xff]
        %v3300 = vld [vmem:[%s497 + $0x198] sm:$0xff]
        %v3301 = vld [vmem:[%s497 + $0x1a0] sm:$0xff]
        %v3302 = vld [vmem:[%s497 + $0x1a8] sm:$0xff]
        %v3303 = vld [vmem:[%s497 + $0x1b0] sm:$0xff]
        %v3304 = vld [vmem:[%s497 + $0x1b8] sm:$0xff]
        %v3305 = vld [vmem:[%s497 + $0x1c0] sm:$0xff]
        %v3306 = vld [vmem:[%s497 + $0x1c8] sm:$0xff]
        %v3307 = vld [vmem:[%s497 + $0x1d0] sm:$0xff]
        %v3308 = vld [vmem:[%s497 + $0x1d8] sm:$0xff]
        %v3309 = vld [vmem:[%s497 + $0x1e0] sm:$0xff]
        %v3310 = vld [vmem:[%s497 + $0x1e8] sm:$0xff]
        %v3311 = vld [vmem:[%s497 + $0x1f0] sm:$0xff]
        %v3312 = vld [vmem:[%s497 + $0x1f8] sm:$0xff]
        %v3377 = vunpack.c.l.b16 %v3249
        %v3378 = vunpack.c.h.b16 %v3249
        %v3379 = vunpack.c.l.b16 %v3250
        %v3380 = vunpack.c.h.b16 %v3250
        %v3381 = vunpack.c.l.b16 %v3251
        %v3382 = vunpack.c.h.b16 %v3251
        %v3383 = vunpack.c.l.b16 %v3252
        %v3384 = vunpack.c.h.b16 %v3252
        %v3385 = vunpack.c.l.b16 %v3253
        %v3386 = vunpack.c.h.b16 %v3253
        %v3387 = vunpack.c.l.b16 %v3254
        %v3388 = vunpack.c.h.b16 %v3254
        %v3389 = vunpack.c.l.b16 %v3255
        %v3390 = vunpack.c.h.b16 %v3255
        %v3391 = vunpack.c.l.b16 %v3256
        %v3392 = vunpack.c.h.b16 %v3256
        %v3393 = vunpack.c.l.b16 %v3257
        %v3394 = vunpack.c.h.b16 %v3257
        %v3395 = vunpack.c.l.b16 %v3258
        %v3396 = vunpack.c.h.b16 %v3258
        %v3397 = vunpack.c.l.b16 %v3259
        %v3398 = vunpack.c.h.b16 %v3259
        %v3399 = vunpack.c.l.b16 %v3260
        %v3400 = vunpack.c.h.b16 %v3260
        %v3401 = vunpack.c.l.b16 %v3261
        %v3402 = vunpack.c.h.b16 %v3261
        %v3403 = vunpack.c.l.b16 %v3262
        %v3404 = vunpack.c.h.b16 %v3262
        %v3405 = vunpack.c.l.b16 %v3263
        %v3406 = vunpack.c.h.b16 %v3263
        %v3407 = vunpack.c.l.b16 %v3264
        %v3408 = vunpack.c.h.b16 %v3264
        %v3409 = vunpack.c.l.b16 %v3265
        %v3410 = vunpack.c.h.b16 %v3265
        %v3411 = vunpack.c.l.b16 %v3266
        %v3412 = vunpack.c.h.b16 %v3266
        %v3413 = vunpack.c.l.b16 %v3267
        %v3414 = vunpack.c.h.b16 %v3267
        %v3415 = vunpack.c.l.b16 %v3268
        %v3416 = vunpack.c.h.b16 %v3268
        %v3417 = vunpack.c.l.b16 %v3269
        %v3418 = vunpack.c.h.b16 %v3269
        %v3419 = vunpack.c.l.b16 %v3270
        %v3420 = vunpack.c.h.b16 %v3270
        %v3421 = vunpack.c.l.b16 %v3271
        %v3422 = vunpack.c.h.b16 %v3271
        %v3423 = vunpack.c.l.b16 %v3272
        %v3424 = vunpack.c.h.b16 %v3272
        %v3425 = vunpack.c.l.b16 %v3273
        %v3426 = vunpack.c.h.b16 %v3273
        %v3427 = vunpack.c.l.b16 %v3274
        %v3428 = vunpack.c.h.b16 %v3274
        %v3429 = vunpack.c.l.b16 %v3275
        %v3430 = vunpack.c.h.b16 %v3275
        %v3431 = vunpack.c.l.b16 %v3276
        %v3432 = vunpack.c.h.b16 %v3276
        %v3433 = vunpack.c.l.b16 %v3277
        %v3434 = vunpack.c.h.b16 %v3277
        %v3435 = vunpack.c.l.b16 %v3278
        %v3436 = vunpack.c.h.b16 %v3278
        %v3437 = vunpack.c.l.b16 %v3279
        %v3438 = vunpack.c.h.b16 %v3279
        %v3439 = vunpack.c.l.b16 %v3280
        %v3440 = vunpack.c.h.b16 %v3280
        %v3441 = vunpack.c.l.b16 %v3281
        %v3442 = vunpack.c.h.b16 %v3281
        %v3443 = vunpack.c.l.b16 %v3282
        %v3444 = vunpack.c.h.b16 %v3282
        %v3445 = vunpack.c.l.b16 %v3283
        %v3446 = vunpack.c.h.b16 %v3283
        %v3447 = vunpack.c.l.b16 %v3284
        %v3448 = vunpack.c.h.b16 %v3284
        %v3449 = vunpack.c.l.b16 %v3285
        %v3450 = vunpack.c.h.b16 %v3285
        %v3451 = vunpack.c.l.b16 %v3286
        %v3452 = vunpack.c.h.b16 %v3286
        %v3453 = vunpack.c.l.b16 %v3287
        %v3454 = vunpack.c.h.b16 %v3287
        %v3455 = vunpack.c.l.b16 %v3288
        %v3456 = vunpack.c.h.b16 %v3288
        %v3457 = vunpack.c.l.b16 %v3289
        %v3458 = vunpack.c.h.b16 %v3289
        %v3459 = vunpack.c.l.b16 %v3290
        %v3460 = vunpack.c.h.b16 %v3290
        %v3461 = vunpack.c.l.b16 %v3291
        %v3462 = vunpack.c.h.b16 %v3291
        %v3463 = vunpack.c.l.b16 %v3292
        %v3464 = vunpack.c.h.b16 %v3292
        %v3465 = vunpack.c.l.b16 %v3293
        %v3466 = vunpack.c.h.b16 %v3293
        %v3467 = vunpack.c.l.b16 %v3294
        %v3468 = vunpack.c.h.b16 %v3294
        %v3469 = vunpack.c.l.b16 %v3295
        %v3470 = vunpack.c.h.b16 %v3295
        %v3471 = vunpack.c.l.b16 %v3296
        %v3472 = vunpack.c.h.b16 %v3296
        %v3473 = vunpack.c.l.b16 %v3297
        %v3474 = vunpack.c.h.b16 %v3297
        %v3475 = vunpack.c.l.b16 %v3298
        %v3476 = vunpack.c.h.b16 %v3298
        %v3477 = vunpack.c.l.b16 %v3299
        %v3478 = vunpack.c.h.b16 %v3299
        %v3479 = vunpack.c.l.b16 %v3300
        %v3480 = vunpack.c.h.b16 %v3300
        %v3481 = vunpack.c.l.b16 %v3301
        %v3482 = vunpack.c.h.b16 %v3301
        %v3483 = vunpack.c.l.b16 %v3302
        %v3484 = vunpack.c.h.b16 %v3302
        %v3485 = vunpack.c.l.b16 %v3303
        %v3486 = vunpack.c.h.b16 %v3303
        %v3487 = vunpack.c.l.b16 %v3304
        %v3488 = vunpack.c.h.b16 %v3304
        %v3489 = vunpack.c.l.b16 %v3305
        %v3490 = vunpack.c.h.b16 %v3305
        %v3491 = vunpack.c.l.b16 %v3306
        %v3492 = vunpack.c.h.b16 %v3306
        %v3493 = vunpack.c.l.b16 %v3307
        %v3494 = vunpack.c.h.b16 %v3307
        %v3495 = vunpack.c.l.b16 %v3308
        %v3496 = vunpack.c.h.b16 %v3308
        %v3497 = vunpack.c.l.b16 %v3309
        %v3498 = vunpack.c.h.b16 %v3309
        %v3499 = vunpack.c.l.b16 %v3310
        %v3500 = vunpack.c.h.b16 %v3310
        %v3501 = vunpack.c.l.b16 %v3311
        %v3502 = vunpack.c.h.b16 %v3311
        %v3503 = vunpack.c.l.b16 %v3312
        %v3504 = vunpack.c.h.b16 %v3312
        %v3505 = vpack.c.b16 %v3379, %v3377
        %v3506 = vpack.c.b16 %v3380, %v3378
        %v3507 = vpack.c.b16 %v3383, %v3381
        %v3508 = vpack.c.b16 %v3384, %v3382
        %v3509 = vpack.c.b16 %v3387, %v3385
        %v3510 = vpack.c.b16 %v3388, %v3386
        %v3511 = vpack.c.b16 %v3391, %v3389
        %v3512 = vpack.c.b16 %v3392, %v3390
        %v3513 = vpack.c.b16 %v3395, %v3393
        %v3514 = vpack.c.b16 %v3396, %v3394
        %v3515 = vpack.c.b16 %v3399, %v3397
        %v3516 = vpack.c.b16 %v3400, %v3398
        %v3517 = vpack.c.b16 %v3403, %v3401
        %v3518 = vpack.c.b16 %v3404, %v3402
        %v3519 = vpack.c.b16 %v3407, %v3405
        %v3520 = vpack.c.b16 %v3408, %v3406
        %v3521 = vpack.c.b16 %v3411, %v3409
        %v3522 = vpack.c.b16 %v3412, %v3410
        %v3523 = vpack.c.b16 %v3415, %v3413
        %v3524 = vpack.c.b16 %v3416, %v3414
        %v3525 = vpack.c.b16 %v3419, %v3417
        %v3526 = vpack.c.b16 %v3420, %v3418
        %v3527 = vpack.c.b16 %v3423, %v3421
        %v3528 = vpack.c.b16 %v3424, %v3422
        %v3529 = vpack.c.b16 %v3427, %v3425
        %v3530 = vpack.c.b16 %v3428, %v3426
        %v3531 = vpack.c.b16 %v3431, %v3429
        %v3532 = vpack.c.b16 %v3432, %v3430
        %v3533 = vpack.c.b16 %v3435, %v3433
        %v3534 = vpack.c.b16 %v3436, %v3434
        %v3535 = vpack.c.b16 %v3439, %v3437
        %v3536 = vpack.c.b16 %v3440, %v3438
        %v3537 = vpack.c.b16 %v3443, %v3441
        %v3538 = vpack.c.b16 %v3444, %v3442
        %v3539 = vpack.c.b16 %v3447, %v3445
        %v3540 = vpack.c.b16 %v3448, %v3446
        %v3541 = vpack.c.b16 %v3451, %v3449
        %v3542 = vpack.c.b16 %v3452, %v3450
        %v3543 = vpack.c.b16 %v3455, %v3453
        %v3544 = vpack.c.b16 %v3456, %v3454
        %v3545 = vpack.c.b16 %v3459, %v3457
        %v3546 = vpack.c.b16 %v3460, %v3458
        %v3547 = vpack.c.b16 %v3463, %v3461
        %v3548 = vpack.c.b16 %v3464, %v3462
        %v3549 = vpack.c.b16 %v3467, %v3465
        %v3550 = vpack.c.b16 %v3468, %v3466
        %v3551 = vpack.c.b16 %v3471, %v3469
        %v3552 = vpack.c.b16 %v3472, %v3470
        %v3553 = vpack.c.b16 %v3475, %v3473
        %v3554 = vpack.c.b16 %v3476, %v3474
        %v3555 = vpack.c.b16 %v3479, %v3477
        %v3556 = vpack.c.b16 %v3480, %v3478
        %v3557 = vpack.c.b16 %v3483, %v3481
        %v3558 = vpack.c.b16 %v3484, %v3482
        %v3559 = vpack.c.b16 %v3487, %v3485
        %v3560 = vpack.c.b16 %v3488, %v3486
        %v3561 = vpack.c.b16 %v3491, %v3489
        %v3562 = vpack.c.b16 %v3492, %v3490
        %v3563 = vpack.c.b16 %v3495, %v3493
        %v3564 = vpack.c.b16 %v3496, %v3494
        %v3565 = vpack.c.b16 %v3499, %v3497
        %v3566 = vpack.c.b16 %v3500, %v3498
        %v3567 = vpack.c.b16 %v3503, %v3501
        %v3568 = vpack.c.b16 %v3504, %v3502
        %3633 = vmatprep.subr.bf16.mxu0 %v3506
        %3634 = vmatpush1.bf16.msra.mxu0 %v3505
        %3635 = vmatprep.subr.bf16.mxu0 %v3508
        %3636 = vmatpush1.bf16.msra.mxu0 %v3507
        %3637 = vmatprep.subr.bf16.mxu0 %v3510
        %3638 = vmatpush1.bf16.msra.mxu0 %v3509
        %3639 = vmatprep.subr.bf16.mxu0 %v3512
        %3640 = vmatpush1.bf16.msra.mxu0 %v3511
        %3641 = vmatprep.subr.bf16.mxu0 %v3514
        %3642 = vmatpush1.bf16.msra.mxu0 %v3513
        %3643 = vmatprep.subr.bf16.mxu0 %v3516
        %3644 = vmatpush1.bf16.msra.mxu0 %v3515
        %3645 = vmatprep.subr.bf16.mxu0 %v3518
        %3646 = vmatpush1.bf16.msra.mxu0 %v3517
        %3647 = vmatprep.subr.bf16.mxu0 %v3520
        %3648 = vmatpush1.bf16.msra.mxu0 %v3519
        %3649 = vmatprep.subr.bf16.mxu0 %v3522
        %3650 = vmatpush1.bf16.msra.mxu0 %v3521
        %3651 = vmatprep.subr.bf16.mxu0 %v3524
        %3652 = vmatpush1.bf16.msra.mxu0 %v3523
        %3653 = vmatprep.subr.bf16.mxu0 %v3526
        %3654 = vmatpush1.bf16.msra.mxu0 %v3525
        %3655 = vmatprep.subr.bf16.mxu0 %v3528
        %3656 = vmatpush1.bf16.msra.mxu0 %v3527
        %3657 = vmatprep.subr.bf16.mxu0 %v3530
        %3658 = vmatpush1.bf16.msra.mxu0 %v3529
        %3659 = vmatprep.subr.bf16.mxu0 %v3532
        %3660 = vmatpush1.bf16.msra.mxu0 %v3531
        %3661 = vmatprep.subr.bf16.mxu0 %v3534
        %3662 = vmatpush1.bf16.msra.mxu0 %v3533
        %3663 = vmatprep.subr.bf16.mxu0 %v3536
        %3664 = vmatpush1.bf16.msra.mxu0 %v3535
        %3665 = vmatprep.mubr.bf16.mxu0 %v3246
        %3666 = vmatmul.mubr.bf16.gmra.mrb[0].mxu0 %v3245
        %v3667 = vpop.f32.mrb[0].mxu0
        %v3668 = vadd.f32 0.0, %v3667
        %v3669 = vpop.f32.mrb[0].mxu0
        %v3670 = vadd.f32 0.0, %v3669
        %v3671 = vpop.f32.mrb[0].mxu0
        %v3672 = vadd.f32 0.0, %v3671
        %v3673 = vpop.f32.mrb[0].mxu0
        %v3674 = vadd.f32 0.0, %v3673
        %3675 = vdwg.mxu0
        %3676 = vmatprep.subr.bf16.mxu0 %v3538
        %3677 = vmatpush1.bf16.msra.mxu0 %v3537
        %3678 = vmatprep.subr.bf16.mxu0 %v3540
        %3679 = vmatpush1.bf16.msra.mxu0 %v3539
        %3680 = vmatprep.subr.bf16.mxu0 %v3542
        %3681 = vmatpush1.bf16.msra.mxu0 %v3541
        %3682 = vmatprep.subr.bf16.mxu0 %v3544
        %3683 = vmatpush1.bf16.msra.mxu0 %v3543
        %3684 = vmatprep.subr.bf16.mxu0 %v3546
        %3685 = vmatpush1.bf16.msra.mxu0 %v3545
        %3686 = vmatprep.subr.bf16.mxu0 %v3548
        %3687 = vmatpush1.bf16.msra.mxu0 %v3547
        %3688 = vmatprep.subr.bf16.mxu0 %v3550
        %3689 = vmatpush1.bf16.msra.mxu0 %v3549
        %3690 = vmatprep.subr.bf16.mxu0 %v3552
        %3691 = vmatpush1.bf16.msra.mxu0 %v3551
        %3692 = vmatprep.subr.bf16.mxu0 %v3554
        %3693 = vmatpush1.bf16.msra.mxu0 %v3553
        %3694 = vmatprep.subr.bf16.mxu0 %v3556
        %3695 = vmatpush1.bf16.msra.mxu0 %v3555
        %3696 = vmatprep.subr.bf16.mxu0 %v3558
        %3697 = vmatpush1.bf16.msra.mxu0 %v3557
        %3698 = vmatprep.subr.bf16.mxu0 %v3560
        %3699 = vmatpush1.bf16.msra.mxu0 %v3559
        %3700 = vmatprep.subr.bf16.mxu0 %v3562
        %3701 = vmatpush1.bf16.msra.mxu0 %v3561
        %3702 = vmatprep.subr.bf16.mxu0 %v3564
        %3703 = vmatpush1.bf16.msra.mxu0 %v3563
        %3704 = vmatprep.subr.bf16.mxu0 %v3566
        %3705 = vmatpush1.bf16.msra.mxu0 %v3565
        %3706 = vmatprep.subr.bf16.mxu0 %v3568
        %3707 = vmatpush1.bf16.msra.mxu0 %v3567
        %3708 = vmatprep.mubr.bf16.mxu0 %v3248
        %3709 = vmatmul.mubr.bf16.gmra.mrb[0].mxu0 %v3247
        %v3710 = vpop.f32.mrb[0].mxu0
        %v3711 = vadd.f32 %v3668, %v3710
        %v3712 = vpop.f32.mrb[0].mxu0
        %v3713 = vadd.f32 %v3670, %v3712
        %v3714 = vpop.f32.mrb[0].mxu0
        %v3715 = vadd.f32 %v3672, %v3714
        %v3716 = vpop.f32.mrb[0].mxu0
        %v3717 = vadd.f32 %v3674, %v3716
        %3718 = vdwg.mxu0
        %v3719 = vadd.f32 %v2193, %v3711
        %v3720 = vadd.f32 %v2194, %v3713
        %v3721 = vadd.f32 %v2195, %v3715
        %v3722 = vadd.f32 %v2196, %v3717
        %p3723 = scmp.ne.s32.totalorder %s32, 1
        // Predicated region
        $region97: #{transformers_model_forward.1} parent=55 // pred_check
          %p3724 = pneg %p3723
        $region98: #{transformers_model_forward.1} parent=55 // pred_check_branch
          %3726 = sbr.rel (%p3724) target = $region100
        $region99: #{transformers_model_forward.1} parent=55 // pred_region
          %3727 = vst [vmem:[#allocation17] sm:$0xff] %v3719
          %3728 = vst [vmem:[#allocation17 + $0x8] sm:$0xff] %v3720
          %3729 = vst [vmem:[#allocation17 + $0x10] sm:$0xff] %v3721
          %3730 = vst [vmem:[#allocation17 + $0x18] sm:$0xff] %v3722
        $region100: #{transformers_model_forward.1} parent=55 // pred_fallthru
          _
        %p3731 = scmp.eq.s32.totalorder %s32, 1
        // Predicated region
        $region101: #{transformers_model_forward.1} parent=55 // pred_check
          %p3732 = pneg %p3731
        $region102: #{transformers_model_forward.1} parent=55 // pred_check_branch
          %3734 = sbr.rel (%p3732) target = $region104
        $region103: #{transformers_model_forward.1} parent=55 // pred_region
          %v3735 = vld [vmem:[#allocation10] sm:$0x3]
          %v3736 = vmul.f32 %v3719, %v3719
          %v3737 = vmul.f32 %v3720, %v3720
          %v3738 = vmul.f32 %v3721, %v3721
          %v3739 = vmul.f32 %v3722, %v3722
          %v3740 = vadd.f32 %v3736, %v3737
          %3741 = vadd.xlane.f32.xlu0 %v3740
          %v3742 = vpop.xlane.xlu0 %3741
          %v3743 = vadd.f32 %v3738, %v3739
          %3744 = vadd.xlane.f32.xlu0 %v3743
          %v3745 = vpop.xlane.xlu0 %3744
          %v3746 = vmul.f32 %v3742, %v579
          %v3747 = vmul.f32 %v3745, %v579
          %v3748 = vadd.f32 %v3746, 1e-06
          %v3749 = vadd.f32 %v3747, 1e-06
          %v3750 = vrsqrt.pop %v3748
          %v3751 = vrsqrt.pop %v3749
          %v3752 = vmul.f32 %v3719, %v3750
          %v3753 = vmul.f32 %v3720, %v3750
          %v3754 = vmul.f32 %v3721, %v3751
          %v3755 = vmul.f32 %v3722, %v3751
          %v3757 = vlaneseq
          %v3758 = vshrl.u32 %v3757, 7
          %v3759 = vsub.s32 0, %v3758
          %v3760 = vrot.slane %v3735, %v3759
          %v3761 = vlaneseq
          %v3762 = vshrl.u32 %v3761, 7
          %v3763 = vsub.s32 1, %v3762
          %v3764 = vrot.slane %v3735, %v3763
          %v3767 = vmul.f32 %v3752, %v3760
          %v3768 = vmul.f32 %v3753, %v3764
          %v3769 = vmul.f32 %v3754, %v3760
          %v3770 = vmul.f32 %v3755, %v3764
          %3771 = vst [vmem:[#allocation17] sm:$0xff] %v3767
          %3772 = vst [vmem:[#allocation17 + $0x8] sm:$0xff] %v3768
          %3773 = vst [vmem:[#allocation17 + $0x10] sm:$0xff] %v3769
          %3774 = vst [vmem:[#allocation17 + $0x18] sm:$0xff] %v3770
        $region104: #{transformers_model_forward.1} parent=55 // pred_fallthru
          _
        // Predicated region
        $region105: #{transformers_model_forward.1} parent=55 // pred_check
          %p3775 = pneg %p259
        $region106: #{transformers_model_forward.1} parent=55 // pred_check_branch
          %3777 = sbr.rel (%p3775) target = $region108
        $region107: #{transformers_model_forward.1} parent=55 // pred_region
          %s3779 = ssub.s32 512, 512
          %3780 = vsyncadd [#allocation4], %s3779
          %s3781 = sshll.u32 [#allocation17], 4
          %s3782 = int_to_ptr.vmem [resolvable:$true] %s3781
          %3787 = dma.vmem_to_hbm [thread:$0]  %s3782, 512, %s9, [#allocation4], 256, 256, 16
        $region108: #{transformers_model_forward.1} parent=55 // pred_fallthru
          _
        // Predicated region
        $region109: #{transformers_model_forward.1} parent=55 // pred_check
          %p3788 = pneg %p259
        $region110: #{transformers_model_forward.1} parent=55 // pred_check_branch
          %3790 = sbr.rel (%p3788) target = $region112
        $region111: #{transformers_model_forward.1} parent=55 // pred_region
          %3791 = dma.done [#allocation4], 512
        $region112: #{transformers_model_forward.1} parent=55 // pred_fallthru
          _
      $region56: #{transformers_model_forward.1} parent=5 // pred_fallthru
        _
      %p3792 = scmp.le.s32.totalorder 2, %s27
      // Predicated region
      $region113: #{transformers_model_forward.1} parent=5 // pred_check
        %p3793 = pneg %p3792
      $region114: #{transformers_model_forward.1} parent=5 // pred_check_branch
        %3795 = sbr.rel (%p3793) target = $region116
      $region115: #{transformers_model_forward.1} parent=5 // pred_region
        %s3796 = ssub.s32 %s27, 2
      $region116: #{transformers_model_forward.1} parent=5 // pred_fallthru
        _
    $region6: #{transformers_model_forward.1} parent=1 // loop_footer
      %s31 = sadd.s32 1, %s27
    $region7: #{transformers_model_forward.1} parent=1 // loop_footer_branch
      %26 = sbr.rel target = $region3
    $region8: #{transformers_model_forward.1} parent=1 // loop_exit
      _
    %3797 = vsyncpa [#allocation3], 1
    %s3798 = scalar_lea.sflag [#allocation3], 1
    %3799 = vsyncpa %s3798, 1
    %3800 = vsyncpa [#allocation6], 1
    %3801 = vsyncpa [#allocation9], 1
    %s3802 = scalar_lea.sflag [#allocation9], 1
    %3803 = vsyncpa %s3802, 1
    %3804 = vsyncpa [#allocation12], 1
    %s3805 = scalar_lea.sflag [#allocation12], 1
    %3806 = vsyncpa %s3805, 1
    %3807 = vsyncpa [#allocation15], 1
    %s3808 = scalar_lea.sflag [#allocation15], 1
    %3809 = vsyncpa %s3808, 1
    %3810 = vsyncpa [#allocation4], 1
    %s3811 = scalar_lea.sflag [#allocation4], 1
    %3812 = vsyncpa %s3811, 1

</llo_original>
